<compile_context>
chip_gen: v7x
topology: tpu7x:2x2x1
jax: 0.10.0
libtpu: 0.0.40
codegen_flags: <defaults>
</compile_context>

<pallas_src>
import functools

import jax
import jax.numpy as jnp
from jax import lax
from jax.experimental import pallas as pl
from jax.experimental.pallas import tpu as pltpu

EPS = 1e-5                      # nn.BatchNorm2d default eps
LANE = 128                      # TPU lane width: channel dims padded to this


def _round_up(x, m):
    return (x + m - 1) // m * m


# ---------------------------------------------------------------------------
# VMEM budget / tile sizing
# ---------------------------------------------------------------------------
def _vmem_limit_bytes():
    """~75% of physical VMEM (96 MiB on v5e/v6e, 48 MiB on v7x), capped."""
    cap = 64 * 1024 * 1024
    try:
        cap = int(pltpu.get_tpu_info().vmem_capacity_bytes)
    except Exception:
        pass
    return int(min(max(cap * 3 // 4, 32 * 1024 * 1024), 100 * 1024 * 1024))


def _vmem_est(th, w, cp, cq, csz):
    """Conservative per-tile VMEM estimate (max of pass-2 / pass-3)."""
    f32 = 4
    m = th * w
    # pass 2: bn1+relu -> conv1 + shortcut + bn2 partial stats
    p2 = 2 * (m * cp * f32 + 2 * w * cp * f32)       # x center + 2 halo rows (dbl buf)
    p2 += 2 * 2 * m * cq * csz                       # h1 + sc output blocks
    p2 += 2 * 8 * cq * f32                           # stats block
    p2 += 2 * 10 * cp * cq * csz                     # w_sc + w1 (dbl buffered)
    p2 += (th + 2) * (w + 2) * cp * (f32 + csz)      # activation (f32 + cast)
    p2 += 2 * m * 3 * cp * csz                       # ~2 live im2col slabs
    p2 += 2 * m * cq * f32                           # f32 accumulators
    # pass 3: bn2+relu -> conv2 + residual
    p3 = 2 * (m * cq * csz + 2 * w * cq * csz)       # h1 center + halo rows
    p3 += 2 * m * cq * csz                           # sc
    p3 += 2 * m * cq * f32                           # out
    p3 += 2 * 9 * cq * cq * csz                      # w2
    p3 += (th + 2) * (w + 2) * cq * (f32 + csz)
    p3 += 2 * m * 3 * cq * csz
    p3 += 2 * m * cq * f32
    return max(p2, p3)


def _auto_tile_h(h, w, cp, cq, csz, vmem_limit):
    """Largest row-tile dividing H that fits the budget (M capped at 4096)."""
    budget = int(vmem_limit * 0.8)
    divisors = [d for d in range(1, h + 1) if h % d == 0]
    best = divisors[0]
    for th in divisors:
        if th * w > 4096 and th != divisors[0]:
            break
        if _vmem_est(th, w, cp, cq, csz) <= budget:
            best = th
    return best


# ---------------------------------------------------------------------------
# kernels
# ---------------------------------------------------------------------------
def _conv3x3_acc(act_p, w_ref, th, w):
    """3x3 'same' conv of a (th+2, w+2, c) padded activation tile.

    Split into 3 accumulating dots of K=3*c (one per kernel row) so only a
    3x im2col column matrix is live at a time."""
    c = act_p.shape[-1]
    acc = None
    for kh in range(3):
        slab = act_p[kh:kh + th]                                   # (th, w+2, c)
        cols = jnp.concatenate(
            [slab[:, 0:w, :], slab[:, 1:w + 1, :], slab[:, 2:w + 2, :]],
            axis=-1).reshape(th * w, 3 * c)
        d = jnp.dot(cols, w_ref[kh * 3 * c:(kh + 1) * 3 * c, :],
                    preferred_element_type=jnp.float32)
        acc = d if acc is None else acc + d
    return acc                                                      # (th*w, cout) f32


def _bn1_conv1_kernel(xc_ref, xt_ref, xb_ref, wsc_ref, w1_ref,
                      scale_ref, shift_ref, h1_ref, sc_ref, stats_ref):
    """BN1(batch)+ReLU -> conv3x3, plus 1x1 shortcut and BN2 partial stats."""
    t = pl.program_id(1)
    nt = pl.num_programs(1)
    th, w, _ = xc_ref.shape
    cq = h1_ref.shape[-1]
    cd = w1_ref.dtype                                # matmul compute dtype

    scale = scale_ref[...]                           # (1, 1, cp) f32
    shift = shift_ref[...]
    bn_relu = lambda v: jnp.maximum(v.astype(jnp.float32) * scale + shift, 0.0)

    # Conv 'same' zero padding: the halo rows are clamped duplicates when the
    # tile touches the image border -> zero them with a scalar keep-factor
    # (O(row) work, no full-tile iota mask).
    top_keep = jnp.where(t > 0, 1.0, 0.0)
    bot_keep = jnp.where(t < nt - 1, 1.0, 0.0)
    a_top = bn_relu(xt_ref[...]) * top_keep          # (1, w, cp)
    a_mid = bn_relu(xc_ref[...])                     # (th, w, cp)
    a_bot = bn_relu(xb_ref[...]) * bot_keep          # (1, w, cp)

    act = jnp.concatenate([a_top, a_mid, a_bot], axis=0).astype(cd)
    zcol = jnp.zeros((th + 2, 1, act.shape[-1]), cd)
    act = jnp.concatenate([zcol, act, zcol], axis=1)          # (th+2, w+2, cp)

    h1 = _conv3x3_acc(act, w1_ref, th, w)            # (th*w, cq) f32

    # 1x1 shortcut conv on the raw (un-normalized) interior rows.
    x_int = xc_ref[...].astype(cd).reshape(th * w, -1)
    sc = jnp.dot(x_int, wsc_ref[...], preferred_element_type=jnp.float32)

    h1_ref[...] = h1.reshape(th, w, cq).astype(h1_ref.dtype)
    sc_ref[...] = sc.reshape(th, w, cq).astype(sc_ref.dtype)

    # Fused BN2 partial sums (f32, computed before the storage-dtype cast).
    s = jnp.sum(h1, axis=0, keepdims=True)
    ss = jnp.sum(h1 * h1, axis=0, keepdims=True)
    part = jnp.concatenate([s, ss, jnp.zeros((6, cq), jnp.float32)], axis=0)

    @pl.when(t == 0)
    def _():
        stats_ref[...] = jnp.zeros_like(stats_ref)

    stats_ref[...] += part                           # per-batch accumulator


def _bn2_conv2_kernel(hc_ref, ht_ref, hb_ref, sc_ref, w2_ref,
                      scale_ref, shift_ref, out_ref):
    """BN2(batch)+ReLU -> conv3x3 -> + shortcut."""
    t = pl.program_id(1)
    nt = pl.num_programs(1)
    th, w, cq = hc_ref.shape
    cd = w2_ref.dtype

    scale = scale_ref[...]
    shift = shift_ref[...]
    bn_relu = lambda v: jnp.maximum(v.astype(jnp.float32) * scale + shift, 0.0)

    top_keep = jnp.where(t > 0, 1.0, 0.0)
    bot_keep = jnp.where(t < nt - 1, 1.0, 0.0)
    a_top = bn_relu(ht_ref[...]) * top_keep
    a_mid = bn_relu(hc_ref[...])
    a_bot = bn_relu(hb_ref[...]) * bot_keep

    act = jnp.concatenate([a_top, a_mid, a_bot], axis=0).astype(cd)
    zcol = jnp.zeros((th + 2, 1, cq), cd)
    act = jnp.concatenate([zcol, act, zcol], axis=1)          # (th+2, w+2, cq)

    h2 = _conv3x3_acc(act, w2_ref, th, w)            # (th*w, cq) f32
    out = h2.reshape(th, w, cq) + sc_ref[...].astype(jnp.float32)
    out_ref[...] = out.astype(out_ref.dtype)


# ---------------------------------------------------------------------------
# wrapper
# ---------------------------------------------------------------------------
def _fold_bn(mean, var, gamma, beta):
    """Fold batch mean/var + affine into one per-channel scale/shift pair."""
    scale = gamma * lax.rsqrt(var + EPS)
    shift = beta - mean * scale
    c = gamma.shape[0]
    return (scale.reshape(1, 1, c).astype(jnp.float32),
            shift.reshape(1, 1, c).astype(jnp.float32))


def residual_block_pallas(x_nchw, params, *,
                          compute_dtype=jnp.bfloat16, tile_h=None):
    """Forward of the PyTorch ResidualBlock.  x_nchw: (N, Cin, H, W) f32."""
    n, cin, h, w = x_nchw.shape
    cout = params["w_sc"].shape[0]
    cp = _round_up(cin, LANE)       # lane-dense channel padding
    cq = _round_up(cout, LANE)
    csz = jnp.dtype(compute_dtype).itemsize
    vmem_limit = _vmem_limit_bytes()
    if tile_h is None:
        tile_h = _auto_tile_h(h, w, cp, cq, csz, vmem_limit)
    assert h % tile_h == 0, "H must be divisible by tile_h"
    nt = h // tile_h
    count = float(n * h * w)

    # NCHW -> NHWC + lane-dense channel padding (one staging pass).
    x_nhwc = jnp.transpose(x_nchw, (0, 2, 3, 1)).astype(jnp.float32)
    x_nhwc = jnp.pad(x_nhwc, ((0, 0), (0, 0), (0, 0), (0, cp - cin)))

    # BN1 batch statistics as plain XLA (fused with the staging pass above;
    # the old standalone Pallas stats pass is gone).
    mean1 = jnp.mean(x_nhwc, axis=(0, 1, 2))
    var1 = jnp.var(x_nhwc, axis=(0, 1, 2))            # biased, like PyTorch
    g1 = jnp.pad(params["bn1_gamma"].astype(jnp.float32), (0, cp - cin),
                 constant_values=1.0)
    b1 = jnp.pad(params["bn1_beta"].astype(jnp.float32), (0, cp - cin))
    scale1, shift1 = _fold_bn(mean1, var1, g1, b1)

    # Weights: PyTorch (O,I,kh,kw) -> lane-dense matmul layouts.
    w_sc = jnp.pad(params["w_sc"][:, :, 0, 0].T,
                   ((0, cp - cin), (0, cq - cout))).astype(compute_dtype)
    w1 = jnp.transpose(params["w1"], (2, 3, 1, 0))                  # (3,3,ci,co)
    w1 = jnp.pad(w1, ((0, 0), (0, 0), (0, cp - cin), (0, cq - cout)))
    w1 = w1.reshape(9 * cp, cq).astype(compute_dtype)               # K = 9*cp
    w2 = jnp.transpose(params["w2"], (2, 3, 1, 0))
    w2 = jnp.pad(w2, ((0, 0), (0, 0), (0, cq - cout), (0, cq - cout)))
    w2 = w2.reshape(9 * cq, cq).astype(compute_dtype)               # K = 9*cq
    g2 = jnp.pad(params["bn2_gamma"].astype(jnp.float32), (0, cq - cout),
                 constant_values=1.0)
    b2 = jnp.pad(params["bn2_beta"].astype(jnp.float32), (0, cq - cout))

    grid = (n, nt)
    center = lambda c: pl.BlockSpec((None, tile_h, w, c),
                                    lambda i, t: (i, t, 0, 0))
    # Halo rows: single-row blocks of the SAME compact array, with the row
    # index clamped at the image border (the clamped duplicate row is zeroed
    # in-kernel, reproducing the conv's 'same' zero padding).
    toprow = lambda c: pl.BlockSpec(
        (None, 1, w, c), lambda i, t: (i, jnp.maximum(t * tile_h - 1, 0), 0, 0))
    botrow = lambda c: pl.BlockSpec(
        (None, 1, w, c), lambda i, t: (i, jnp.minimum((t + 1) * tile_h, h - 1), 0, 0))
    full2d = lambda shape: pl.BlockSpec(shape, lambda i, t: (0, 0))
    vec = lambda c: pl.BlockSpec((1, 1, c), lambda i, t: (0, 0, 0))
    cparams = lambda sem: pltpu.CompilerParams(dimension_semantics=sem,
                                               vmem_limit_bytes=vmem_limit)

    # ---- pass A: bn1+relu -> conv1, 1x1 shortcut, fused partial bn2 stats --
    h1, sc, stats2 = pl.pallas_call(
        _bn1_conv1_kernel,
        out_shape=(jax.ShapeDtypeStruct((n, h, w, cq), compute_dtype),
                   jax.ShapeDtypeStruct((n, h, w, cq), compute_dtype),
                   jax.ShapeDtypeStruct((n, 8, cq), jnp.float32)),
        grid=grid,
        in_specs=[center(cp), toprow(cp), botrow(cp),
                  full2d((cp, cq)), full2d((9 * cp, cq)),
                  vec(cp), vec(cp)],
        out_specs=(center(cq), center(cq),
                   pl.BlockSpec((None, 8, cq), lambda i, t: (i, 0, 0))),
        compiler_params=cparams(("parallel", "arbitrary")),   # per-batch stats accum
        cost_estimate=pl.CostEstimate(
            flops=2 * n * h * w * cp * cq * 10, transcendentals=0,
            bytes_accessed=int(n * h * w * cp * 4 * (1.0 + 2.0 / tile_h)
                               + 2 * n * h * w * cq * csz
                               + n * 8 * cq * 4 + 10 * cp * cq * csz)),
    )(x_nhwc, x_nhwc, x_nhwc, w_sc, w1, scale1, shift1)

    # Fold BN2 batch statistics (sum over the per-batch partials).
    stats = jnp.sum(stats2, axis=0)
    mean2 = stats[0] / count
    # One-pass var (E[x^2]-mean^2), clamped >= 0; fine at activation scales.
    var2 = jnp.maximum(stats[1] / count - mean2 * mean2, 0.0)
    scale2, shift2 = _fold_bn(mean2, var2, g2, b2)

    # ---- pass B: bn2+relu -> conv2 -> + shortcut ---------------------------
    out_nhwc = pl.pallas_call(
        _bn2_conv2_kernel,
        out_shape=jax.ShapeDtypeStruct((n, h, w, cq), jnp.float32),
        grid=grid,
        in_specs=[center(cq), toprow(cq), botrow(cq), center(cq),
                  full2d((9 * cq, cq)), vec(cq), vec(cq)],
        out_specs=center(cq),
        compiler_params=cparams(("parallel", "parallel")),    # megacore on v7x
        cost_estimate=pl.CostEstimate(
            flops=2 * n * h * w * 9 * cq * cq, transcendentals=0,
            bytes_accessed=int(n * h * w * cq * csz * (2.0 + 2.0 / tile_h)
                               + n * h * w * cq * 4 + 9 * cq * cq * csz)),
    )(h1, h1, h1, sc, w2, scale2, shift2)

    out = out_nhwc[..., :cout]
    return jnp.transpose(out, (0, 3, 1, 2)).astype(x_nchw.dtype)


# ---------------------------------------------------------------------------
# plain-JAX (XLA) reference of the PyTorch forward, for verification
# ---------------------------------------------------------------------------
def residual_block_reference(x, params):
    def bn(hh, gamma, beta):
        mean = jnp.mean(hh, axis=(0, 2, 3), keepdims=True)
        var = jnp.var(hh, axis=(0, 2, 3), keepdims=True)   # biased, like PyTorch
        return ((hh - mean) / jnp.sqrt(var + EPS)
                * gamma.reshape(1, -1, 1, 1) + beta.reshape(1, -1, 1, 1))

    conv = functools.partial(
        lax.conv_general_dilated, window_strides=(1, 1),
        dimension_numbers=("NCHW", "OIHW", "NCHW"))

    x_sc = conv(x, params["w_sc"], padding="VALID")
    hh = jax.nn.relu(bn(x, params["bn1_gamma"], params["bn1_beta"]))
    hh = conv(hh, params["w1"], padding=((1, 1), (1, 1)))
    hh = jax.nn.relu(bn(hh, params["bn2_gamma"], params["bn2_beta"]))
    hh = conv(hh, params["w2"], padding=((1, 1), (1, 1)))
    return hh + x_sc


if __name__ == "__main__":
    N, Cin, Cout, H, W = 2, 4, 8, 16, 16

    key = jax.random.PRNGKey(0)
    kx, ksc, k1, k2, kg1, kb1, kg2, kb2 = jax.random.split(key, 8)

    x = jax.random.normal(kx, (N, Cin, H, W), dtype=jnp.float32)
    params = {
        "w_sc": jax.random.normal(ksc, (Cout, Cin, 1, 1), jnp.float32) * 0.2,
        "w1": jax.random.normal(k1, (Cout, Cin, 3, 3), jnp.float32) * 0.2,
        "w2": jax.random.normal(k2, (Cout, Cout, 3, 3), jnp.float32) * 0.2,
        "bn1_gamma": 1.0 + 0.1 * jax.random.normal(kg1, (Cin,), jnp.float32),
        "bn1_beta": 0.1 * jax.random.normal(kb1, (Cin,), jnp.float32),
        "bn2_gamma": 1.0 + 0.1 * jax.random.normal(kg2, (Cout,), jnp.float32),
        "bn2_beta": 0.1 * jax.random.normal(kb2, (Cout,), jnp.float32),
    }

    ref = jax.block_until_ready(residual_block_reference(x, params))

    # f32 matmul / f32 intermediate path: strict correctness check.
    out_f32 = jax.block_until_ready(
        residual_block_pallas(x, params, compute_dtype=jnp.float32))
    assert out_f32.shape == (N, Cout, H, W), out_f32.shape
    err_f32 = float(jnp.max(jnp.abs(out_f32 - ref)))
    assert jnp.allclose(out_f32, ref, atol=2e-2, rtol=2e-2), err_f32

    # bf16 MXU-operand + bf16-intermediate path (the perf config): sanity check.
    out_bf16 = jax.block_until_ready(
        residual_block_pallas(x, params, compute_dtype=jnp.bfloat16))
    err_bf16 = float(jnp.max(jnp.abs(out_bf16 - ref)))
    assert bool(jnp.all(jnp.isfinite(out_bf16)))
    assert err_bf16 < 0.5, err_bf16

    print("KERNEL_OK")
</pallas_src>

<mosaic_0001>
module attributes {stable_mosaic.version = 11 : i64} {
  func.func @_bn1_conv1_kernel(%arg0: i32, %arg1: i32, %arg2: memref<1x16x16x128xf32, #tpu.memory_space<vmem>>, %arg3: memref<1x1x16x128xf32, #tpu.memory_space<vmem>>, %arg4: memref<1x1x16x128xf32, #tpu.memory_space<vmem>>, %arg5: memref<128x128xf32, #tpu.memory_space<vmem>>, %arg6: memref<1152x128xf32, #tpu.memory_space<vmem>>, %arg7: memref<1x1x128xf32, #tpu.memory_space<vmem>>, %arg8: memref<1x1x128xf32, #tpu.memory_space<vmem>>, %arg9: memref<1x16x16x128xf32, #tpu.memory_space<vmem>>, %arg10: memref<1x16x16x128xf32, #tpu.memory_space<vmem>>, %arg11: memref<1x8x128xf32, #tpu.memory_space<vmem>>) attributes {dimension_semantics = [#tpu.dimension_semantics<parallel>, #tpu.dimension_semantics<arbitrary>], iteration_bounds = array<i64: 2, 1>, scalar_prefetch = 0 : i64, scratch_operands = 0 : i64, tpu.core_type = #tpu.core_type<tc>, window_params = [{transform_indices = @transform_0, window_bounds = array<i64: 1, 16, 16, 128>}, {transform_indices = @transform_1, window_bounds = array<i64: 1, 1, 16, 128>}, {transform_indices = @transform_2, window_bounds = array<i64: 1, 1, 16, 128>}, {pipeline_mode = #tpu.pipeline_mode<synchronous>, transform_indices = @transform_3, window_bounds = array<i64: 128, 128>}, {pipeline_mode = #tpu.pipeline_mode<synchronous>, transform_indices = @transform_4, window_bounds = array<i64: 1152, 128>}, {pipeline_mode = #tpu.pipeline_mode<synchronous>, transform_indices = @transform_5, window_bounds = array<i64: 1, 1, 128>}, {pipeline_mode = #tpu.pipeline_mode<synchronous>, transform_indices = @transform_6, window_bounds = array<i64: 1, 1, 128>}, {transform_indices = @transform_7, window_bounds = array<i64: 1, 16, 16, 128>}, {transform_indices = @transform_8, window_bounds = array<i64: 1, 16, 16, 128>}, {transform_indices = @transform_9, window_bounds = array<i64: 1, 8, 128>}]} {
    %c0 = arith.constant 0 : index
    %c0_0 = arith.constant 0 : index
    %c0_1 = arith.constant 0 : index
    %0 = vector.load %arg7[%c0, %c0_0, %c0_1] : memref<1x1x128xf32, #tpu.memory_space<vmem>>, vector<1x1x128xf32>
    %c0_2 = arith.constant 0 : index
    %c0_3 = arith.constant 0 : index
    %c0_4 = arith.constant 0 : index
    %1 = vector.load %arg8[%c0_2, %c0_3, %c0_4] : memref<1x1x128xf32, #tpu.memory_space<vmem>>, vector<1x1x128xf32>
    %c0_i32 = arith.constant 0 : i32
    %2 = arith.cmpi sgt, %arg1, %c0_i32 : i32
    %cst = arith.constant 1.000000e+00 : f32
    %cst_5 = arith.constant 0.000000e+00 : f32
    %3 = arith.select %2, %cst, %cst_5 : f32
    %c0_i32_6 = arith.constant 0 : i32
    %4 = arith.cmpi slt, %arg1, %c0_i32_6 : i32
    %cst_7 = arith.constant 1.000000e+00 : f32
    %cst_8 = arith.constant 0.000000e+00 : f32
    %5 = arith.select %4, %cst_7, %cst_8 : f32
    %c0_9 = arith.constant 0 : index
    %c0_10 = arith.constant 0 : index
    %c0_11 = arith.constant 0 : index
    %c0_12 = arith.constant 0 : index
    %6 = vector.load %arg3[%c0_9, %c0_10, %c0_11, %c0_12] : memref<1x1x16x128xf32, #tpu.memory_space<vmem>>, vector<1x1x16x128xf32>
    %7 = vector.shape_cast %6 : vector<1x1x16x128xf32> to vector<1x16x128xf32>
    %8 = vector.broadcast %0 : vector<1x1x128xf32> to vector<1x16x128xf32>
    %9 = arith.mulf %7, %8 : vector<1x16x128xf32>
    %10 = vector.broadcast %1 : vector<1x1x128xf32> to vector<1x16x128xf32>
    %11 = arith.addf %9, %10 : vector<1x16x128xf32>
    %cst_13 = arith.constant 0.000000e+00 : f32
    %12 = vector.broadcast %cst_13 : f32 to vector<1x16x128xf32>
    %13 = arith.maximumf %11, %12 : vector<1x16x128xf32>
    %14 = vector.broadcast %3 : f32 to vector<1x16x128xf32>
    %15 = arith.mulf %13, %14 : vector<1x16x128xf32>
    %c0_14 = arith.constant 0 : index
    %c0_15 = arith.constant 0 : index
    %c0_16 = arith.constant 0 : index
    %c0_17 = arith.constant 0 : index
    %16 = vector.load %arg2[%c0_14, %c0_15, %c0_16, %c0_17] : memref<1x16x16x128xf32, #tpu.memory_space<vmem>>, vector<1x16x16x128xf32>
    %17 = vector.shape_cast %16 : vector<1x16x16x128xf32> to vector<16x16x128xf32>
    %18 = vector.broadcast %0 : vector<1x1x128xf32> to vector<16x16x128xf32>
    %19 = arith.mulf %17, %18 : vector<16x16x128xf32>
    %20 = vector.broadcast %1 : vector<1x1x128xf32> to vector<16x16x128xf32>
    %21 = arith.addf %19, %20 : vector<16x16x128xf32>
    %cst_18 = arith.constant 0.000000e+00 : f32
    %22 = vector.broadcast %cst_18 : f32 to vector<16x16x128xf32>
    %23 = arith.maximumf %21, %22 : vector<16x16x128xf32>
    %c0_19 = arith.constant 0 : index
    %c0_20 = arith.constant 0 : index
    %c0_21 = arith.constant 0 : index
    %c0_22 = arith.constant 0 : index
    %24 = vector.load %arg4[%c0_19, %c0_20, %c0_21, %c0_22] : memref<1x1x16x128xf32, #tpu.memory_space<vmem>>, vector<1x1x16x128xf32>
    %25 = vector.shape_cast %24 : vector<1x1x16x128xf32> to vector<1x16x128xf32>
    %26 = vector.broadcast %0 : vector<1x1x128xf32> to vector<1x16x128xf32>
    %27 = arith.mulf %25, %26 : vector<1x16x128xf32>
    %28 = vector.broadcast %1 : vector<1x1x128xf32> to vector<1x16x128xf32>
    %29 = arith.addf %27, %28 : vector<1x16x128xf32>
    %cst_23 = arith.constant 0.000000e+00 : f32
    %30 = vector.broadcast %cst_23 : f32 to vector<1x16x128xf32>
    %31 = arith.maximumf %29, %30 : vector<1x16x128xf32>
    %32 = vector.broadcast %5 : f32 to vector<1x16x128xf32>
    %33 = arith.mulf %31, %32 : vector<1x16x128xf32>
    %34 = tpu.concatenate %15, %23, %33 in 0 : vector<1x16x128xf32>, vector<16x16x128xf32>, vector<1x16x128xf32> -> vector<18x16x128xf32>
    %cst_24 = arith.constant 0.000000e+00 : f32
    %35 = vector.broadcast %cst_24 : f32 to vector<18x1x128xf32>
    %36 = tpu.concatenate %35, %34, %35 in 1 : vector<18x1x128xf32>, vector<18x16x128xf32>, vector<18x1x128xf32> -> vector<18x18x128xf32>
    %37 = vector.extract_strided_slice %36 {offsets = [0, 0, 0], sizes = [16, 18, 128], strides = [1, 1, 1]} : vector<18x18x128xf32> to vector<16x18x128xf32>
    %38 = vector.extract_strided_slice %37 {offsets = [0, 0, 0], sizes = [16, 16, 128], strides = [1, 1, 1]} : vector<16x18x128xf32> to vector<16x16x128xf32>
    %39 = vector.extract_strided_slice %37 {offsets = [0, 1, 0], sizes = [16, 16, 128], strides = [1, 1, 1]} : vector<16x18x128xf32> to vector<16x16x128xf32>
    %40 = vector.extract_strided_slice %37 {offsets = [0, 2, 0], sizes = [16, 16, 128], strides = [1, 1, 1]} : vector<16x18x128xf32> to vector<16x16x128xf32>
    %41 = tpu.concatenate %38, %39, %40 in 2 : vector<16x16x128xf32>, vector<16x16x128xf32>, vector<16x16x128xf32> -> vector<16x16x384xf32>
    %42 = vector.shape_cast %41 : vector<16x16x384xf32> to vector<256x384xf32>
    %c0_25 = arith.constant 0 : index
    %c0_26 = arith.constant 0 : index
    %43 = vector.load %arg6[%c0_25, %c0_26] : memref<1152x128xf32, #tpu.memory_space<vmem>>, vector<384x128xf32>
    %cst_27 = arith.constant dense<0.000000e+00> : vector<256x128xf32>
    %44 = tpu.matmul %42, %43, %cst_27 {dimension_numbers = #tpu.dot_dimension_numbers<[1], [0], [0], [1], [0, 0, 1, 1], [], []>} : vector<256x384xf32>, vector<384x128xf32>, vector<256x128xf32> -> vector<256x128xf32>
    %45 = vector.extract_strided_slice %36 {offsets = [1, 0, 0], sizes = [16, 18, 128], strides = [1, 1, 1]} : vector<18x18x128xf32> to vector<16x18x128xf32>
    %46 = vector.extract_strided_slice %45 {offsets = [0, 0, 0], sizes = [16, 16, 128], strides = [1, 1, 1]} : vector<16x18x128xf32> to vector<16x16x128xf32>
    %47 = vector.extract_strided_slice %45 {offsets = [0, 1, 0], sizes = [16, 16, 128], strides = [1, 1, 1]} : vector<16x18x128xf32> to vector<16x16x128xf32>
    %48 = vector.extract_strided_slice %45 {offsets = [0, 2, 0], sizes = [16, 16, 128], strides = [1, 1, 1]} : vector<16x18x128xf32> to vector<16x16x128xf32>
    %49 = tpu.concatenate %46, %47, %48 in 2 : vector<16x16x128xf32>, vector<16x16x128xf32>, vector<16x16x128xf32> -> vector<16x16x384xf32>
    %50 = vector.shape_cast %49 : vector<16x16x384xf32> to vector<256x384xf32>
    %c384 = arith.constant 384 : index
    %c0_28 = arith.constant 0 : index
    %51 = vector.load %arg6[%c384, %c0_28] : memref<1152x128xf32, #tpu.memory_space<vmem>>, vector<384x128xf32>
    %cst_29 = arith.constant dense<0.000000e+00> : vector<256x128xf32>
    %52 = tpu.matmul %50, %51, %cst_29 {dimension_numbers = #tpu.dot_dimension_numbers<[1], [0], [0], [1], [0, 0, 1, 1], [], []>} : vector<256x384xf32>, vector<384x128xf32>, vector<256x128xf32> -> vector<256x128xf32>
    %53 = arith.addf %44, %52 : vector<256x128xf32>
    %54 = vector.extract_strided_slice %36 {offsets = [2, 0, 0], sizes = [16, 18, 128], strides = [1, 1, 1]} : vector<18x18x128xf32> to vector<16x18x128xf32>
    %55 = vector.extract_strided_slice %54 {offsets = [0, 0, 0], sizes = [16, 16, 128], strides = [1, 1, 1]} : vector<16x18x128xf32> to vector<16x16x128xf32>
    %56 = vector.extract_strided_slice %54 {offsets = [0, 1, 0], sizes = [16, 16, 128], strides = [1, 1, 1]} : vector<16x18x128xf32> to vector<16x16x128xf32>
    %57 = vector.extract_strided_slice %54 {offsets = [0, 2, 0], sizes = [16, 16, 128], strides = [1, 1, 1]} : vector<16x18x128xf32> to vector<16x16x128xf32>
    %58 = tpu.concatenate %55, %56, %57 in 2 : vector<16x16x128xf32>, vector<16x16x128xf32>, vector<16x16x128xf32> -> vector<16x16x384xf32>
    %59 = vector.shape_cast %58 : vector<16x16x384xf32> to vector<256x384xf32>
    %c768 = arith.constant 768 : index
    %c0_30 = arith.constant 0 : index
    %60 = vector.load %arg6[%c768, %c0_30] : memref<1152x128xf32, #tpu.memory_space<vmem>>, vector<384x128xf32>
    %cst_31 = arith.constant dense<0.000000e+00> : vector<256x128xf32>
    %61 = tpu.matmul %59, %60, %cst_31 {dimension_numbers = #tpu.dot_dimension_numbers<[1], [0], [0], [1], [0, 0, 1, 1], [], []>} : vector<256x384xf32>, vector<384x128xf32>, vector<256x128xf32> -> vector<256x128xf32>
    %62 = arith.addf %53, %61 : vector<256x128xf32>
    %c0_32 = arith.constant 0 : index
    %c0_33 = arith.constant 0 : index
    %c0_34 = arith.constant 0 : index
    %c0_35 = arith.constant 0 : index
    %63 = vector.load %arg2[%c0_32, %c0_33, %c0_34, %c0_35] : memref<1x16x16x128xf32, #tpu.memory_space<vmem>>, vector<1x16x16x128xf32>
    %64 = vector.shape_cast %63 : vector<1x16x16x128xf32> to vector<16x16x128xf32>
    %65 = vector.shape_cast %64 : vector<16x16x128xf32> to vector<256x128xf32>
    %c0_36 = arith.constant 0 : index
    %c0_37 = arith.constant 0 : index
    %66 = vector.load %arg5[%c0_36, %c0_37] : memref<128x128xf32, #tpu.memory_space<vmem>>, vector<128x128xf32>
    %cst_38 = arith.constant dense<0.000000e+00> : vector<256x128xf32>
    %67 = tpu.matmul %65, %66, %cst_38 {dimension_numbers = #tpu.dot_dimension_numbers<[1], [0], [0], [1], [0, 0, 1, 1], [], []>} : vector<256x128xf32>, vector<128x128xf32>, vector<256x128xf32> -> vector<256x128xf32>
    %68 = vector.shape_cast %62 : vector<256x128xf32> to vector<16x16x128xf32>
    %c0_39 = arith.constant 0 : index
    %c0_40 = arith.constant 0 : index
    %c0_41 = arith.constant 0 : index
    %c0_42 = arith.constant 0 : index
    %69 = vector.load %arg9[%c0_39, %c0_40, %c0_41, %c0_42] : memref<1x16x16x128xf32, #tpu.memory_space<vmem>>, vector<1x16x16x128xf32>
    %70 = vector.shape_cast %69 : vector<1x16x16x128xf32> to vector<16x16x128xf32>
    %71 = vector.shape_cast %68 : vector<16x16x128xf32> to vector<1x16x16x128xf32>
    tpu.vector_store %arg9[%c0_39, %c0_40, %c0_41, %c0_42], %71 {strides = array<i32>} : memref<1x16x16x128xf32, #tpu.memory_space<vmem>>, vector<1x16x16x128xf32>,
    %72 = vector.shape_cast %67 : vector<256x128xf32> to vector<16x16x128xf32>
    %c0_43 = arith.constant 0 : index
    %c0_44 = arith.constant 0 : index
    %c0_45 = arith.constant 0 : index
    %c0_46 = arith.constant 0 : index
    %73 = vector.load %arg10[%c0_43, %c0_44, %c0_45, %c0_46] : memref<1x16x16x128xf32, #tpu.memory_space<vmem>>, vector<1x16x16x128xf32>
    %74 = vector.shape_cast %73 : vector<1x16x16x128xf32> to vector<16x16x128xf32>
    %75 = vector.shape_cast %72 : vector<16x16x128xf32> to vector<1x16x16x128xf32>
    tpu.vector_store %arg10[%c0_43, %c0_44, %c0_45, %c0_46], %75 {strides = array<i32>} : memref<1x16x16x128xf32, #tpu.memory_space<vmem>>, vector<1x16x16x128xf32>,
    %cst_47 = arith.constant dense<0.000000e+00> : vector<128xf32>
    %76 = vector.multi_reduction <add>, %62, %cst_47 [0] : vector<256x128xf32> to vector<128xf32>
    %77 = vector.shape_cast %76 : vector<128xf32> to vector<1x128xf32>
    %78 = arith.mulf %62, %62 : vector<256x128xf32>
    %cst_48 = arith.constant dense<0.000000e+00> : vector<128xf32>
    %79 = vector.multi_reduction <add>, %78, %cst_48 [0] : vector<256x128xf32> to vector<128xf32>
    %80 = vector.shape_cast %79 : vector<128xf32> to vector<1x128xf32>
    %cst_49 = arith.constant 0.000000e+00 : f32
    %81 = vector.broadcast %cst_49 : f32 to vector<6x128xf32>
    %82 = tpu.concatenate %77, %80, %81 in 0 : vector<1x128xf32>, vector<1x128xf32>, vector<6x128xf32> -> vector<8x128xf32>
    %c0_i32_50 = arith.constant 0 : i32
    %83 = arith.cmpi eq, %arg1, %c0_i32_50 : i32
    %84 = arith.extui %83 : i1 to i32
    %c0_i32_51 = arith.constant 0 : i32
    %85 = arith.cmpi ne, %84, %c0_i32_51 : i32
    scf.if %85 {
      %cst_58 = arith.constant 0.000000e+00 : f32
      %92 = vector.broadcast %cst_58 : f32 to vector<8x128xf32>
      %c0_59 = arith.constant 0 : index
      %c0_60 = arith.constant 0 : index
      %c0_61 = arith.constant 0 : index
      %93 = vector.load %arg11[%c0_59, %c0_60, %c0_61] : memref<1x8x128xf32, #tpu.memory_space<vmem>>, vector<1x8x128xf32>
      %94 = vector.shape_cast %93 : vector<1x8x128xf32> to vector<8x128xf32>
      %95 = vector.shape_cast %92 : vector<8x128xf32> to vector<1x8x128xf32>
      tpu.vector_store %arg11[%c0_59, %c0_60, %c0_61], %95 {strides = array<i32>} : memref<1x8x128xf32, #tpu.memory_space<vmem>>, vector<1x8x128xf32>,
    } else {
    }
    %c0_52 = arith.constant 0 : index
    %c0_53 = arith.constant 0 : index
    %c0_54 = arith.constant 0 : index
    %86 = vector.load %arg11[%c0_52, %c0_53, %c0_54] : memref<1x8x128xf32, #tpu.memory_space<vmem>>, vector<1x8x128xf32>
    %87 = vector.shape_cast %86 : vector<1x8x128xf32> to vector<8x128xf32>
    %88 = arith.addf %87, %82 : vector<8x128xf32>
    %c0_55 = arith.constant 0 : index
    %c0_56 = arith.constant 0 : index
    %c0_57 = arith.constant 0 : index
    %89 = vector.load %arg11[%c0_55, %c0_56, %c0_57] : memref<1x8x128xf32, #tpu.memory_space<vmem>>, vector<1x8x128xf32>
    %90 = vector.shape_cast %89 : vector<1x8x128xf32> to vector<8x128xf32>
    %91 = vector.shape_cast %88 : vector<8x128xf32> to vector<1x8x128xf32>
    tpu.vector_store %arg11[%c0_55, %c0_56, %c0_57], %91 {strides = array<i32>} : memref<1x8x128xf32, #tpu.memory_space<vmem>>, vector<1x8x128xf32>,
    return
  }
  func.func @transform_0(%arg0: i32, %arg1: i32) -> (i32, i32, i32, i32) {
    %c0_i32 = arith.constant 0 : i32
    %c0_i32_0 = arith.constant 0 : i32
    %c0_i32_1 = arith.constant 0 : i32
    return %arg0, %arg1, %c0_i32, %c0_i32_0 : i32, i32, i32, i32
  }
  func.func @transform_1(%arg0: i32, %arg1: i32) -> (i32, i32, i32, i32) {
    %c16_i32 = arith.constant 16 : i32
    %0 = arith.muli %arg1, %c16_i32 : i32
    %c1_i32 = arith.constant 1 : i32
    %1 = arith.subi %0, %c1_i32 : i32
    %c0_i32 = arith.constant 0 : i32
    %2 = arith.maxsi %1, %c0_i32 : i32
    %c0_i32_0 = arith.constant 0 : i32
    %c0_i32_1 = arith.constant 0 : i32
    %c0_i32_2 = arith.constant 0 : i32
    return %arg0, %2, %c0_i32_0, %c0_i32_1 : i32, i32, i32, i32
  }
  func.func @transform_2(%arg0: i32, %arg1: i32) -> (i32, i32, i32, i32) {
    %c1_i32 = arith.constant 1 : i32
    %0 = arith.addi %arg1, %c1_i32 : i32
    %c16_i32 = arith.constant 16 : i32
    %1 = arith.muli %0, %c16_i32 : i32
    %c15_i32 = arith.constant 15 : i32
    %2 = arith.minsi %1, %c15_i32 : i32
    %c0_i32 = arith.constant 0 : i32
    %c0_i32_0 = arith.constant 0 : i32
    %c0_i32_1 = arith.constant 0 : i32
    return %arg0, %2, %c0_i32, %c0_i32_0 : i32, i32, i32, i32
  }
  func.func @transform_3(%arg0: i32, %arg1: i32) -> (i32, i32) {
    %c0_i32 = arith.constant 0 : i32
    %c0_i32_0 = arith.constant 0 : i32
    %c0_i32_1 = arith.constant 0 : i32
    return %c0_i32, %c0_i32_0 : i32, i32
  }
  func.func @transform_4(%arg0: i32, %arg1: i32) -> (i32, i32) {
    %c0_i32 = arith.constant 0 : i32
    %c0_i32_0 = arith.constant 0 : i32
    %c0_i32_1 = arith.constant 0 : i32
    return %c0_i32, %c0_i32_0 : i32, i32
  }
  func.func @transform_5(%arg0: i32, %arg1: i32) -> (i32, i32, i32) {
    %c0_i32 = arith.constant 0 : i32
    %c0_i32_0 = arith.constant 0 : i32
    %c0_i32_1 = arith.constant 0 : i32
    %c0_i32_2 = arith.constant 0 : i32
    return %c0_i32, %c0_i32_0, %c0_i32_1 : i32, i32, i32
  }
  func.func @transform_6(%arg0: i32, %arg1: i32) -> (i32, i32, i32) {
    %c0_i32 = arith.constant 0 : i32
    %c0_i32_0 = arith.constant 0 : i32
    %c0_i32_1 = arith.constant 0 : i32
    %c0_i32_2 = arith.constant 0 : i32
    return %c0_i32, %c0_i32_0, %c0_i32_1 : i32, i32, i32
  }
  func.func @transform_7(%arg0: i32, %arg1: i32) -> (i32, i32, i32, i32) {
    %c0_i32 = arith.constant 0 : i32
    %c0_i32_0 = arith.constant 0 : i32
    %c0_i32_1 = arith.constant 0 : i32
    return %arg0, %arg1, %c0_i32, %c0_i32_0 : i32, i32, i32, i32
  }
  func.func @transform_8(%arg0: i32, %arg1: i32) -> (i32, i32, i32, i32) {
    %c0_i32 = arith.constant 0 : i32
    %c0_i32_0 = arith.constant 0 : i32
    %c0_i32_1 = arith.constant 0 : i32
    return %arg0, %arg1, %c0_i32, %c0_i32_0 : i32, i32, i32, i32
  }
  func.func @transform_9(%arg0: i32, %arg1: i32) -> (i32, i32, i32) {
    %c0_i32 = arith.constant 0 : i32
    %c0_i32_0 = arith.constant 0 : i32
    %c0_i32_1 = arith.constant 0 : i32
    return %arg0, %c0_i32, %c0_i32_0 : i32, i32, i32
  }
}

</mosaic_0001>

<llo_original>
// kernel: tpu_custom_call.1
$region0: #{tpu_custom_call.1}
  #allocation0 [shape = 'u32[]', space=smem, size = 0x4, offset = 0x4, fixed_abs, tag = 'smem constant byte address 0x4 - core index']
  #allocation1 [shape = 'u32[144,128]{1,0:T(1,128)}', space=vmem, size = 0x12000, scoped, tag = 'internal scratch']
  %s0 = inlined_call_operand.hbm [shape: f32[2,16,16,128], index: 0, kind: input, shape index: {}]
  %s1 = inlined_call_operand.hbm [shape: f32[2,16,16,128], index: 1, kind: input, shape index: {}]
  %s2 = inlined_call_operand.hbm [shape: f32[2,16,16,128], index: 2, kind: input, shape index: {}]
  %s3 = inlined_call_operand.hbm [shape: f32[128,128], index: 3, kind: input, shape index: {}]
  %s4 = inlined_call_operand.hbm [shape: f32[1152,128], index: 4, kind: input, shape index: {}]
  %s5 = inlined_call_operand.vmem [shape: f32[1,1,128], index: 5, kind: input, shape index: {}]
  %s6 = inlined_call_operand.vmem [shape: f32[1,1,128], index: 6, kind: input, shape index: {}]
  %s7 = inlined_call_operand.hbm [shape: f32[2,16,16,128], index: 7, kind: output, shape index: {0}]
  %s8 = inlined_call_operand.hbm [shape: f32[2,16,16,128], index: 8, kind: output, shape index: {1}]
  %s9 = inlined_call_operand.hbm [shape: f32[2,8,128], index: 9, kind: output, shape index: {2}]
  %10 = xla_tuple %s7, %s8, %s9
  %s11 = sld [smem:[#allocation0]]
  $region101: #{tpu_custom_call.1} parent=0
    _
  %s13 = ssub.s32 1, %s11
  %s14 = scalar_select 0, %s13, %s11
  $region1: #{tpu_custom_call.1} parent=0
    #allocation2 [shape = 'u8[262144]{0}', space=vmem, size = 0x40000, scoped, tag = 'input window, operand 0']
    #allocation3 [shape = 's32[2]{0}', space=sflag, size = 0x8, scoped, tag = 'scoped memory for tpu_custom_call.1']
    #allocation4 [shape = 's32[2]{0}', space=sflag, size = 0x8, scoped, tag = 'scoped memory for tpu_custom_call.1']
    #allocation5 [shape = 'u8[16384]{0}', space=vmem, size = 0x4000, scoped, tag = 'input window, operand 1']
    #allocation6 [shape = 's32[2]{0}', space=sflag, size = 0x8, scoped, tag = 'scoped memory for tpu_custom_call.1']
    #allocation7 [shape = 'u8[16384]{0}', space=vmem, size = 0x4000, scoped, tag = 'input window, operand 2']
    #allocation8 [shape = 'u8[65536]{0}', space=vmem, size = 0x10000, scoped, tag = 'input window, operand 3, single buffered']
    #allocation9 [shape = 's32[1]{0}', space=sflag, size = 0x4, scoped, tag = 'scoped memory for tpu_custom_call.1']
    #allocation10 [shape = 'u8[589824]{0}', space=vmem, size = 0x90000, scoped, tag = 'input window, operand 4, single buffered']
    #allocation11 [shape = 'u8[262144]{0}', space=vmem, size = 0x40000, scoped, tag = 'output window, operand 0']
    #allocation12 [shape = 'u8[262144]{0}', space=vmem, size = 0x40000, scoped, tag = 'output window, operand 1']
    #allocation13 [shape = 's32[2]{0}', space=sflag, size = 0x8, scoped, tag = 'scoped memory for tpu_custom_call.1']
    #allocation14 [shape = 'u8[8192]{0}', space=vmem, size = 0x2000, scoped, tag = 'output window, operand 2']
    %15 = vsyncpa [#allocation3], 0
    %s16 = scalar_lea.sflag [#allocation3], 1
    %17 = vsyncpa %s16, 0
    %18 = vsyncpa [#allocation6], 0
    %s19 = scalar_lea.sflag [#allocation6], 1
    %20 = vsyncpa %s19, 0
    %21 = vsyncpa [#allocation9], 0
    %22 = vsyncpa [#allocation4], 0
    %s23 = scalar_lea.sflag [#allocation4], 1
    %24 = vsyncpa %s23, 0
    %25 = vsyncpa [#allocation13], 0
    %s26 = scalar_lea.sflag [#allocation13], 1
    %27 = vsyncpa %s26, 0
    loop: start=0, step=1, limit=4
    $region2: #{tpu_custom_call.1} parent=1 // loop_pre_header
      _
    $region3: #{tpu_custom_call.1} parent=1 // loop_header
      %s29 = sphi 0, %s33
      %p30 = scmp.ge.s32.totalorder %s29, 4
      %s36 = sphi 0, %s48
      %s37 = sphi 0, %s44
      %s38 = sphi 0, %s36
      %s39 = sphi 0, %s37
      %s40 = sphi 0, %s38
      %s41 = sphi 0, %s39
      %s53 = sphi 0, %s55
      %s56 = sphi 0, %s53
      %s57 = sphi 0, %s56
      %s73 = sphi 0, %s57
      %s89 = sphi 0, %s91
      %s92 = sphi 0, %s89
      %s93 = sphi 0, %s92
      %s109 = sphi 0, %s93
      %s125 = sphi 0, %s127
      %s128 = sphi 0, %s125
      %s129 = sphi 0, %s128
      %s145 = sphi 0, %s129
      %s149 = sphi 0, %s149
      %s151 = sphi 0, %s149
      %s152 = sphi 0, %s151
      %s166 = sphi 0, %s152
      %s170 = sphi 0, %s170
      %s172 = sphi 0, %s170
      %s173 = sphi 0, %s172
      %s187 = sphi 0, %s173
      %s191 = sphi 0, %s191
      %s193 = sphi 0, %s191
      %s194 = sphi 0, %s193
      %s208 = sphi 0, %s194
      %s212 = sphi 0, %s212
      %s214 = sphi 0, %s212
      %s215 = sphi 0, %s214
      %s229 = sphi 0, %s215
      %s237 = sphi 0, %s239
      %s240 = sphi 0, %s237
      %s241 = sphi 0, %s240
      %s257 = sphi 0, %s241
      %s265 = sphi 0, %s267
      %s268 = sphi 0, %s265
      %s269 = sphi 0, %s268
      %s285 = sphi 0, %s269
      %s291 = sphi 0, %s293
      %s294 = sphi 0, %s291
      %s295 = sphi 0, %s294
      %s311 = sphi 0, %s295
    $region4: #{tpu_custom_call.1} parent=1 // loop_header_branch
      %32 = sbr.rel (%p30) target = $region8
    $region5: #{tpu_custom_call.1} parent=1 // loop_body
      %s34 = ssub.s32 %s29, 1
      %s35 = ssub.s32 %s29, 2
      %s42 = sadd.s32 1, %s37
      %p43 = scmp.ge.s32.totalorder %s42, 1
      %s44 = scalar_select %p43, 0, %s42
      %s45 = sadd.s32 1, %s36
      %s46 = scalar_select %p43, %s45, %s36
      %p47 = scmp.ge.s32.totalorder %s46, 2
      %s48 = scalar_select %p47, 0, %s46
      %s49 = ssub.s32 %s36, %s48
      %s50 = ssub.s32 %s37, %s44
      %s51 = sor.u32 %s49, %s50
      %p52 = scmp.eq.s32.totalorder %s51, 0
      %s54 = sadd.s32 %s53, 1
      %s55 = scalar_select %p52, %s53, %s54
      %p58 = pneg %p52
      %p59 = scmp.eq.s32.totalorder %s29, 1
      %p60 = por %p58, %p59
      %p61 = scmp.ne.s32.totalorder %s53, %s56
      %p62 = scmp.eq.s32.totalorder %s29, 0
      %p63 = por %p61, %p62
      %p64 = scmp.ne.s32.totalorder %s53, %s56
      %p65 = scmp.eq.s32.totalorder %s34, 1
      %p66 = por %p64, %p65
      %p67 = scmp.ne.s32.totalorder %s56, %s57
      %p68 = scmp.eq.s32.totalorder %s34, 0
      %p69 = por %p67, %p68
      %p70 = scmp.ne.s32.totalorder %s56, %s57
      %p71 = scmp.eq.s32.totalorder %s35, 1
      %p72 = por %p70, %p71
      %p74 = scmp.ne.s32.totalorder %s57, %s73
      %p75 = scmp.eq.s32.totalorder %s35, 0
      %p76 = por %p74, %p75
      %s77 = smul.u32 %s37, 16
      %s78 = ssub.s32 %s77, 1
      %p79 = scmp.gt.s32.totalorder %s78, 0
      %s80 = scalar_select %p79, %s78, 0
      %s81 = smul.u32 %s44, 16
      %s82 = ssub.s32 %s81, 1
      %p83 = scmp.gt.s32.totalorder %s82, 0
      %s84 = scalar_select %p83, %s82, 0
      %s85 = ssub.s32 %s36, %s48
      %s86 = ssub.s32 %s80, %s84
      %s87 = sor.u32 %s85, %s86
      %p88 = scmp.eq.s32.totalorder %s87, 0
      %s90 = sadd.s32 %s89, 1
      %s91 = scalar_select %p88, %s89, %s90
      %p94 = pneg %p88
      %p95 = scmp.eq.s32.totalorder %s29, 1
      %p96 = por %p94, %p95
      %p97 = scmp.ne.s32.totalorder %s89, %s92
      %p98 = scmp.eq.s32.totalorder %s29, 0
      %p99 = por %p97, %p98
      %p100 = scmp.ne.s32.totalorder %s89, %s92
      %p101 = scmp.eq.s32.totalorder %s34, 1
      %p102 = por %p100, %p101
      %p103 = scmp.ne.s32.totalorder %s92, %s93
      %p104 = scmp.eq.s32.totalorder %s34, 0
      %p105 = por %p103, %p104
      %p106 = scmp.ne.s32.totalorder %s92, %s93
      %p107 = scmp.eq.s32.totalorder %s35, 1
      %p108 = por %p106, %p107
      %p110 = scmp.ne.s32.totalorder %s93, %s109
      %p111 = scmp.eq.s32.totalorder %s35, 0
      %p112 = por %p110, %p111
      %s113 = sadd.s32 %s37, 1
      %s114 = smul.u32 %s113, 16
      %p115 = scmp.lt.s32.totalorder %s114, 15
      %s116 = scalar_select %p115, %s114, 15
      %s117 = sadd.s32 %s44, 1
      %s118 = smul.u32 %s117, 16
      %p119 = scmp.lt.s32.totalorder %s118, 15
      %s120 = scalar_select %p119, %s118, 15
      %s121 = ssub.s32 %s36, %s48
      %s122 = ssub.s32 %s116, %s120
      %s123 = sor.u32 %s121, %s122
      %p124 = scmp.eq.s32.totalorder %s123, 0
      %s126 = sadd.s32 %s125, 1
      %s127 = scalar_select %p124, %s125, %s126
      %p130 = pneg %p124
      %p131 = scmp.eq.s32.totalorder %s29, 1
      %p132 = por %p130, %p131
      %p133 = scmp.ne.s32.totalorder %s125, %s128
      %p134 = scmp.eq.s32.totalorder %s29, 0
      %p135 = por %p133, %p134
      %p136 = scmp.ne.s32.totalorder %s125, %s128
      %p137 = scmp.eq.s32.totalorder %s34, 1
      %p138 = por %p136, %p137
      %p139 = scmp.ne.s32.totalorder %s128, %s129
      %p140 = scmp.eq.s32.totalorder %s34, 0
      %p141 = por %p139, %p140
      %p142 = scmp.ne.s32.totalorder %s128, %s129
      %p143 = scmp.eq.s32.totalorder %s35, 1
      %p144 = por %p142, %p143
      %p146 = scmp.ne.s32.totalorder %s129, %s145
      %p147 = scmp.eq.s32.totalorder %s35, 0
      %p148 = por %p146, %p147
      %s150 = sadd.s32 %s149, 1
      %p153 = scmp.eq.s32.totalorder %s29, 1
      %p154 = scmp.ne.s32.totalorder %s149, %s151
      %p155 = scmp.eq.s32.totalorder %s29, 0
      %p156 = por %p154, %p155
      %p157 = scmp.ne.s32.totalorder %s149, %s151
      %p158 = scmp.eq.s32.totalorder %s34, 1
      %p159 = por %p157, %p158
      %p160 = scmp.ne.s32.totalorder %s151, %s152
      %p161 = scmp.eq.s32.totalorder %s34, 0
      %p162 = por %p160, %p161
      %p163 = scmp.ne.s32.totalorder %s151, %s152
      %p164 = scmp.eq.s32.totalorder %s35, 1
      %p165 = por %p163, %p164
      %p167 = scmp.ne.s32.totalorder %s152, %s166
      %p168 = scmp.eq.s32.totalorder %s35, 0
      %p169 = por %p167, %p168
      %s171 = sadd.s32 %s170, 1
      %p174 = scmp.eq.s32.totalorder %s29, 1
      %p175 = scmp.ne.s32.totalorder %s170, %s172
      %p176 = scmp.eq.s32.totalorder %s29, 0
      %p177 = por %p175, %p176
      %p178 = scmp.ne.s32.totalorder %s170, %s172
      %p179 = scmp.eq.s32.totalorder %s34, 1
      %p180 = por %p178, %p179
      %p181 = scmp.ne.s32.totalorder %s172, %s173
      %p182 = scmp.eq.s32.totalorder %s34, 0
      %p183 = por %p181, %p182
      %p184 = scmp.ne.s32.totalorder %s172, %s173
      %p185 = scmp.eq.s32.totalorder %s35, 1
      %p186 = por %p184, %p185
      %p188 = scmp.ne.s32.totalorder %s173, %s187
      %p189 = scmp.eq.s32.totalorder %s35, 0
      %p190 = por %p188, %p189
      %s192 = sadd.s32 %s191, 1
      %p195 = scmp.eq.s32.totalorder %s29, 1
      %p196 = scmp.ne.s32.totalorder %s191, %s193
      %p197 = scmp.eq.s32.totalorder %s29, 0
      %p198 = por %p196, %p197
      %p199 = scmp.ne.s32.totalorder %s191, %s193
      %p200 = scmp.eq.s32.totalorder %s34, 1
      %p201 = por %p199, %p200
      %p202 = scmp.ne.s32.totalorder %s193, %s194
      %p203 = scmp.eq.s32.totalorder %s34, 0
      %p204 = por %p202, %p203
      %p205 = scmp.ne.s32.totalorder %s193, %s194
      %p206 = scmp.eq.s32.totalorder %s35, 1
      %p207 = por %p205, %p206
      %p209 = scmp.ne.s32.totalorder %s194, %s208
      %p210 = scmp.eq.s32.totalorder %s35, 0
      %p211 = por %p209, %p210
      %s213 = sadd.s32 %s212, 1
      %p216 = scmp.eq.s32.totalorder %s29, 1
      %p217 = scmp.ne.s32.totalorder %s212, %s214
      %p218 = scmp.eq.s32.totalorder %s29, 0
      %p219 = por %p217, %p218
      %p220 = scmp.ne.s32.totalorder %s212, %s214
      %p221 = scmp.eq.s32.totalorder %s34, 1
      %p222 = por %p220, %p221
      %p223 = scmp.ne.s32.totalorder %s214, %s215
      %p224 = scmp.eq.s32.totalorder %s34, 0
      %p225 = por %p223, %p224
      %p226 = scmp.ne.s32.totalorder %s214, %s215
      %p227 = scmp.eq.s32.totalorder %s35, 1
      %p228 = por %p226, %p227
      %p230 = scmp.ne.s32.totalorder %s215, %s229
      %p231 = scmp.eq.s32.totalorder %s35, 0
      %p232 = por %p230, %p231
      %s233 = ssub.s32 %s36, %s48
      %s234 = ssub.s32 %s37, %s44
      %s235 = sor.u32 %s233, %s234
      %p236 = scmp.eq.s32.totalorder %s235, 0
      %s238 = sadd.s32 %s237, 1
      %s239 = scalar_select %p236, %s237, %s238
      %p242 = pneg %p236
      %p243 = scmp.eq.s32.totalorder %s29, 1
      %p244 = por %p242, %p243
      %p245 = scmp.ne.s32.totalorder %s237, %s240
      %p246 = scmp.eq.s32.totalorder %s29, 0
      %p247 = por %p245, %p246
      %p248 = scmp.ne.s32.totalorder %s237, %s240
      %p249 = scmp.eq.s32.totalorder %s34, 1
      %p250 = por %p248, %p249
      %p251 = scmp.ne.s32.totalorder %s240, %s241
      %p252 = scmp.eq.s32.totalorder %s34, 0
      %p253 = por %p251, %p252
      %p254 = scmp.ne.s32.totalorder %s240, %s241
      %p255 = scmp.eq.s32.totalorder %s35, 1
      %p256 = por %p254, %p255
      %p258 = scmp.ne.s32.totalorder %s241, %s257
      %p259 = scmp.eq.s32.totalorder %s35, 0
      %p260 = por %p258, %p259
      %s261 = ssub.s32 %s36, %s48
      %s262 = ssub.s32 %s37, %s44
      %s263 = sor.u32 %s261, %s262
      %p264 = scmp.eq.s32.totalorder %s263, 0
      %s266 = sadd.s32 %s265, 1
      %s267 = scalar_select %p264, %s265, %s266
      %p270 = pneg %p264
      %p271 = scmp.eq.s32.totalorder %s29, 1
      %p272 = por %p270, %p271
      %p273 = scmp.ne.s32.totalorder %s265, %s268
      %p274 = scmp.eq.s32.totalorder %s29, 0
      %p275 = por %p273, %p274
      %p276 = scmp.ne.s32.totalorder %s265, %s268
      %p277 = scmp.eq.s32.totalorder %s34, 1
      %p278 = por %p276, %p277
      %p279 = scmp.ne.s32.totalorder %s268, %s269
      %p280 = scmp.eq.s32.totalorder %s34, 0
      %p281 = por %p279, %p280
      %p282 = scmp.ne.s32.totalorder %s268, %s269
      %p283 = scmp.eq.s32.totalorder %s35, 1
      %p284 = por %p282, %p283
      %p286 = scmp.ne.s32.totalorder %s269, %s285
      %p287 = scmp.eq.s32.totalorder %s35, 0
      %p288 = por %p286, %p287
      %s289 = ssub.s32 %s36, %s48
      %p290 = scmp.eq.s32.totalorder %s289, 0
      %s292 = sadd.s32 %s291, 1
      %s293 = scalar_select %p290, %s291, %s292
      %p296 = pneg %p290
      %p297 = scmp.eq.s32.totalorder %s29, 1
      %p298 = por %p296, %p297
      %p299 = scmp.ne.s32.totalorder %s291, %s294
      %p300 = scmp.eq.s32.totalorder %s29, 0
      %p301 = por %p299, %p300
      %p302 = scmp.ne.s32.totalorder %s291, %s294
      %p303 = scmp.eq.s32.totalorder %s34, 1
      %p304 = por %p302, %p303
      %p305 = scmp.ne.s32.totalorder %s294, %s295
      %p306 = scmp.eq.s32.totalorder %s34, 0
      %p307 = por %p305, %p306
      %p308 = scmp.ne.s32.totalorder %s294, %s295
      %p309 = scmp.eq.s32.totalorder %s35, 1
      %p310 = por %p308, %p309
      %p312 = scmp.ne.s32.totalorder %s295, %s311
      %p313 = scmp.eq.s32.totalorder %s35, 0
      %p314 = por %p312, %p313
      %p315 = scmp.le.s32.totalorder 1, %s29
      %p316 = scmp.lt.s32.totalorder %s29, 3
      %p317 = pnand %p315, %p316
      %p318 = pneg %p317
      // Predicated region
      $region9: #{tpu_custom_call.1} parent=5 // pred_check
        _
      $region10: #{tpu_custom_call.1} parent=5 // pred_check_branch
        %320 = sbr.rel (%p317) target = $region12
      $region11: #{tpu_custom_call.1} parent=5 // pred_region
        %s321 = ssub.s32 %s29, 1
        // Predicated region
        $region13: #{tpu_custom_call.1} parent=11 // pred_check
          %p322 = pneg %p162
        $region14: #{tpu_custom_call.1} parent=11 // pred_check_branch
          %324 = sbr.rel (%p322) target = $region16
        $region15: #{tpu_custom_call.1} parent=11 // pred_region
          %s326 = ssub.s32 2048, 2048
          %327 = vsyncadd [#allocation9], %s326
          %s328 = sshll.u32 [#allocation8], 4
          %s329 = int_to_ptr.vmem [resolvable:$true] %s328
          %334 = dma.hbm_to_vmem [thread:$0]  %s3, 2048, %s329, [#allocation9], 128, 128, 8
        $region16: #{tpu_custom_call.1} parent=11 // pred_fallthru
          _
        // Predicated region
        $region17: #{tpu_custom_call.1} parent=11 // pred_check
          %p335 = pneg %p183
        $region18: #{tpu_custom_call.1} parent=11 // pred_check_branch
          %337 = sbr.rel (%p335) target = $region20
        $region19: #{tpu_custom_call.1} parent=11 // pred_region
          %s339 = ssub.s32 18432, 18432
          %340 = vsyncadd [#allocation9], %s339
          %s341 = sshll.u32 [#allocation10], 4
          %s342 = int_to_ptr.vmem [resolvable:$true] %s341
          %347 = dma.hbm_to_vmem [thread:$0]  %s4, 18432, %s342, [#allocation9], 128, 128, 8
        $region20: #{tpu_custom_call.1} parent=11 // pred_fallthru
          _
        // Predicated region
        $region21: #{tpu_custom_call.1} parent=11 // pred_check
          %p348 = pneg %p204
        $region22: #{tpu_custom_call.1} parent=11 // pred_check_branch
          %350 = sbr.rel (%p348) target = $region24
        $region23: #{tpu_custom_call.1} parent=11 // pred_region
          _
        $region24: #{tpu_custom_call.1} parent=11 // pred_fallthru
          _
        // Predicated region
        $region25: #{tpu_custom_call.1} parent=11 // pred_check
          %p351 = pneg %p225
        $region26: #{tpu_custom_call.1} parent=11 // pred_check_branch
          %353 = sbr.rel (%p351) target = $region28
        $region27: #{tpu_custom_call.1} parent=11 // pred_region
          _
        $region28: #{tpu_custom_call.1} parent=11 // pred_fallthru
          _
      $region12: #{tpu_custom_call.1} parent=5 // pred_fallthru
        _
      %p354 = scmp.lt.s32.totalorder %s29, 2
      // Predicated region
      $region29: #{tpu_custom_call.1} parent=5 // pred_check
        %p355 = pneg %p354
      $region30: #{tpu_custom_call.1} parent=5 // pred_check_branch
        %357 = sbr.rel (%p355) target = $region32
      $region31: #{tpu_custom_call.1} parent=5 // pred_region
        // Predicated region
        $region33: #{tpu_custom_call.1} parent=31 // pred_check
          %p358 = pneg %p63
        $region34: #{tpu_custom_call.1} parent=31 // pred_check_branch
          %360 = sbr.rel (%p358) target = $region36
        $region35: #{tpu_custom_call.1} parent=31 // pred_region
          %s361 = sand.u32 %s53, 1
          %s362 = scalar_lea.sflag [#allocation3], %s361
          %s363 = sand.u32 %s53, 1
          %s364 = smul.addr %s363, 256
          %s365 = scalar_lea.vmem [#allocation2], %s364
          %s366 = smul.u32 16, %s37
          %s368 = ssub.s32 4096, 4096
          %369 = vsyncadd %s362, %s368
          %s370 = smul.addr %s366, 2
          %s371 = smul.addr %s36, 32
          %s372 = sadd.s32 %s370, %s371
          %s373 = smul.addr %s372, 128
          %s374 = scalar_lea.hbm %s0, %s373
          %s375 = sshll.u32 %s365, 4
          %s376 = int_to_ptr.vmem [resolvable:$true] %s375
          %381 = dma.hbm_to_vmem [thread:$0]  %s374, 4096, %s376, %s362, 128, 128, 8
        $region36: #{tpu_custom_call.1} parent=31 // pred_fallthru
          _
        // Predicated region
        $region37: #{tpu_custom_call.1} parent=31 // pred_check
          %p382 = pneg %p99
        $region38: #{tpu_custom_call.1} parent=31 // pred_check_branch
          %384 = sbr.rel (%p382) target = $region40
        $region39: #{tpu_custom_call.1} parent=31 // pred_region
          %s385 = sand.u32 %s29, 1
          %s386 = scalar_lea.sflag [#allocation6], %s385
          %s387 = sand.u32 %s89, 1
          %s388 = smul.addr %s387, 16
          %s389 = scalar_lea.vmem [#allocation5], %s388
          %s390 = smul.u32 %s37, 16
          %s391 = ssub.s32 %s390, 1
          %p392 = scmp.gt.s32.totalorder %s391, 0
          %s393 = scalar_select %p392, %s391, 0
          %s395 = ssub.s32 256, 256
          %396 = vsyncadd %s386, %s395
          %s397 = smul.addr %s393, 2
          %s398 = smul.addr %s36, 32
          %s399 = sadd.s32 %s397, %s398
          %s400 = smul.addr %s399, 128
          %s401 = scalar_lea.hbm %s1, %s400
          %s402 = sshll.u32 %s389, 4
          %s403 = int_to_ptr.vmem [resolvable:$true] %s402
          %408 = dma.hbm_to_vmem [thread:$0]  %s401, 256, %s403, %s386, 128, 128, 8
        $region40: #{tpu_custom_call.1} parent=31 // pred_fallthru
          _
        // Predicated region
        $region41: #{tpu_custom_call.1} parent=31 // pred_check
          %p409 = pneg %p135
        $region42: #{tpu_custom_call.1} parent=31 // pred_check_branch
          %411 = sbr.rel (%p409) target = $region44
        $region43: #{tpu_custom_call.1} parent=31 // pred_region
          %s412 = sand.u32 %s29, 1
          %s413 = scalar_lea.sflag [#allocation6], %s412
          %s414 = sand.u32 %s125, 1
          %s415 = smul.addr %s414, 16
          %s416 = scalar_lea.vmem [#allocation7], %s415
          %s417 = sadd.s32 %s37, 1
          %s418 = smul.u32 %s417, 16
          %p419 = scmp.lt.s32.totalorder %s418, 15
          %s420 = scalar_select %p419, %s418, 15
          %s422 = ssub.s32 256, 256
          %423 = vsyncadd %s413, %s422
          %s424 = smul.addr %s420, 2
          %s425 = smul.addr %s36, 32
          %s426 = sadd.s32 %s424, %s425
          %s427 = smul.addr %s426, 128
          %s428 = scalar_lea.hbm %s2, %s427
          %s429 = sshll.u32 %s416, 4
          %s430 = int_to_ptr.vmem [resolvable:$true] %s429
          %435 = dma.hbm_to_vmem [thread:$0]  %s428, 256, %s430, %s413, 128, 128, 8
        $region44: #{tpu_custom_call.1} parent=31 // pred_fallthru
          _
      $region32: #{tpu_custom_call.1} parent=5 // pred_fallthru
        _
      %p436 = scmp.le.s32.totalorder 1, %s29
      %p437 = scmp.lt.s32.totalorder %s29, 3
      %p438 = pnand %p436, %p437
      %p439 = pneg %p438
      // Predicated region
      $region45: #{tpu_custom_call.1} parent=5 // pred_check
        _
      $region46: #{tpu_custom_call.1} parent=5 // pred_check_branch
        %441 = sbr.rel (%p438) target = $region48
      $region47: #{tpu_custom_call.1} parent=5 // pred_region
        %s442 = ssub.s32 %s29, 1
        %s443 = sand.u32 %s56, 1
        %s444 = scalar_lea.sflag [#allocation3], %s443
        %s445 = sand.u32 %s56, 1
        %s446 = smul.addr %s445, 256
        %s447 = scalar_lea.vmem [#allocation2], %s446
        // Predicated region
        $region49: #{tpu_custom_call.1} parent=47 // pred_check
          %p448 = pneg %p69
        $region50: #{tpu_custom_call.1} parent=47 // pred_check_branch
          %450 = sbr.rel (%p448) target = $region52
        $region51: #{tpu_custom_call.1} parent=47 // pred_region
          %451 = dma.done %s444, 4096
        $region52: #{tpu_custom_call.1} parent=47 // pred_fallthru
          _
        %s452 = sand.u32 %s34, 1
        %s453 = scalar_lea.sflag [#allocation6], %s452
        %s454 = sand.u32 %s92, 1
        %s455 = smul.addr %s454, 16
        %s456 = scalar_lea.vmem [#allocation5], %s455
        // Predicated region
        $region53: #{tpu_custom_call.1} parent=47 // pred_check
          %p457 = pneg %p105
        $region54: #{tpu_custom_call.1} parent=47 // pred_check_branch
          %459 = sbr.rel (%p457) target = $region56
        $region55: #{tpu_custom_call.1} parent=47 // pred_region
          %460 = dma.done %s453, 256
        $region56: #{tpu_custom_call.1} parent=47 // pred_fallthru
          _
        %s461 = sand.u32 %s34, 1
        %s462 = scalar_lea.sflag [#allocation6], %s461
        %s463 = sand.u32 %s128, 1
        %s464 = smul.addr %s463, 16
        %s465 = scalar_lea.vmem [#allocation7], %s464
        // Predicated region
        $region57: #{tpu_custom_call.1} parent=47 // pred_check
          %p466 = pneg %p141
        $region58: #{tpu_custom_call.1} parent=47 // pred_check_branch
          %468 = sbr.rel (%p466) target = $region60
        $region59: #{tpu_custom_call.1} parent=47 // pred_region
          %469 = dma.done %s462, 256
        $region60: #{tpu_custom_call.1} parent=47 // pred_fallthru
          _
        // Predicated region
        $region61: #{tpu_custom_call.1} parent=47 // pred_check
          %p470 = pneg %p162
        $region62: #{tpu_custom_call.1} parent=47 // pred_check_branch
          %472 = sbr.rel (%p470) target = $region64
        $region63: #{tpu_custom_call.1} parent=47 // pred_region
          %473 = dma.done [#allocation9], 2048
        $region64: #{tpu_custom_call.1} parent=47 // pred_fallthru
          _
        // Predicated region
        $region65: #{tpu_custom_call.1} parent=47 // pred_check
          %p474 = pneg %p183
        $region66: #{tpu_custom_call.1} parent=47 // pred_check_branch
          %476 = sbr.rel (%p474) target = $region68
        $region67: #{tpu_custom_call.1} parent=47 // pred_region
          %477 = dma.done [#allocation9], 18432
        $region68: #{tpu_custom_call.1} parent=47 // pred_fallthru
          _
        %s478 = sand.u32 %s56, 1
        %s479 = scalar_lea.sflag [#allocation3], %s478
        %s480 = sand.u32 %s56, 1
        %s481 = smul.addr %s480, 256
        %s482 = scalar_lea.vmem [#allocation2], %s481
        %p483 = pneg %p69
        %p484 = pneg %p66
        %s485 = sand.u32 %s34, 1
        %s486 = scalar_lea.sflag [#allocation6], %s485
        %s487 = sand.u32 %s92, 1
        %s488 = smul.addr %s487, 16
        %s489 = scalar_lea.vmem [#allocation5], %s488
        %p490 = pneg %p105
        %p491 = pneg %p102
        %s492 = sand.u32 %s34, 1
        %s493 = scalar_lea.sflag [#allocation6], %s492
        %s494 = sand.u32 %s128, 1
        %s495 = smul.addr %s494, 16
        %s496 = scalar_lea.vmem [#allocation7], %s495
        %p497 = pneg %p141
        %p498 = pneg %p138
        %p499 = pneg %p162
        %p500 = pneg %p159
        %p501 = pneg %p183
        %p502 = pneg %p180
        %p503 = pneg %p204
        %p504 = pneg %p201
        %p505 = pneg %p225
        %p506 = pneg %p222
        %p507 = pneg %p253
        %p508 = pneg %p250
        %s509 = sand.u32 %s240, 1
        %s510 = scalar_lea.sflag [#allocation4], %s509
        %s511 = sand.u32 %s240, 1
        %s512 = smul.addr %s511, 256
        %s513 = scalar_lea.vmem [#allocation11], %s512
        %p514 = pneg %p281
        %p515 = pneg %p278
        %s516 = sand.u32 %s34, 1
        %s517 = scalar_lea.sflag [#allocation13], %s516
        %s518 = sand.u32 %s268, 1
        %s519 = smul.addr %s518, 256
        %s520 = scalar_lea.vmem [#allocation12], %s519
        %p521 = pneg %p307
        %p522 = pneg %p304
        %s523 = sand.u32 %s34, 1
        %s524 = scalar_lea.sflag [#allocation13], %s523
        %s525 = sand.u32 %s294, 1
        %s526 = smul.addr %s525, 8
        %s527 = scalar_lea.vmem [#allocation14], %s526
        %s528 = smul.u32 16, %s39
        %s529 = smul.u32 %s39, 16
        %s530 = ssub.s32 %s529, 1
        %p531 = scmp.gt.s32.totalorder %s530, 0
        %s532 = scalar_select %p531, %s530, 0
        %s533 = sadd.s32 %s39, 1
        %s534 = smul.u32 %s533, 16
        %p535 = scmp.lt.s32.totalorder %s534, 15
        %s536 = scalar_select %p535, %s534, 15
        %s537 = smul.u32 16, %s39
        %s538 = smul.u32 16, %s39
        %v539 = vld [vmem:[%s5] sm:$0x1]
        %v540 = vld [vmem:[%s6] sm:$0x1]
        %p541 = scmp.gt.s32.totalorder %s39, 0
        %s542 = scalar_select %p541, 1.0, 0.0
        %p543 = scmp.lt.s32.totalorder %s39, 0
        %s544 = scalar_select %p543, 1.0, 0.0
        %v545 = vld [vmem:[%s456] sm:$0xff]
        %v546 = vld [vmem:[%s456 + $0x8] sm:$0xff]
        %v548 = vlaneseq
        %v549 = vshrl.u32 %v548, 7
        %v550 = vsub.s32 0, %v549
        %v551 = vrot.slane %v539, %v550
        %v553 = vmul.f32 %v545, %v551
        %v554 = vmul.f32 %v546, %v551
        %v556 = vlaneseq
        %v557 = vshrl.u32 %v556, 7
        %v558 = vsub.s32 0, %v557
        %v559 = vrot.slane %v540, %v558
        %v561 = vadd.f32 %v553, %v559
        %v562 = vadd.f32 %v554, %v559
        %v563 = vmax.f32 %v561, 0.0
        %v564 = vmax.f32 %v562, 0.0
        %v565 = vstv %s542
        %v566 = vmul.f32 %v563, %v565
        %v567 = vmul.f32 %v564, %v565
        %v568 = vld [vmem:[%s447] sm:$0xff]
        %v569 = vld [vmem:[%s447 + $0x8] sm:$0xff]
        %v570 = vld [vmem:[%s447 + $0x10] sm:$0xff]
        %v571 = vld [vmem:[%s447 + $0x18] sm:$0xff]
        %v572 = vld [vmem:[%s447 + $0x20] sm:$0xff]
        %v573 = vld [vmem:[%s447 + $0x28] sm:$0xff]
        %v574 = vld [vmem:[%s447 + $0x30] sm:$0xff]
        %v575 = vld [vmem:[%s447 + $0x38] sm:$0xff]
        %v576 = vld [vmem:[%s447 + $0x40] sm:$0xff]
        %v577 = vld [vmem:[%s447 + $0x48] sm:$0xff]
        %v578 = vld [vmem:[%s447 + $0x50] sm:$0xff]
        %v579 = vld [vmem:[%s447 + $0x58] sm:$0xff]
        %v580 = vld [vmem:[%s447 + $0x60] sm:$0xff]
        %v581 = vld [vmem:[%s447 + $0x68] sm:$0xff]
        %v582 = vld [vmem:[%s447 + $0x70] sm:$0xff]
        %v583 = vld [vmem:[%s447 + $0x78] sm:$0xff]
        %v584 = vld [vmem:[%s447 + $0x80] sm:$0xff]
        %v585 = vld [vmem:[%s447 + $0x88] sm:$0xff]
        %v586 = vld [vmem:[%s447 + $0x90] sm:$0xff]
        %v587 = vld [vmem:[%s447 + $0x98] sm:$0xff]
        %v588 = vld [vmem:[%s447 + $0xa0] sm:$0xff]
        %v589 = vld [vmem:[%s447 + $0xa8] sm:$0xff]
        %v590 = vld [vmem:[%s447 + $0xb0] sm:$0xff]
        %v591 = vld [vmem:[%s447 + $0xb8] sm:$0xff]
        %v592 = vld [vmem:[%s447 + $0xc0] sm:$0xff]
        %v593 = vld [vmem:[%s447 + $0xc8] sm:$0xff]
        %v594 = vld [vmem:[%s447 + $0xd0] sm:$0xff]
        %v595 = vld [vmem:[%s447 + $0xd8] sm:$0xff]
        %v596 = vld [vmem:[%s447 + $0xe0] sm:$0xff]
        %v597 = vld [vmem:[%s447 + $0xe8] sm:$0xff]
        %v598 = vld [vmem:[%s447 + $0xf0] sm:$0xff]
        %v599 = vld [vmem:[%s447 + $0xf8] sm:$0xff]
        %v600 = vmul.f32 %v568, %v551
        %v601 = vmul.f32 %v569, %v551
        %v602 = vmul.f32 %v570, %v551
        %v603 = vmul.f32 %v571, %v551
        %v604 = vmul.f32 %v572, %v551
        %v605 = vmul.f32 %v573, %v551
        %v606 = vmul.f32 %v574, %v551
        %v607 = vmul.f32 %v575, %v551
        %v608 = vmul.f32 %v576, %v551
        %v609 = vmul.f32 %v577, %v551
        %v610 = vmul.f32 %v578, %v551
        %v611 = vmul.f32 %v579, %v551
        %v612 = vmul.f32 %v580, %v551
        %v613 = vmul.f32 %v581, %v551
        %v614 = vmul.f32 %v582, %v551
        %v615 = vmul.f32 %v583, %v551
        %v616 = vmul.f32 %v584, %v551
        %v617 = vmul.f32 %v585, %v551
        %v618 = vmul.f32 %v586, %v551
        %v619 = vmul.f32 %v587, %v551
        %v620 = vmul.f32 %v588, %v551
        %v621 = vmul.f32 %v589, %v551
        %v622 = vmul.f32 %v590, %v551
        %v623 = vmul.f32 %v591, %v551
        %v624 = vmul.f32 %v592, %v551
        %v625 = vmul.f32 %v593, %v551
        %v626 = vmul.f32 %v594, %v551
        %v627 = vmul.f32 %v595, %v551
        %v628 = vmul.f32 %v596, %v551
        %v629 = vmul.f32 %v597, %v551
        %v630 = vmul.f32 %v598, %v551
        %v631 = vmul.f32 %v599, %v551
        %v632 = vadd.f32 %v600, %v559
        %v633 = vadd.f32 %v601, %v559
        %v634 = vadd.f32 %v602, %v559
        %v635 = vadd.f32 %v603, %v559
        %v636 = vadd.f32 %v604, %v559
        %v637 = vadd.f32 %v605, %v559
        %v638 = vadd.f32 %v606, %v559
        %v639 = vadd.f32 %v607, %v559
        %v640 = vadd.f32 %v608, %v559
        %v641 = vadd.f32 %v609, %v559
        %v642 = vadd.f32 %v610, %v559
        %v643 = vadd.f32 %v611, %v559
        %v644 = vadd.f32 %v612, %v559
        %v645 = vadd.f32 %v613, %v559
        %v646 = vadd.f32 %v614, %v559
        %v647 = vadd.f32 %v615, %v559
        %v648 = vadd.f32 %v616, %v559
        %v649 = vadd.f32 %v617, %v559
        %v650 = vadd.f32 %v618, %v559
        %v651 = vadd.f32 %v619, %v559
        %v652 = vadd.f32 %v620, %v559
        %v653 = vadd.f32 %v621, %v559
        %v654 = vadd.f32 %v622, %v559
        %v655 = vadd.f32 %v623, %v559
        %v656 = vadd.f32 %v624, %v559
        %v657 = vadd.f32 %v625, %v559
        %v658 = vadd.f32 %v626, %v559
        %v659 = vadd.f32 %v627, %v559
        %v660 = vadd.f32 %v628, %v559
        %v661 = vadd.f32 %v629, %v559
        %v662 = vadd.f32 %v630, %v559
        %v663 = vadd.f32 %v631, %v559
        %v664 = vmax.f32 %v632, 0.0
        %v665 = vmax.f32 %v633, 0.0
        %v666 = vmax.f32 %v634, 0.0
        %v667 = vmax.f32 %v635, 0.0
        %v668 = vmax.f32 %v636, 0.0
        %v669 = vmax.f32 %v637, 0.0
        %v670 = vmax.f32 %v638, 0.0
        %v671 = vmax.f32 %v639, 0.0
        %v672 = vmax.f32 %v640, 0.0
        %v673 = vmax.f32 %v641, 0.0
        %v674 = vmax.f32 %v642, 0.0
        %v675 = vmax.f32 %v643, 0.0
        %v676 = vmax.f32 %v644, 0.0
        %v677 = vmax.f32 %v645, 0.0
        %v678 = vmax.f32 %v646, 0.0
        %v679 = vmax.f32 %v647, 0.0
        %v680 = vmax.f32 %v648, 0.0
        %v681 = vmax.f32 %v649, 0.0
        %v682 = vmax.f32 %v650, 0.0
        %v683 = vmax.f32 %v651, 0.0
        %v684 = vmax.f32 %v652, 0.0
        %v685 = vmax.f32 %v653, 0.0
        %v686 = vmax.f32 %v654, 0.0
        %v687 = vmax.f32 %v655, 0.0
        %v688 = vmax.f32 %v656, 0.0
        %v689 = vmax.f32 %v657, 0.0
        %v690 = vmax.f32 %v658, 0.0
        %v691 = vmax.f32 %v659, 0.0
        %v692 = vmax.f32 %v660, 0.0
        %v693 = vmax.f32 %v661, 0.0
        %v694 = vmax.f32 %v662, 0.0
        %v695 = vmax.f32 %v663, 0.0
        %v696 = vld [vmem:[%s465] sm:$0xff]
        %v697 = vld [vmem:[%s465 + $0x8] sm:$0xff]
        %v698 = vmul.f32 %v696, %v551
        %v699 = vmul.f32 %v697, %v551
        %v700 = vadd.f32 %v698, %v559
        %v701 = vadd.f32 %v699, %v559
        %v702 = vmax.f32 %v700, 0.0
        %v703 = vmax.f32 %v701, 0.0
        %v704 = vstv %s544
        %v705 = vmul.f32 %v702, %v704
        %v706 = vmul.f32 %v703, %v704
        %vm743 = vcmask 1040384
        %v744 = vrot.slane %v566, 7
        %v745 = vrot.slane %v567, 7
        %v746 = vsel %vm743, %v744, %v745
        %v747 = vrot.slane %v664, 7
        %v748 = vrot.slane %v665, 7
        %v749 = vsel %vm743, %v747, %v748
        %v750 = vrot.slane %v666, 7
        %v751 = vrot.slane %v667, 7
        %v752 = vsel %vm743, %v750, %v751
        %v753 = vrot.slane %v668, 7
        %v754 = vrot.slane %v669, 7
        %v755 = vsel %vm743, %v753, %v754
        %v756 = vrot.slane %v670, 7
        %v757 = vrot.slane %v671, 7
        %v758 = vsel %vm743, %v756, %v757
        %v759 = vrot.slane %v672, 7
        %v760 = vrot.slane %v673, 7
        %v761 = vsel %vm743, %v759, %v760
        %v762 = vrot.slane %v674, 7
        %v763 = vrot.slane %v675, 7
        %v764 = vsel %vm743, %v762, %v763
        %v765 = vrot.slane %v676, 7
        %v766 = vrot.slane %v677, 7
        %v767 = vsel %vm743, %v765, %v766
        %v768 = vrot.slane %v678, 7
        %v769 = vrot.slane %v679, 7
        %v770 = vsel %vm743, %v768, %v769
        %v771 = vrot.slane %v680, 7
        %v772 = vrot.slane %v681, 7
        %v773 = vsel %vm743, %v771, %v772
        %v774 = vrot.slane %v682, 7
        %v775 = vrot.slane %v683, 7
        %v776 = vsel %vm743, %v774, %v775
        %v777 = vrot.slane %v684, 7
        %v778 = vrot.slane %v685, 7
        %v779 = vsel %vm743, %v777, %v778
        %v780 = vrot.slane %v686, 7
        %v781 = vrot.slane %v687, 7
        %v782 = vsel %vm743, %v780, %v781
        %v783 = vrot.slane %v688, 7
        %v784 = vrot.slane %v689, 7
        %v785 = vsel %vm743, %v783, %v784
        %v786 = vrot.slane %v690, 7
        %v787 = vrot.slane %v691, 7
        %v788 = vsel %vm743, %v786, %v787
        %v789 = vrot.slane %v692, 7
        %v790 = vrot.slane %v693, 7
        %v791 = vsel %vm743, %v789, %v790
        %v792 = vrot.slane %v694, 7
        %v793 = vrot.slane %v695, 7
        %v794 = vsel %vm743, %v792, %v793
        %v795 = vrot.slane %v705, 7
        %v796 = vrot.slane %v706, 7
        %v797 = vsel %vm743, %v795, %v796
        %v852 = vsel %vm743, 0.0, %v744
        %v853 = vsel %vm743, 0.0, %v747
        %v854 = vsel %vm743, 0.0, %v750
        %v855 = vsel %vm743, 0.0, %v753
        %v856 = vsel %vm743, 0.0, %v756
        %v857 = vsel %vm743, 0.0, %v759
        %v858 = vsel %vm743, 0.0, %v762
        %v859 = vsel %vm743, 0.0, %v765
        %v860 = vsel %vm743, 0.0, %v768
        %v861 = vsel %vm743, 0.0, %v771
        %v862 = vsel %vm743, 0.0, %v774
        %v863 = vsel %vm743, 0.0, %v777
        %v864 = vsel %vm743, 0.0, %v780
        %v865 = vsel %vm743, 0.0, %v783
        %v866 = vsel %vm743, 0.0, %v786
        %v867 = vsel %vm743, 0.0, %v789
        %v868 = vsel %vm743, 0.0, %v792
        %v869 = vsel %vm743, 0.0, %v795
        %v870 = vsel %vm743, %v745, 0.0
        %v871 = vsel %vm743, %v748, 0.0
        %v872 = vsel %vm743, %v751, 0.0
        %v873 = vsel %vm743, %v754, 0.0
        %v874 = vsel %vm743, %v757, 0.0
        %v875 = vsel %vm743, %v760, 0.0
        %v876 = vsel %vm743, %v763, 0.0
        %v877 = vsel %vm743, %v766, 0.0
        %v878 = vsel %vm743, %v769, 0.0
        %v879 = vsel %vm743, %v772, 0.0
        %v880 = vsel %vm743, %v775, 0.0
        %v881 = vsel %vm743, %v778, 0.0
        %v882 = vsel %vm743, %v781, 0.0
        %v883 = vsel %vm743, %v784, 0.0
        %v884 = vsel %vm743, %v787, 0.0
        %v885 = vsel %vm743, %v790, 0.0
        %v886 = vsel %vm743, %v793, 0.0
        %v887 = vsel %vm743, %v796, 0.0
        %vm920 = vcmask 1046528
        %v921 = vrot.slane %v852, 1
        %v922 = vrot.slane %v746, 1
        %v923 = vsel %vm920, %v921, %v922
        %v924 = vrot.slane %v870, 1
        %v925 = vsel %vm920, %v922, %v924
        %v926 = vrot.slane %v853, 1
        %v927 = vrot.slane %v749, 1
        %v928 = vsel %vm920, %v926, %v927
        %v929 = vrot.slane %v871, 1
        %v930 = vsel %vm920, %v927, %v929
        %v931 = vrot.slane %v854, 1
        %v932 = vrot.slane %v752, 1
        %v933 = vsel %vm920, %v931, %v932
        %v934 = vrot.slane %v872, 1
        %v935 = vsel %vm920, %v932, %v934
        %v936 = vrot.slane %v855, 1
        %v937 = vrot.slane %v755, 1
        %v938 = vsel %vm920, %v936, %v937
        %v939 = vrot.slane %v873, 1
        %v940 = vsel %vm920, %v937, %v939
        %v941 = vrot.slane %v856, 1
        %v942 = vrot.slane %v758, 1
        %v943 = vsel %vm920, %v941, %v942
        %v944 = vrot.slane %v874, 1
        %v945 = vsel %vm920, %v942, %v944
        %v946 = vrot.slane %v857, 1
        %v947 = vrot.slane %v761, 1
        %v948 = vsel %vm920, %v946, %v947
        %v949 = vrot.slane %v875, 1
        %v950 = vsel %vm920, %v947, %v949
        %v951 = vrot.slane %v858, 1
        %v952 = vrot.slane %v764, 1
        %v953 = vsel %vm920, %v951, %v952
        %v954 = vrot.slane %v876, 1
        %v955 = vsel %vm920, %v952, %v954
        %v956 = vrot.slane %v859, 1
        %v957 = vrot.slane %v767, 1
        %v958 = vsel %vm920, %v956, %v957
        %v959 = vrot.slane %v877, 1
        %v960 = vsel %vm920, %v957, %v959
        %v961 = vrot.slane %v860, 1
        %v962 = vrot.slane %v770, 1
        %v963 = vsel %vm920, %v961, %v962
        %v964 = vrot.slane %v878, 1
        %v965 = vsel %vm920, %v962, %v964
        %v966 = vrot.slane %v861, 1
        %v967 = vrot.slane %v773, 1
        %v968 = vsel %vm920, %v966, %v967
        %v969 = vrot.slane %v879, 1
        %v970 = vsel %vm920, %v967, %v969
        %v971 = vrot.slane %v862, 1
        %v972 = vrot.slane %v776, 1
        %v973 = vsel %vm920, %v971, %v972
        %v974 = vrot.slane %v880, 1
        %v975 = vsel %vm920, %v972, %v974
        %v976 = vrot.slane %v863, 1
        %v977 = vrot.slane %v779, 1
        %v978 = vsel %vm920, %v976, %v977
        %v979 = vrot.slane %v881, 1
        %v980 = vsel %vm920, %v977, %v979
        %v981 = vrot.slane %v864, 1
        %v982 = vrot.slane %v782, 1
        %v983 = vsel %vm920, %v981, %v982
        %v984 = vrot.slane %v882, 1
        %v985 = vsel %vm920, %v982, %v984
        %v986 = vrot.slane %v865, 1
        %v987 = vrot.slane %v785, 1
        %v988 = vsel %vm920, %v986, %v987
        %v989 = vrot.slane %v883, 1
        %v990 = vsel %vm920, %v987, %v989
        %v991 = vrot.slane %v866, 1
        %v992 = vrot.slane %v788, 1
        %v993 = vsel %vm920, %v991, %v992
        %v994 = vrot.slane %v884, 1
        %v995 = vsel %vm920, %v992, %v994
        %v996 = vrot.slane %v867, 1
        %v997 = vrot.slane %v791, 1
        %v998 = vsel %vm920, %v996, %v997
        %v999 = vrot.slane %v885, 1
        %v1000 = vsel %vm920, %v997, %v999
        %vm1033 = vcmask 1045504
        %v1034 = vrot.slane %v852, 2
        %v1035 = vrot.slane %v746, 2
        %v1036 = vsel %vm1033, %v1034, %v1035
        %v1037 = vrot.slane %v870, 2
        %v1038 = vsel %vm1033, %v1035, %v1037
        %v1039 = vrot.slane %v853, 2
        %v1040 = vrot.slane %v749, 2
        %v1041 = vsel %vm1033, %v1039, %v1040
        %v1042 = vrot.slane %v871, 2
        %v1043 = vsel %vm1033, %v1040, %v1042
        %v1044 = vrot.slane %v854, 2
        %v1045 = vrot.slane %v752, 2
        %v1046 = vsel %vm1033, %v1044, %v1045
        %v1047 = vrot.slane %v872, 2
        %v1048 = vsel %vm1033, %v1045, %v1047
        %v1049 = vrot.slane %v855, 2
        %v1050 = vrot.slane %v755, 2
        %v1051 = vsel %vm1033, %v1049, %v1050
        %v1052 = vrot.slane %v873, 2
        %v1053 = vsel %vm1033, %v1050, %v1052
        %v1054 = vrot.slane %v856, 2
        %v1055 = vrot.slane %v758, 2
        %v1056 = vsel %vm1033, %v1054, %v1055
        %v1057 = vrot.slane %v874, 2
        %v1058 = vsel %vm1033, %v1055, %v1057
        %v1059 = vrot.slane %v857, 2
        %v1060 = vrot.slane %v761, 2
        %v1061 = vsel %vm1033, %v1059, %v1060
        %v1062 = vrot.slane %v875, 2
        %v1063 = vsel %vm1033, %v1060, %v1062
        %v1064 = vrot.slane %v858, 2
        %v1065 = vrot.slane %v764, 2
        %v1066 = vsel %vm1033, %v1064, %v1065
        %v1067 = vrot.slane %v876, 2
        %v1068 = vsel %vm1033, %v1065, %v1067
        %v1069 = vrot.slane %v859, 2
        %v1070 = vrot.slane %v767, 2
        %v1071 = vsel %vm1033, %v1069, %v1070
        %v1072 = vrot.slane %v877, 2
        %v1073 = vsel %vm1033, %v1070, %v1072
        %v1074 = vrot.slane %v860, 2
        %v1075 = vrot.slane %v770, 2
        %v1076 = vsel %vm1033, %v1074, %v1075
        %v1077 = vrot.slane %v878, 2
        %v1078 = vsel %vm1033, %v1075, %v1077
        %v1079 = vrot.slane %v861, 2
        %v1080 = vrot.slane %v773, 2
        %v1081 = vsel %vm1033, %v1079, %v1080
        %v1082 = vrot.slane %v879, 2
        %v1083 = vsel %vm1033, %v1080, %v1082
        %v1084 = vrot.slane %v862, 2
        %v1085 = vrot.slane %v776, 2
        %v1086 = vsel %vm1033, %v1084, %v1085
        %v1087 = vrot.slane %v880, 2
        %v1088 = vsel %vm1033, %v1085, %v1087
        %v1089 = vrot.slane %v863, 2
        %v1090 = vrot.slane %v779, 2
        %v1091 = vsel %vm1033, %v1089, %v1090
        %v1092 = vrot.slane %v881, 2
        %v1093 = vsel %vm1033, %v1090, %v1092
        %v1094 = vrot.slane %v864, 2
        %v1095 = vrot.slane %v782, 2
        %v1096 = vsel %vm1033, %v1094, %v1095
        %v1097 = vrot.slane %v882, 2
        %v1098 = vsel %vm1033, %v1095, %v1097
        %v1099 = vrot.slane %v865, 2
        %v1100 = vrot.slane %v785, 2
        %v1101 = vsel %vm1033, %v1099, %v1100
        %v1102 = vrot.slane %v883, 2
        %v1103 = vsel %vm1033, %v1100, %v1102
        %v1104 = vrot.slane %v866, 2
        %v1105 = vrot.slane %v788, 2
        %v1106 = vsel %vm1033, %v1104, %v1105
        %v1107 = vrot.slane %v884, 2
        %v1108 = vsel %vm1033, %v1105, %v1107
        %v1109 = vrot.slane %v867, 2
        %v1110 = vrot.slane %v791, 2
        %v1111 = vsel %vm1033, %v1109, %v1110
        %v1112 = vrot.slane %v885, 2
        %v1113 = vsel %vm1033, %v1110, %v1112
        %v1146 = vld [vmem:[#allocation10] sm:$0xff]
        %v1147 = vld [vmem:[#allocation10 + $0x8] sm:$0xff]
        %v1148 = vld [vmem:[#allocation10 + $0x10] sm:$0xff]
        %v1149 = vld [vmem:[#allocation10 + $0x18] sm:$0xff]
        %v1150 = vld [vmem:[#allocation10 + $0x20] sm:$0xff]
        %v1151 = vld [vmem:[#allocation10 + $0x28] sm:$0xff]
        %v1152 = vld [vmem:[#allocation10 + $0x30] sm:$0xff]
        %v1153 = vld [vmem:[#allocation10 + $0x38] sm:$0xff]
        %v1154 = vld [vmem:[#allocation10 + $0x40] sm:$0xff]
        %v1155 = vld [vmem:[#allocation10 + $0x48] sm:$0xff]
        %v1156 = vld [vmem:[#allocation10 + $0x50] sm:$0xff]
        %v1157 = vld [vmem:[#allocation10 + $0x58] sm:$0xff]
        %v1158 = vld [vmem:[#allocation10 + $0x60] sm:$0xff]
        %v1159 = vld [vmem:[#allocation10 + $0x68] sm:$0xff]
        %v1160 = vld [vmem:[#allocation10 + $0x70] sm:$0xff]
        %v1161 = vld [vmem:[#allocation10 + $0x78] sm:$0xff]
        %v1162 = vld [vmem:[#allocation10 + $0x80] sm:$0xff]
        %v1163 = vld [vmem:[#allocation10 + $0x88] sm:$0xff]
        %v1164 = vld [vmem:[#allocation10 + $0x90] sm:$0xff]
        %v1165 = vld [vmem:[#allocation10 + $0x98] sm:$0xff]
        %v1166 = vld [vmem:[#allocation10 + $0xa0] sm:$0xff]
        %v1167 = vld [vmem:[#allocation10 + $0xa8] sm:$0xff]
        %v1168 = vld [vmem:[#allocation10 + $0xb0] sm:$0xff]
        %v1169 = vld [vmem:[#allocation10 + $0xb8] sm:$0xff]
        %v1170 = vld [vmem:[#allocation10 + $0xc0] sm:$0xff]
        %v1171 = vld [vmem:[#allocation10 + $0xc8] sm:$0xff]
        %v1172 = vld [vmem:[#allocation10 + $0xd0] sm:$0xff]
        %v1173 = vld [vmem:[#allocation10 + $0xd8] sm:$0xff]
        %v1174 = vld [vmem:[#allocation10 + $0xe0] sm:$0xff]
        %v1175 = vld [vmem:[#allocation10 + $0xe8] sm:$0xff]
        %v1176 = vld [vmem:[#allocation10 + $0xf0] sm:$0xff]
        %v1177 = vld [vmem:[#allocation10 + $0xf8] sm:$0xff]
        %v1178 = vld [vmem:[#allocation10 + $0x100] sm:$0xff]
        %v1179 = vld [vmem:[#allocation10 + $0x108] sm:$0xff]
        %v1180 = vld [vmem:[#allocation10 + $0x110] sm:$0xff]
        %v1181 = vld [vmem:[#allocation10 + $0x118] sm:$0xff]
        %v1182 = vld [vmem:[#allocation10 + $0x120] sm:$0xff]
        %v1183 = vld [vmem:[#allocation10 + $0x128] sm:$0xff]
        %v1184 = vld [vmem:[#allocation10 + $0x130] sm:$0xff]
        %v1185 = vld [vmem:[#allocation10 + $0x138] sm:$0xff]
        %v1186 = vld [vmem:[#allocation10 + $0x140] sm:$0xff]
        %v1187 = vld [vmem:[#allocation10 + $0x148] sm:$0xff]
        %v1188 = vld [vmem:[#allocation10 + $0x150] sm:$0xff]
        %v1189 = vld [vmem:[#allocation10 + $0x158] sm:$0xff]
        %v1190 = vld [vmem:[#allocation10 + $0x160] sm:$0xff]
        %v1191 = vld [vmem:[#allocation10 + $0x168] sm:$0xff]
        %v1192 = vld [vmem:[#allocation10 + $0x170] sm:$0xff]
        %v1193 = vld [vmem:[#allocation10 + $0x178] sm:$0xff]
        %v1196 = vrot.slane %v868, 1
        %v1197 = vrot.slane %v794, 1
        %v1198 = vsel %vm920, %v1196, %v1197
        %v1199 = vrot.slane %v886, 1
        %v1200 = vsel %vm920, %v1197, %v1199
        %v1203 = vrot.slane %v868, 2
        %v1204 = vrot.slane %v794, 2
        %v1205 = vsel %vm1033, %v1203, %v1204
        %v1206 = vrot.slane %v886, 2
        %v1207 = vsel %vm1033, %v1204, %v1206
        %v1210 = vld [vmem:[#allocation10 + $0x180] sm:$0xff]
        %v1211 = vld [vmem:[#allocation10 + $0x188] sm:$0xff]
        %v1212 = vld [vmem:[#allocation10 + $0x190] sm:$0xff]
        %v1213 = vld [vmem:[#allocation10 + $0x198] sm:$0xff]
        %v1214 = vld [vmem:[#allocation10 + $0x1a0] sm:$0xff]
        %v1215 = vld [vmem:[#allocation10 + $0x1a8] sm:$0xff]
        %v1216 = vld [vmem:[#allocation10 + $0x1b0] sm:$0xff]
        %v1217 = vld [vmem:[#allocation10 + $0x1b8] sm:$0xff]
        %v1218 = vld [vmem:[#allocation10 + $0x1c0] sm:$0xff]
        %v1219 = vld [vmem:[#allocation10 + $0x1c8] sm:$0xff]
        %v1220 = vld [vmem:[#allocation10 + $0x1d0] sm:$0xff]
        %v1221 = vld [vmem:[#allocation10 + $0x1d8] sm:$0xff]
        %v1222 = vld [vmem:[#allocation10 + $0x1e0] sm:$0xff]
        %v1223 = vld [vmem:[#allocation10 + $0x1e8] sm:$0xff]
        %v1224 = vld [vmem:[#allocation10 + $0x1f0] sm:$0xff]
        %v1225 = vld [vmem:[#allocation10 + $0x1f8] sm:$0xff]
        %v1226 = vld [vmem:[#allocation10 + $0x200] sm:$0xff]
        %v1227 = vld [vmem:[#allocation10 + $0x208] sm:$0xff]
        %v1228 = vld [vmem:[#allocation10 + $0x210] sm:$0xff]
        %v1229 = vld [vmem:[#allocation10 + $0x218] sm:$0xff]
        %v1230 = vld [vmem:[#allocation10 + $0x220] sm:$0xff]
        %v1231 = vld [vmem:[#allocation10 + $0x228] sm:$0xff]
        %v1232 = vld [vmem:[#allocation10 + $0x230] sm:$0xff]
        %v1233 = vld [vmem:[#allocation10 + $0x238] sm:$0xff]
        %v1234 = vld [vmem:[#allocation10 + $0x240] sm:$0xff]
        %v1235 = vld [vmem:[#allocation10 + $0x248] sm:$0xff]
        %v1236 = vld [vmem:[#allocation10 + $0x250] sm:$0xff]
        %v1237 = vld [vmem:[#allocation10 + $0x258] sm:$0xff]
        %v1238 = vld [vmem:[#allocation10 + $0x260] sm:$0xff]
        %v1239 = vld [vmem:[#allocation10 + $0x268] sm:$0xff]
        %v1240 = vld [vmem:[#allocation10 + $0x270] sm:$0xff]
        %v1241 = vld [vmem:[#allocation10 + $0x278] sm:$0xff]
        %v1242 = vld [vmem:[#allocation10 + $0x280] sm:$0xff]
        %v1243 = vld [vmem:[#allocation10 + $0x288] sm:$0xff]
        %v1244 = vld [vmem:[#allocation10 + $0x290] sm:$0xff]
        %v1245 = vld [vmem:[#allocation10 + $0x298] sm:$0xff]
        %v1246 = vld [vmem:[#allocation10 + $0x2a0] sm:$0xff]
        %v1247 = vld [vmem:[#allocation10 + $0x2a8] sm:$0xff]
        %v1248 = vld [vmem:[#allocation10 + $0x2b0] sm:$0xff]
        %v1249 = vld [vmem:[#allocation10 + $0x2b8] sm:$0xff]
        %v1250 = vld [vmem:[#allocation10 + $0x2c0] sm:$0xff]
        %v1251 = vld [vmem:[#allocation10 + $0x2c8] sm:$0xff]
        %v1252 = vld [vmem:[#allocation10 + $0x2d0] sm:$0xff]
        %v1253 = vld [vmem:[#allocation10 + $0x2d8] sm:$0xff]
        %v1254 = vld [vmem:[#allocation10 + $0x2e0] sm:$0xff]
        %v1255 = vld [vmem:[#allocation10 + $0x2e8] sm:$0xff]
        %v1256 = vld [vmem:[#allocation10 + $0x2f0] sm:$0xff]
        %v1257 = vld [vmem:[#allocation10 + $0x2f8] sm:$0xff]
        %1258 = vmatprep.subr.mxu0 0.0
        %1259 = vmatpush1.msra.mxu0 %v1210
        %1260 = vmatprep.subr.mxu0 0.0
        %1261 = vmatpush1.msra.mxu0 %v1211
        %1262 = vmatprep.subr.mxu0 0.0
        %1263 = vmatpush1.msra.mxu0 %v1212
        %1264 = vmatprep.subr.mxu0 0.0
        %1265 = vmatpush1.msra.mxu0 %v1213
        %1266 = vmatprep.subr.mxu0 0.0
        %1267 = vmatpush1.msra.mxu0 %v1214
        %1268 = vmatprep.subr.mxu0 0.0
        %1269 = vmatpush1.msra.mxu0 %v1215
        %1270 = vmatprep.subr.mxu0 0.0
        %1271 = vmatpush1.msra.mxu0 %v1216
        %1272 = vmatprep.subr.mxu0 0.0
        %1273 = vmatpush1.msra.mxu0 %v1217
        %1274 = vmatprep.subr.mxu0 0.0
        %1275 = vmatpush1.msra.mxu0 %v1218
        %1276 = vmatprep.subr.mxu0 0.0
        %1277 = vmatpush1.msra.mxu0 %v1219
        %1278 = vmatprep.subr.mxu0 0.0
        %1279 = vmatpush1.msra.mxu0 %v1220
        %1280 = vmatprep.subr.mxu0 0.0
        %1281 = vmatpush1.msra.mxu0 %v1221
        %1282 = vmatprep.subr.mxu0 0.0
        %1283 = vmatpush1.msra.mxu0 %v1222
        %1284 = vmatprep.subr.mxu0 0.0
        %1285 = vmatpush1.msra.mxu0 %v1223
        %1286 = vmatprep.subr.mxu0 0.0
        %1287 = vmatpush1.msra.mxu0 %v1224
        %1288 = vmatprep.subr.mxu0 0.0
        %1289 = vmatpush1.msra.mxu0 %v1225
        %1290 = vmatprep.subr.mxu0 0.0
        %1291 = vmatpush1.msra.mxu0 %v1226
        %1292 = vmatprep.subr.mxu0 0.0
        %1293 = vmatpush1.msra.mxu0 %v1227
        %1294 = vmatprep.subr.mxu0 0.0
        %1295 = vmatpush1.msra.mxu0 %v1228
        %1296 = vmatprep.subr.mxu0 0.0
        %1297 = vmatpush1.msra.mxu0 %v1229
        %1298 = vmatprep.subr.mxu0 0.0
        %1299 = vmatpush1.msra.mxu0 %v1230
        %1300 = vmatprep.subr.mxu0 0.0
        %1301 = vmatpush1.msra.mxu0 %v1231
        %1302 = vmatprep.subr.mxu0 0.0
        %1303 = vmatpush1.msra.mxu0 %v1232
        %1304 = vmatprep.subr.mxu0 0.0
        %1305 = vmatpush1.msra.mxu0 %v1233
        %1306 = vmatprep.subr.mxu0 0.0
        %1307 = vmatpush1.msra.mxu0 %v1234
        %1308 = vmatprep.subr.mxu0 0.0
        %1309 = vmatpush1.msra.mxu0 %v1235
        %1310 = vmatprep.subr.mxu0 0.0
        %1311 = vmatpush1.msra.mxu0 %v1236
        %1312 = vmatprep.subr.mxu0 0.0
        %1313 = vmatpush1.msra.mxu0 %v1237
        %1314 = vmatprep.subr.mxu0 0.0
        %1315 = vmatpush1.msra.mxu0 %v1238
        %1316 = vmatprep.subr.mxu0 0.0
        %1317 = vmatpush1.msra.mxu0 %v1239
        %1318 = vmatprep.subr.mxu0 0.0
        %1319 = vmatpush1.msra.mxu0 %v1240
        %1320 = vmatprep.subr.mxu0 0.0
        %1321 = vmatpush1.msra.mxu0 %v1241
        %1322 = vmatprep.mubr.f32.mxu0 %v928
        %1323 = vmatmul.mubr.f32.gmra.mrb[0].mxu0 %v853
        %v1324 = vpop.f32.mrb[0].mxu0
        %v1325 = vadd.f32 0.0, %v1324
        %v1326 = vpop.f32.mrb[0].mxu0
        %1327 = vmatprep.mubr.f32.mxu0 %v930
        %1328 = vmatmul.mubr.f32.gmra.mrb[0].mxu0 %v749
        %v1329 = vpop.f32.mrb[0].mxu0
        %v1330 = vadd.f32 0.0, %v1329
        %v1331 = vpop.f32.mrb[0].mxu0
        %1332 = vmatprep.mubr.f32.mxu0 %v933
        %1333 = vmatmul.mubr.f32.gmra.mrb[0].mxu0 %v854
        %v1334 = vpop.f32.mrb[0].mxu0
        %v1335 = vadd.f32 0.0, %v1334
        %v1336 = vpop.f32.mrb[0].mxu0
        %1337 = vmatprep.mubr.f32.mxu0 %v935
        %1338 = vmatmul.mubr.f32.gmra.mrb[0].mxu0 %v752
        %v1339 = vpop.f32.mrb[0].mxu0
        %v1340 = vadd.f32 0.0, %v1339
        %v1341 = vpop.f32.mrb[0].mxu0
        %1342 = vmatprep.mubr.f32.mxu0 %v938
        %1343 = vmatmul.mubr.f32.gmra.mrb[0].mxu0 %v855
        %v1344 = vpop.f32.mrb[0].mxu0
        %v1345 = vadd.f32 0.0, %v1344
        %v1346 = vpop.f32.mrb[0].mxu0
        %1347 = vmatprep.mubr.f32.mxu0 %v940
        %1348 = vmatmul.mubr.f32.gmra.mrb[0].mxu0 %v755
        %v1349 = vpop.f32.mrb[0].mxu0
        %v1350 = vadd.f32 0.0, %v1349
        %v1351 = vpop.f32.mrb[0].mxu0
        %1352 = vmatprep.mubr.f32.mxu0 %v943
        %1353 = vmatmul.mubr.f32.gmra.mrb[0].mxu0 %v856
        %v1354 = vpop.f32.mrb[0].mxu0
        %v1355 = vadd.f32 0.0, %v1354
        %v1356 = vpop.f32.mrb[0].mxu0
        %1357 = vmatprep.mubr.f32.mxu0 %v945
        %1358 = vmatmul.mubr.f32.gmra.mrb[0].mxu0 %v758
        %v1359 = vpop.f32.mrb[0].mxu0
        %v1360 = vadd.f32 0.0, %v1359
        %v1361 = vpop.f32.mrb[0].mxu0
        %1362 = vmatprep.mubr.f32.mxu0 %v948
        %1363 = vmatmul.mubr.f32.gmra.mrb[0].mxu0 %v857
        %v1364 = vpop.f32.mrb[0].mxu0
        %v1365 = vadd.f32 0.0, %v1364
        %v1366 = vpop.f32.mrb[0].mxu0
        %1367 = vmatprep.mubr.f32.mxu0 %v950
        %1368 = vmatmul.mubr.f32.gmra.mrb[0].mxu0 %v761
        %v1369 = vpop.f32.mrb[0].mxu0
        %v1370 = vadd.f32 0.0, %v1369
        %v1371 = vpop.f32.mrb[0].mxu0
        %1372 = vmatprep.mubr.f32.mxu0 %v953
        %1373 = vmatmul.mubr.f32.gmra.mrb[0].mxu0 %v858
        %v1374 = vpop.f32.mrb[0].mxu0
        %v1375 = vadd.f32 0.0, %v1374
        %v1376 = vpop.f32.mrb[0].mxu0
        %1377 = vmatprep.mubr.f32.mxu0 %v955
        %1378 = vmatmul.mubr.f32.gmra.mrb[0].mxu0 %v764
        %v1379 = vpop.f32.mrb[0].mxu0
        %v1380 = vadd.f32 0.0, %v1379
        %v1381 = vpop.f32.mrb[0].mxu0
        %1382 = vmatprep.mubr.f32.mxu0 %v958
        %1383 = vmatmul.mubr.f32.gmra.mrb[0].mxu0 %v859
        %v1384 = vpop.f32.mrb[0].mxu0
        %v1385 = vadd.f32 0.0, %v1384
        %v1386 = vpop.f32.mrb[0].mxu0
        %1387 = vmatprep.mubr.f32.mxu0 %v960
        %1388 = vmatmul.mubr.f32.gmra.mrb[0].mxu0 %v767
        %v1389 = vpop.f32.mrb[0].mxu0
        %v1390 = vadd.f32 0.0, %v1389
        %v1391 = vpop.f32.mrb[0].mxu0
        %1392 = vmatprep.mubr.f32.mxu0 %v963
        %1393 = vmatmul.mubr.f32.gmra.mrb[0].mxu0 %v860
        %v1394 = vpop.f32.mrb[0].mxu0
        %v1395 = vadd.f32 0.0, %v1394
        %v1396 = vpop.f32.mrb[0].mxu0
        %1397 = vmatprep.mubr.f32.mxu0 %v965
        %1398 = vmatmul.mubr.f32.gmra.mrb[0].mxu0 %v770
        %v1399 = vpop.f32.mrb[0].mxu0
        %v1400 = vadd.f32 0.0, %v1399
        %v1401 = vpop.f32.mrb[0].mxu0
        %1402 = vmatprep.mubr.f32.mxu0 %v968
        %1403 = vmatmul.mubr.f32.gmra.mrb[0].mxu0 %v861
        %v1404 = vpop.f32.mrb[0].mxu0
        %v1405 = vadd.f32 0.0, %v1404
        %v1406 = vpop.f32.mrb[0].mxu0
        %1407 = vmatprep.mubr.f32.mxu0 %v970
        %1408 = vmatmul.mubr.f32.gmra.mrb[0].mxu0 %v773
        %v1409 = vpop.f32.mrb[0].mxu0
        %v1410 = vadd.f32 0.0, %v1409
        %v1411 = vpop.f32.mrb[0].mxu0
        %1412 = vmatprep.mubr.f32.mxu0 %v973
        %1413 = vmatmul.mubr.f32.gmra.mrb[0].mxu0 %v862
        %v1414 = vpop.f32.mrb[0].mxu0
        %v1415 = vadd.f32 0.0, %v1414
        %v1416 = vpop.f32.mrb[0].mxu0
        %1417 = vmatprep.mubr.f32.mxu0 %v975
        %1418 = vmatmul.mubr.f32.gmra.mrb[0].mxu0 %v776
        %v1419 = vpop.f32.mrb[0].mxu0
        %v1420 = vadd.f32 0.0, %v1419
        %v1421 = vpop.f32.mrb[0].mxu0
        %1422 = vmatprep.mubr.f32.mxu0 %v978
        %1423 = vmatmul.mubr.f32.gmra.mrb[0].mxu0 %v863
        %v1424 = vpop.f32.mrb[0].mxu0
        %v1425 = vadd.f32 0.0, %v1424
        %v1426 = vpop.f32.mrb[0].mxu0
        %1427 = vmatprep.mubr.f32.mxu0 %v980
        %1428 = vmatmul.mubr.f32.gmra.mrb[0].mxu0 %v779
        %v1429 = vpop.f32.mrb[0].mxu0
        %v1430 = vadd.f32 0.0, %v1429
        %v1431 = vpop.f32.mrb[0].mxu0
        %1432 = vmatprep.mubr.f32.mxu0 %v983
        %1433 = vmatmul.mubr.f32.gmra.mrb[0].mxu0 %v864
        %v1434 = vpop.f32.mrb[0].mxu0
        %v1435 = vadd.f32 0.0, %v1434
        %v1436 = vpop.f32.mrb[0].mxu0
        %1437 = vmatprep.mubr.f32.mxu0 %v985
        %1438 = vmatmul.mubr.f32.gmra.mrb[0].mxu0 %v782
        %v1439 = vpop.f32.mrb[0].mxu0
        %v1440 = vadd.f32 0.0, %v1439
        %v1441 = vpop.f32.mrb[0].mxu0
        %1442 = vmatprep.mubr.f32.mxu0 %v988
        %1443 = vmatmul.mubr.f32.gmra.mrb[0].mxu0 %v865
        %v1444 = vpop.f32.mrb[0].mxu0
        %v1445 = vadd.f32 0.0, %v1444
        %v1446 = vpop.f32.mrb[0].mxu0
        %1447 = vmatprep.mubr.f32.mxu0 %v990
        %1448 = vmatmul.mubr.f32.gmra.mrb[0].mxu0 %v785
        %v1449 = vpop.f32.mrb[0].mxu0
        %v1450 = vadd.f32 0.0, %v1449
        %v1451 = vpop.f32.mrb[0].mxu0
        %1452 = vmatprep.mubr.f32.mxu0 %v993
        %1453 = vmatmul.mubr.f32.gmra.mrb[0].mxu0 %v866
        %v1454 = vpop.f32.mrb[0].mxu0
        %v1455 = vadd.f32 0.0, %v1454
        %v1456 = vpop.f32.mrb[0].mxu0
        %1457 = vmatprep.mubr.f32.mxu0 %v995
        %1458 = vmatmul.mubr.f32.gmra.mrb[0].mxu0 %v788
        %v1459 = vpop.f32.mrb[0].mxu0
        %v1460 = vadd.f32 0.0, %v1459
        %v1461 = vpop.f32.mrb[0].mxu0
        %1462 = vmatprep.mubr.f32.mxu0 %v998
        %1463 = vmatmul.mubr.f32.gmra.mrb[0].mxu0 %v867
        %v1464 = vpop.f32.mrb[0].mxu0
        %v1465 = vadd.f32 0.0, %v1464
        %v1466 = vpop.f32.mrb[0].mxu0
        %1467 = vmatprep.mubr.f32.mxu0 %v1000
        %1468 = vmatmul.mubr.f32.gmra.mrb[0].mxu0 %v791
        %v1469 = vpop.f32.mrb[0].mxu0
        %v1470 = vadd.f32 0.0, %v1469
        %v1471 = vpop.f32.mrb[0].mxu0
        %1472 = vmatprep.mubr.f32.mxu0 %v1198
        %1473 = vmatmul.mubr.f32.gmra.mrb[0].mxu0 %v868
        %v1474 = vpop.f32.mrb[0].mxu0
        %v1475 = vadd.f32 0.0, %v1474
        %v1476 = vpop.f32.mrb[0].mxu0
        %1477 = vmatprep.mubr.f32.mxu0 %v1200
        %1478 = vmatmul.mubr.f32.gmra.mrb[0].mxu0 %v794
        %v1479 = vpop.f32.mrb[0].mxu0
        %v1480 = vadd.f32 0.0, %v1479
        %v1481 = vpop.f32.mrb[0].mxu0
        %1482 = vdwg.mxu0
        %1483 = vmatprep.subr.mxu0 0.0
        %1484 = vmatpush1.msra.mxu0 %v1242
        %1485 = vmatprep.subr.mxu0 0.0
        %1486 = vmatpush1.msra.mxu0 %v1243
        %1487 = vmatprep.subr.mxu0 0.0
        %1488 = vmatpush1.msra.mxu0 %v1244
        %1489 = vmatprep.subr.mxu0 0.0
        %1490 = vmatpush1.msra.mxu0 %v1245
        %1491 = vmatprep.subr.mxu0 0.0
        %1492 = vmatpush1.msra.mxu0 %v1246
        %1493 = vmatprep.subr.mxu0 0.0
        %1494 = vmatpush1.msra.mxu0 %v1247
        %1495 = vmatprep.subr.mxu0 0.0
        %1496 = vmatpush1.msra.mxu0 %v1248
        %1497 = vmatprep.subr.mxu0 0.0
        %1498 = vmatpush1.msra.mxu0 %v1249
        %1499 = vmatprep.subr.mxu0 0.0
        %1500 = vmatpush1.msra.mxu0 %v1250
        %1501 = vmatprep.subr.mxu0 0.0
        %1502 = vmatpush1.msra.mxu0 %v1251
        %1503 = vmatprep.subr.mxu0 0.0
        %1504 = vmatpush1.msra.mxu0 %v1252
        %1505 = vmatprep.subr.mxu0 0.0
        %1506 = vmatpush1.msra.mxu0 %v1253
        %1507 = vmatprep.subr.mxu0 0.0
        %1508 = vmatpush1.msra.mxu0 %v1254
        %1509 = vmatprep.subr.mxu0 0.0
        %1510 = vmatpush1.msra.mxu0 %v1255
        %1511 = vmatprep.subr.mxu0 0.0
        %1512 = vmatpush1.msra.mxu0 %v1256
        %1513 = vmatprep.subr.mxu0 0.0
        %1514 = vmatpush1.msra.mxu0 %v1257
        %1515 = vmatprep.subr.mxu0 0.0
        %1516 = vmatpush1.msra.mxu0 0.0
        %1517 = vmatprep.subr.mxu0 0.0
        %1518 = vmatpush1.msra.mxu0 0.0
        %1519 = vmatprep.subr.mxu0 0.0
        %1520 = vmatpush1.msra.mxu0 0.0
        %1521 = vmatprep.subr.mxu0 0.0
        %1522 = vmatpush1.msra.mxu0 0.0
        %1523 = vmatprep.subr.mxu0 0.0
        %1524 = vmatpush1.msra.mxu0 0.0
        %1525 = vmatprep.subr.mxu0 0.0
        %1526 = vmatpush1.msra.mxu0 0.0
        %1527 = vmatprep.subr.mxu0 0.0
        %1528 = vmatpush1.msra.mxu0 0.0
        %1529 = vmatprep.subr.mxu0 0.0
        %1530 = vmatpush1.msra.mxu0 0.0
        %1531 = vmatprep.subr.mxu0 0.0
        %1532 = vmatpush1.msra.mxu0 0.0
        %1533 = vmatprep.subr.mxu0 0.0
        %1534 = vmatpush1.msra.mxu0 0.0
        %1535 = vmatprep.subr.mxu0 0.0
        %1536 = vmatpush1.msra.mxu0 0.0
        %1537 = vmatprep.subr.mxu0 0.0
        %1538 = vmatpush1.msra.mxu0 0.0
        %1539 = vmatprep.subr.mxu0 0.0
        %1540 = vmatpush1.msra.mxu0 0.0
        %1541 = vmatprep.subr.mxu0 0.0
        %1542 = vmatpush1.msra.mxu0 0.0
        %1543 = vmatprep.subr.mxu0 0.0
        %1544 = vmatpush1.msra.mxu0 0.0
        %1545 = vmatprep.subr.mxu0 0.0
        %1546 = vmatpush1.msra.mxu0 0.0
        %1547 = vmatprep.mubr.f32.mxu0 0.0
        %1548 = vmatmul.mubr.f32.gmra.mrb[0].mxu0 %v1041
        %v1549 = vpop.f32.mrb[0].mxu0
        %v1550 = vadd.f32 %v1325, %v1549
        %v1551 = vpop.f32.mrb[0].mxu0
        %1552 = vmatprep.mubr.f32.mxu0 0.0
        %1553 = vmatmul.mubr.f32.gmra.mrb[0].mxu0 %v1043
        %v1554 = vpop.f32.mrb[0].mxu0
        %v1555 = vadd.f32 %v1330, %v1554
        %v1556 = vpop.f32.mrb[0].mxu0
        %1557 = vmatprep.mubr.f32.mxu0 0.0
        %1558 = vmatmul.mubr.f32.gmra.mrb[0].mxu0 %v1046
        %v1559 = vpop.f32.mrb[0].mxu0
        %v1560 = vadd.f32 %v1335, %v1559
        %v1561 = vpop.f32.mrb[0].mxu0
        %1562 = vmatprep.mubr.f32.mxu0 0.0
        %1563 = vmatmul.mubr.f32.gmra.mrb[0].mxu0 %v1048
        %v1564 = vpop.f32.mrb[0].mxu0
        %v1565 = vadd.f32 %v1340, %v1564
        %v1566 = vpop.f32.mrb[0].mxu0
        %1567 = vmatprep.mubr.f32.mxu0 0.0
        %1568 = vmatmul.mubr.f32.gmra.mrb[0].mxu0 %v1051
        %v1569 = vpop.f32.mrb[0].mxu0
        %v1570 = vadd.f32 %v1345, %v1569
        %v1571 = vpop.f32.mrb[0].mxu0
        %1572 = vmatprep.mubr.f32.mxu0 0.0
        %1573 = vmatmul.mubr.f32.gmra.mrb[0].mxu0 %v1053
        %v1574 = vpop.f32.mrb[0].mxu0
        %v1575 = vadd.f32 %v1350, %v1574
        %v1576 = vpop.f32.mrb[0].mxu0
        %1577 = vmatprep.mubr.f32.mxu0 0.0
        %1578 = vmatmul.mubr.f32.gmra.mrb[0].mxu0 %v1056
        %v1579 = vpop.f32.mrb[0].mxu0
        %v1580 = vadd.f32 %v1355, %v1579
        %v1581 = vpop.f32.mrb[0].mxu0
        %1582 = vmatprep.mubr.f32.mxu0 0.0
        %1583 = vmatmul.mubr.f32.gmra.mrb[0].mxu0 %v1058
        %v1584 = vpop.f32.mrb[0].mxu0
        %v1585 = vadd.f32 %v1360, %v1584
        %v1586 = vpop.f32.mrb[0].mxu0
        %1587 = vmatprep.mubr.f32.mxu0 0.0
        %1588 = vmatmul.mubr.f32.gmra.mrb[0].mxu0 %v1061
        %v1589 = vpop.f32.mrb[0].mxu0
        %v1590 = vadd.f32 %v1365, %v1589
        %v1591 = vpop.f32.mrb[0].mxu0
        %1592 = vmatprep.mubr.f32.mxu0 0.0
        %1593 = vmatmul.mubr.f32.gmra.mrb[0].mxu0 %v1063
        %v1594 = vpop.f32.mrb[0].mxu0
        %v1595 = vadd.f32 %v1370, %v1594
        %v1596 = vpop.f32.mrb[0].mxu0
        %1597 = vmatprep.mubr.f32.mxu0 0.0
        %1598 = vmatmul.mubr.f32.gmra.mrb[0].mxu0 %v1066
        %v1599 = vpop.f32.mrb[0].mxu0
        %v1600 = vadd.f32 %v1375, %v1599
        %v1601 = vpop.f32.mrb[0].mxu0
        %1602 = vmatprep.mubr.f32.mxu0 0.0
        %1603 = vmatmul.mubr.f32.gmra.mrb[0].mxu0 %v1068
        %v1604 = vpop.f32.mrb[0].mxu0
        %v1605 = vadd.f32 %v1380, %v1604
        %v1606 = vpop.f32.mrb[0].mxu0
        %1607 = vmatprep.mubr.f32.mxu0 0.0
        %1608 = vmatmul.mubr.f32.gmra.mrb[0].mxu0 %v1071
        %v1609 = vpop.f32.mrb[0].mxu0
        %v1610 = vadd.f32 %v1385, %v1609
        %v1611 = vpop.f32.mrb[0].mxu0
        %1612 = vmatprep.mubr.f32.mxu0 0.0
        %1613 = vmatmul.mubr.f32.gmra.mrb[0].mxu0 %v1073
        %v1614 = vpop.f32.mrb[0].mxu0
        %v1615 = vadd.f32 %v1390, %v1614
        %v1616 = vpop.f32.mrb[0].mxu0
        %1617 = vmatprep.mubr.f32.mxu0 0.0
        %1618 = vmatmul.mubr.f32.gmra.mrb[0].mxu0 %v1076
        %v1619 = vpop.f32.mrb[0].mxu0
        %v1620 = vadd.f32 %v1395, %v1619
        %v1621 = vpop.f32.mrb[0].mxu0
        %1622 = vmatprep.mubr.f32.mxu0 0.0
        %1623 = vmatmul.mubr.f32.gmra.mrb[0].mxu0 %v1078
        %v1624 = vpop.f32.mrb[0].mxu0
        %v1625 = vadd.f32 %v1400, %v1624
        %v1626 = vpop.f32.mrb[0].mxu0
        %1627 = vmatprep.mubr.f32.mxu0 0.0
        %1628 = vmatmul.mubr.f32.gmra.mrb[0].mxu0 %v1081
        %v1629 = vpop.f32.mrb[0].mxu0
        %v1630 = vadd.f32 %v1405, %v1629
        %v1631 = vpop.f32.mrb[0].mxu0
        %1632 = vmatprep.mubr.f32.mxu0 0.0
        %1633 = vmatmul.mubr.f32.gmra.mrb[0].mxu0 %v1083
        %v1634 = vpop.f32.mrb[0].mxu0
        %v1635 = vadd.f32 %v1410, %v1634
        %v1636 = vpop.f32.mrb[0].mxu0
        %1637 = vmatprep.mubr.f32.mxu0 0.0
        %1638 = vmatmul.mubr.f32.gmra.mrb[0].mxu0 %v1086
        %v1639 = vpop.f32.mrb[0].mxu0
        %v1640 = vadd.f32 %v1415, %v1639
        %v1641 = vpop.f32.mrb[0].mxu0
        %1642 = vmatprep.mubr.f32.mxu0 0.0
        %1643 = vmatmul.mubr.f32.gmra.mrb[0].mxu0 %v1088
        %v1644 = vpop.f32.mrb[0].mxu0
        %v1645 = vadd.f32 %v1420, %v1644
        %v1646 = vpop.f32.mrb[0].mxu0
        %1647 = vmatprep.mubr.f32.mxu0 0.0
        %1648 = vmatmul.mubr.f32.gmra.mrb[0].mxu0 %v1091
        %v1649 = vpop.f32.mrb[0].mxu0
        %v1650 = vadd.f32 %v1425, %v1649
        %v1651 = vpop.f32.mrb[0].mxu0
        %1652 = vmatprep.mubr.f32.mxu0 0.0
        %1653 = vmatmul.mubr.f32.gmra.mrb[0].mxu0 %v1093
        %v1654 = vpop.f32.mrb[0].mxu0
        %v1655 = vadd.f32 %v1430, %v1654
        %v1656 = vpop.f32.mrb[0].mxu0
        %1657 = vmatprep.mubr.f32.mxu0 0.0
        %1658 = vmatmul.mubr.f32.gmra.mrb[0].mxu0 %v1096
        %v1659 = vpop.f32.mrb[0].mxu0
        %v1660 = vadd.f32 %v1435, %v1659
        %v1661 = vpop.f32.mrb[0].mxu0
        %1662 = vmatprep.mubr.f32.mxu0 0.0
        %1663 = vmatmul.mubr.f32.gmra.mrb[0].mxu0 %v1098
        %v1664 = vpop.f32.mrb[0].mxu0
        %v1665 = vadd.f32 %v1440, %v1664
        %v1666 = vpop.f32.mrb[0].mxu0
        %1667 = vmatprep.mubr.f32.mxu0 0.0
        %1668 = vmatmul.mubr.f32.gmra.mrb[0].mxu0 %v1101
        %v1669 = vpop.f32.mrb[0].mxu0
        %v1670 = vadd.f32 %v1445, %v1669
        %v1671 = vpop.f32.mrb[0].mxu0
        %1672 = vmatprep.mubr.f32.mxu0 0.0
        %1673 = vmatmul.mubr.f32.gmra.mrb[0].mxu0 %v1103
        %v1674 = vpop.f32.mrb[0].mxu0
        %v1675 = vadd.f32 %v1450, %v1674
        %v1676 = vpop.f32.mrb[0].mxu0
        %1677 = vmatprep.mubr.f32.mxu0 0.0
        %1678 = vmatmul.mubr.f32.gmra.mrb[0].mxu0 %v1106
        %v1679 = vpop.f32.mrb[0].mxu0
        %v1680 = vadd.f32 %v1455, %v1679
        %v1681 = vpop.f32.mrb[0].mxu0
        %1682 = vmatprep.mubr.f32.mxu0 0.0
        %1683 = vmatmul.mubr.f32.gmra.mrb[0].mxu0 %v1108
        %v1684 = vpop.f32.mrb[0].mxu0
        %v1685 = vadd.f32 %v1460, %v1684
        %v1686 = vpop.f32.mrb[0].mxu0
        %1687 = vmatprep.mubr.f32.mxu0 0.0
        %1688 = vmatmul.mubr.f32.gmra.mrb[0].mxu0 %v1111
        %v1689 = vpop.f32.mrb[0].mxu0
        %v1690 = vadd.f32 %v1465, %v1689
        %v1691 = vpop.f32.mrb[0].mxu0
        %1692 = vmatprep.mubr.f32.mxu0 0.0
        %1693 = vmatmul.mubr.f32.gmra.mrb[0].mxu0 %v1113
        %v1694 = vpop.f32.mrb[0].mxu0
        %v1695 = vadd.f32 %v1470, %v1694
        %v1696 = vpop.f32.mrb[0].mxu0
        %1697 = vmatprep.mubr.f32.mxu0 0.0
        %1698 = vmatmul.mubr.f32.gmra.mrb[0].mxu0 %v1205
        %v1699 = vpop.f32.mrb[0].mxu0
        %v1700 = vadd.f32 %v1475, %v1699
        %v1701 = vpop.f32.mrb[0].mxu0
        %1702 = vmatprep.mubr.f32.mxu0 0.0
        %1703 = vmatmul.mubr.f32.gmra.mrb[0].mxu0 %v1207
        %v1704 = vpop.f32.mrb[0].mxu0
        %v1705 = vadd.f32 %v1480, %v1704
        %v1706 = vpop.f32.mrb[0].mxu0
        %1707 = vdwg.mxu0
        %1708 = vmatprep.subr.mxu0 0.0
        %1709 = vmatpush1.msra.mxu0 %v1146
        %1710 = vmatprep.subr.mxu0 0.0
        %1711 = vmatpush1.msra.mxu0 %v1147
        %1712 = vmatprep.subr.mxu0 0.0
        %1713 = vmatpush1.msra.mxu0 %v1148
        %1714 = vmatprep.subr.mxu0 0.0
        %1715 = vmatpush1.msra.mxu0 %v1149
        %1716 = vmatprep.subr.mxu0 0.0
        %1717 = vmatpush1.msra.mxu0 %v1150
        %1718 = vmatprep.subr.mxu0 0.0
        %1719 = vmatpush1.msra.mxu0 %v1151
        %1720 = vmatprep.subr.mxu0 0.0
        %1721 = vmatpush1.msra.mxu0 %v1152
        %1722 = vmatprep.subr.mxu0 0.0
        %1723 = vmatpush1.msra.mxu0 %v1153
        %1724 = vmatprep.subr.mxu0 0.0
        %1725 = vmatpush1.msra.mxu0 %v1154
        %1726 = vmatprep.subr.mxu0 0.0
        %1727 = vmatpush1.msra.mxu0 %v1155
        %1728 = vmatprep.subr.mxu0 0.0
        %1729 = vmatpush1.msra.mxu0 %v1156
        %1730 = vmatprep.subr.mxu0 0.0
        %1731 = vmatpush1.msra.mxu0 %v1157
        %1732 = vmatprep.subr.mxu0 0.0
        %1733 = vmatpush1.msra.mxu0 %v1158
        %1734 = vmatprep.subr.mxu0 0.0
        %1735 = vmatpush1.msra.mxu0 %v1159
        %1736 = vmatprep.subr.mxu0 0.0
        %1737 = vmatpush1.msra.mxu0 %v1160
        %1738 = vmatprep.subr.mxu0 0.0
        %1739 = vmatpush1.msra.mxu0 %v1161
        %1740 = vmatprep.subr.mxu0 0.0
        %1741 = vmatpush1.msra.mxu0 %v1162
        %1742 = vmatprep.subr.mxu0 0.0
        %1743 = vmatpush1.msra.mxu0 %v1163
        %1744 = vmatprep.subr.mxu0 0.0
        %1745 = vmatpush1.msra.mxu0 %v1164
        %1746 = vmatprep.subr.mxu0 0.0
        %1747 = vmatpush1.msra.mxu0 %v1165
        %1748 = vmatprep.subr.mxu0 0.0
        %1749 = vmatpush1.msra.mxu0 %v1166
        %1750 = vmatprep.subr.mxu0 0.0
        %1751 = vmatpush1.msra.mxu0 %v1167
        %1752 = vmatprep.subr.mxu0 0.0
        %1753 = vmatpush1.msra.mxu0 %v1168
        %1754 = vmatprep.subr.mxu0 0.0
        %1755 = vmatpush1.msra.mxu0 %v1169
        %1756 = vmatprep.subr.mxu0 0.0
        %1757 = vmatpush1.msra.mxu0 %v1170
        %1758 = vmatprep.subr.mxu0 0.0
        %1759 = vmatpush1.msra.mxu0 %v1171
        %1760 = vmatprep.subr.mxu0 0.0
        %1761 = vmatpush1.msra.mxu0 %v1172
        %1762 = vmatprep.subr.mxu0 0.0
        %1763 = vmatpush1.msra.mxu0 %v1173
        %1764 = vmatprep.subr.mxu0 0.0
        %1765 = vmatpush1.msra.mxu0 %v1174
        %1766 = vmatprep.subr.mxu0 0.0
        %1767 = vmatpush1.msra.mxu0 %v1175
        %1768 = vmatprep.subr.mxu0 0.0
        %1769 = vmatpush1.msra.mxu0 %v1176
        %1770 = vmatprep.subr.mxu0 0.0
        %1771 = vmatpush1.msra.mxu0 %v1177
        %1772 = vmatprep.mubr.f32.mxu0 %v923
        %1773 = vmatmul.mubr.f32.gmra.mrb[0].mxu0 %v852
        %v1774 = vpop.f32.mrb[0].mxu0
        %v1775 = vadd.f32 %v1550, %v1774
        %v1776 = vpop.f32.mrb[0].mxu0
        %1777 = vmatprep.mubr.f32.mxu0 %v925
        %1778 = vmatmul.mubr.f32.gmra.mrb[0].mxu0 %v746
        %v1779 = vpop.f32.mrb[0].mxu0
        %v1780 = vadd.f32 %v1555, %v1779
        %v1781 = vpop.f32.mrb[0].mxu0
        %1782 = vmatprep.mubr.f32.mxu0 %v928
        %1783 = vmatmul.mubr.f32.gmra.mrb[0].mxu0 %v853
        %v1784 = vpop.f32.mrb[0].mxu0
        %v1785 = vadd.f32 %v1560, %v1784
        %v1786 = vpop.f32.mrb[0].mxu0
        %1787 = vmatprep.mubr.f32.mxu0 %v930
        %1788 = vmatmul.mubr.f32.gmra.mrb[0].mxu0 %v749
        %v1789 = vpop.f32.mrb[0].mxu0
        %v1790 = vadd.f32 %v1565, %v1789
        %v1791 = vpop.f32.mrb[0].mxu0
        %1792 = vmatprep.mubr.f32.mxu0 %v933
        %1793 = vmatmul.mubr.f32.gmra.mrb[0].mxu0 %v854
        %v1794 = vpop.f32.mrb[0].mxu0
        %v1795 = vadd.f32 %v1570, %v1794
        %v1796 = vpop.f32.mrb[0].mxu0
        %1797 = vmatprep.mubr.f32.mxu0 %v935
        %1798 = vmatmul.mubr.f32.gmra.mrb[0].mxu0 %v752
        %v1799 = vpop.f32.mrb[0].mxu0
        %v1800 = vadd.f32 %v1575, %v1799
        %v1801 = vpop.f32.mrb[0].mxu0
        %1802 = vmatprep.mubr.f32.mxu0 %v938
        %1803 = vmatmul.mubr.f32.gmra.mrb[0].mxu0 %v855
        %v1804 = vpop.f32.mrb[0].mxu0
        %v1805 = vadd.f32 %v1580, %v1804
        %v1806 = vpop.f32.mrb[0].mxu0
        %1807 = vmatprep.mubr.f32.mxu0 %v940
        %1808 = vmatmul.mubr.f32.gmra.mrb[0].mxu0 %v755
        %v1809 = vpop.f32.mrb[0].mxu0
        %v1810 = vadd.f32 %v1585, %v1809
        %v1811 = vpop.f32.mrb[0].mxu0
        %1812 = vmatprep.mubr.f32.mxu0 %v943
        %1813 = vmatmul.mubr.f32.gmra.mrb[0].mxu0 %v856
        %v1814 = vpop.f32.mrb[0].mxu0
        %v1815 = vadd.f32 %v1590, %v1814
        %v1816 = vpop.f32.mrb[0].mxu0
        %1817 = vmatprep.mubr.f32.mxu0 %v945
        %1818 = vmatmul.mubr.f32.gmra.mrb[0].mxu0 %v758
        %v1819 = vpop.f32.mrb[0].mxu0
        %v1820 = vadd.f32 %v1595, %v1819
        %v1821 = vpop.f32.mrb[0].mxu0
        %1822 = vmatprep.mubr.f32.mxu0 %v948
        %1823 = vmatmul.mubr.f32.gmra.mrb[0].mxu0 %v857
        %v1824 = vpop.f32.mrb[0].mxu0
        %v1825 = vadd.f32 %v1600, %v1824
        %v1826 = vpop.f32.mrb[0].mxu0
        %1827 = vmatprep.mubr.f32.mxu0 %v950
        %1828 = vmatmul.mubr.f32.gmra.mrb[0].mxu0 %v761
        %v1829 = vpop.f32.mrb[0].mxu0
        %v1830 = vadd.f32 %v1605, %v1829
        %v1831 = vpop.f32.mrb[0].mxu0
        %1832 = vmatprep.mubr.f32.mxu0 %v953
        %1833 = vmatmul.mubr.f32.gmra.mrb[0].mxu0 %v858
        %v1834 = vpop.f32.mrb[0].mxu0
        %v1835 = vadd.f32 %v1610, %v1834
        %v1836 = vpop.f32.mrb[0].mxu0
        %1837 = vmatprep.mubr.f32.mxu0 %v955
        %1838 = vmatmul.mubr.f32.gmra.mrb[0].mxu0 %v764
        %v1839 = vpop.f32.mrb[0].mxu0
        %v1840 = vadd.f32 %v1615, %v1839
        %v1841 = vpop.f32.mrb[0].mxu0
        %1842 = vmatprep.mubr.f32.mxu0 %v958
        %1843 = vmatmul.mubr.f32.gmra.mrb[0].mxu0 %v859
        %v1844 = vpop.f32.mrb[0].mxu0
        %v1845 = vadd.f32 %v1620, %v1844
        %v1846 = vpop.f32.mrb[0].mxu0
        %1847 = vmatprep.mubr.f32.mxu0 %v960
        %1848 = vmatmul.mubr.f32.gmra.mrb[0].mxu0 %v767
        %v1849 = vpop.f32.mrb[0].mxu0
        %v1850 = vadd.f32 %v1625, %v1849
        %v1851 = vpop.f32.mrb[0].mxu0
        %1852 = vmatprep.mubr.f32.mxu0 %v963
        %1853 = vmatmul.mubr.f32.gmra.mrb[0].mxu0 %v860
        %v1854 = vpop.f32.mrb[0].mxu0
        %v1855 = vadd.f32 %v1630, %v1854
        %v1856 = vpop.f32.mrb[0].mxu0
        %1857 = vmatprep.mubr.f32.mxu0 %v965
        %1858 = vmatmul.mubr.f32.gmra.mrb[0].mxu0 %v770
        %v1859 = vpop.f32.mrb[0].mxu0
        %v1860 = vadd.f32 %v1635, %v1859
        %v1861 = vpop.f32.mrb[0].mxu0
        %1862 = vmatprep.mubr.f32.mxu0 %v968
        %1863 = vmatmul.mubr.f32.gmra.mrb[0].mxu0 %v861
        %v1864 = vpop.f32.mrb[0].mxu0
        %v1865 = vadd.f32 %v1640, %v1864
        %v1866 = vpop.f32.mrb[0].mxu0
        %1867 = vmatprep.mubr.f32.mxu0 %v970
        %1868 = vmatmul.mubr.f32.gmra.mrb[0].mxu0 %v773
        %v1869 = vpop.f32.mrb[0].mxu0
        %v1870 = vadd.f32 %v1645, %v1869
        %v1871 = vpop.f32.mrb[0].mxu0
        %1872 = vmatprep.mubr.f32.mxu0 %v973
        %1873 = vmatmul.mubr.f32.gmra.mrb[0].mxu0 %v862
        %v1874 = vpop.f32.mrb[0].mxu0
        %v1875 = vadd.f32 %v1650, %v1874
        %v1876 = vpop.f32.mrb[0].mxu0
        %1877 = vmatprep.mubr.f32.mxu0 %v975
        %1878 = vmatmul.mubr.f32.gmra.mrb[0].mxu0 %v776
        %v1879 = vpop.f32.mrb[0].mxu0
        %v1880 = vadd.f32 %v1655, %v1879
        %v1881 = vpop.f32.mrb[0].mxu0
        %1882 = vmatprep.mubr.f32.mxu0 %v978
        %1883 = vmatmul.mubr.f32.gmra.mrb[0].mxu0 %v863
        %v1884 = vpop.f32.mrb[0].mxu0
        %v1885 = vadd.f32 %v1660, %v1884
        %v1886 = vpop.f32.mrb[0].mxu0
        %1887 = vmatprep.mubr.f32.mxu0 %v980
        %1888 = vmatmul.mubr.f32.gmra.mrb[0].mxu0 %v779
        %v1889 = vpop.f32.mrb[0].mxu0
        %v1890 = vadd.f32 %v1665, %v1889
        %v1891 = vpop.f32.mrb[0].mxu0
        %1892 = vmatprep.mubr.f32.mxu0 %v983
        %1893 = vmatmul.mubr.f32.gmra.mrb[0].mxu0 %v864
        %v1894 = vpop.f32.mrb[0].mxu0
        %v1895 = vadd.f32 %v1670, %v1894
        %v1896 = vpop.f32.mrb[0].mxu0
        %1897 = vmatprep.mubr.f32.mxu0 %v985
        %1898 = vmatmul.mubr.f32.gmra.mrb[0].mxu0 %v782
        %v1899 = vpop.f32.mrb[0].mxu0
        %v1900 = vadd.f32 %v1675, %v1899
        %v1901 = vpop.f32.mrb[0].mxu0
        %1902 = vmatprep.mubr.f32.mxu0 %v988
        %1903 = vmatmul.mubr.f32.gmra.mrb[0].mxu0 %v865
        %v1904 = vpop.f32.mrb[0].mxu0
        %v1905 = vadd.f32 %v1680, %v1904
        %v1906 = vpop.f32.mrb[0].mxu0
        %1907 = vmatprep.mubr.f32.mxu0 %v990
        %1908 = vmatmul.mubr.f32.gmra.mrb[0].mxu0 %v785
        %v1909 = vpop.f32.mrb[0].mxu0
        %v1910 = vadd.f32 %v1685, %v1909
        %v1911 = vpop.f32.mrb[0].mxu0
        %1912 = vmatprep.mubr.f32.mxu0 %v993
        %1913 = vmatmul.mubr.f32.gmra.mrb[0].mxu0 %v866
        %v1914 = vpop.f32.mrb[0].mxu0
        %v1915 = vadd.f32 %v1690, %v1914
        %v1916 = vpop.f32.mrb[0].mxu0
        %1917 = vmatprep.mubr.f32.mxu0 %v995
        %1918 = vmatmul.mubr.f32.gmra.mrb[0].mxu0 %v788
        %v1919 = vpop.f32.mrb[0].mxu0
        %v1920 = vadd.f32 %v1695, %v1919
        %v1921 = vpop.f32.mrb[0].mxu0
        %1922 = vmatprep.mubr.f32.mxu0 %v998
        %1923 = vmatmul.mubr.f32.gmra.mrb[0].mxu0 %v867
        %v1924 = vpop.f32.mrb[0].mxu0
        %v1925 = vadd.f32 %v1700, %v1924
        %v1926 = vpop.f32.mrb[0].mxu0
        %1927 = vmatprep.mubr.f32.mxu0 %v1000
        %1928 = vmatmul.mubr.f32.gmra.mrb[0].mxu0 %v791
        %v1929 = vpop.f32.mrb[0].mxu0
        %v1930 = vadd.f32 %v1705, %v1929
        %v1931 = vpop.f32.mrb[0].mxu0
        %1932 = vdwg.mxu0
        %1933 = vmatprep.subr.mxu0 0.0
        %1934 = vmatpush1.msra.mxu0 %v1178
        %1935 = vmatprep.subr.mxu0 0.0
        %1936 = vmatpush1.msra.mxu0 %v1179
        %1937 = vmatprep.subr.mxu0 0.0
        %1938 = vmatpush1.msra.mxu0 %v1180
        %1939 = vmatprep.subr.mxu0 0.0
        %1940 = vmatpush1.msra.mxu0 %v1181
        %1941 = vmatprep.subr.mxu0 0.0
        %1942 = vmatpush1.msra.mxu0 %v1182
        %1943 = vmatprep.subr.mxu0 0.0
        %1944 = vmatpush1.msra.mxu0 %v1183
        %1945 = vmatprep.subr.mxu0 0.0
        %1946 = vmatpush1.msra.mxu0 %v1184
        %1947 = vmatprep.subr.mxu0 0.0
        %1948 = vmatpush1.msra.mxu0 %v1185
        %1949 = vmatprep.subr.mxu0 0.0
        %1950 = vmatpush1.msra.mxu0 %v1186
        %1951 = vmatprep.subr.mxu0 0.0
        %1952 = vmatpush1.msra.mxu0 %v1187
        %1953 = vmatprep.subr.mxu0 0.0
        %1954 = vmatpush1.msra.mxu0 %v1188
        %1955 = vmatprep.subr.mxu0 0.0
        %1956 = vmatpush1.msra.mxu0 %v1189
        %1957 = vmatprep.subr.mxu0 0.0
        %1958 = vmatpush1.msra.mxu0 %v1190
        %1959 = vmatprep.subr.mxu0 0.0
        %1960 = vmatpush1.msra.mxu0 %v1191
        %1961 = vmatprep.subr.mxu0 0.0
        %1962 = vmatpush1.msra.mxu0 %v1192
        %1963 = vmatprep.subr.mxu0 0.0
        %1964 = vmatpush1.msra.mxu0 %v1193
        %1965 = vmatprep.subr.mxu0 0.0
        %1966 = vmatpush1.msra.mxu0 0.0
        %1967 = vmatprep.subr.mxu0 0.0
        %1968 = vmatpush1.msra.mxu0 0.0
        %1969 = vmatprep.subr.mxu0 0.0
        %1970 = vmatpush1.msra.mxu0 0.0
        %1971 = vmatprep.subr.mxu0 0.0
        %1972 = vmatpush1.msra.mxu0 0.0
        %1973 = vmatprep.subr.mxu0 0.0
        %1974 = vmatpush1.msra.mxu0 0.0
        %1975 = vmatprep.subr.mxu0 0.0
        %1976 = vmatpush1.msra.mxu0 0.0
        %1977 = vmatprep.subr.mxu0 0.0
        %1978 = vmatpush1.msra.mxu0 0.0
        %1979 = vmatprep.subr.mxu0 0.0
        %1980 = vmatpush1.msra.mxu0 0.0
        %1981 = vmatprep.subr.mxu0 0.0
        %1982 = vmatpush1.msra.mxu0 0.0
        %1983 = vmatprep.subr.mxu0 0.0
        %1984 = vmatpush1.msra.mxu0 0.0
        %1985 = vmatprep.subr.mxu0 0.0
        %1986 = vmatpush1.msra.mxu0 0.0
        %1987 = vmatprep.subr.mxu0 0.0
        %1988 = vmatpush1.msra.mxu0 0.0
        %1989 = vmatprep.subr.mxu0 0.0
        %1990 = vmatpush1.msra.mxu0 0.0
        %1991 = vmatprep.subr.mxu0 0.0
        %1992 = vmatpush1.msra.mxu0 0.0
        %1993 = vmatprep.subr.mxu0 0.0
        %1994 = vmatpush1.msra.mxu0 0.0
        %1995 = vmatprep.subr.mxu0 0.0
        %1996 = vmatpush1.msra.mxu0 0.0
        %1997 = vmatprep.mubr.f32.mxu0 0.0
        %1998 = vmatmul.mubr.f32.gmra.mrb[0].mxu0 %v1036
        %v1999 = vpop.f32.mrb[0].mxu0
        %v2000 = vadd.f32 %v1775, %v1999
        %v2001 = vpop.f32.mrb[0].mxu0
        %2002 = vmatprep.mubr.f32.mxu0 0.0
        %2003 = vmatmul.mubr.f32.gmra.mrb[0].mxu0 %v1038
        %v2004 = vpop.f32.mrb[0].mxu0
        %v2005 = vadd.f32 %v1780, %v2004
        %v2006 = vpop.f32.mrb[0].mxu0
        %2007 = vmatprep.mubr.f32.mxu0 0.0
        %2008 = vmatmul.mubr.f32.gmra.mrb[0].mxu0 %v1041
        %v2009 = vpop.f32.mrb[0].mxu0
        %v2010 = vadd.f32 %v1785, %v2009
        %v2011 = vpop.f32.mrb[0].mxu0
        %2012 = vmatprep.mubr.f32.mxu0 0.0
        %2013 = vmatmul.mubr.f32.gmra.mrb[0].mxu0 %v1043
        %v2014 = vpop.f32.mrb[0].mxu0
        %v2015 = vadd.f32 %v1790, %v2014
        %v2016 = vpop.f32.mrb[0].mxu0
        %2017 = vmatprep.mubr.f32.mxu0 0.0
        %2018 = vmatmul.mubr.f32.gmra.mrb[0].mxu0 %v1046
        %v2019 = vpop.f32.mrb[0].mxu0
        %v2020 = vadd.f32 %v1795, %v2019
        %v2021 = vpop.f32.mrb[0].mxu0
        %2022 = vmatprep.mubr.f32.mxu0 0.0
        %2023 = vmatmul.mubr.f32.gmra.mrb[0].mxu0 %v1048
        %v2024 = vpop.f32.mrb[0].mxu0
        %v2025 = vadd.f32 %v1800, %v2024
        %v2026 = vpop.f32.mrb[0].mxu0
        %2027 = vmatprep.mubr.f32.mxu0 0.0
        %2028 = vmatmul.mubr.f32.gmra.mrb[0].mxu0 %v1051
        %v2029 = vpop.f32.mrb[0].mxu0
        %v2030 = vadd.f32 %v1805, %v2029
        %v2031 = vpop.f32.mrb[0].mxu0
        %2032 = vmatprep.mubr.f32.mxu0 0.0
        %2033 = vmatmul.mubr.f32.gmra.mrb[0].mxu0 %v1053
        %v2034 = vpop.f32.mrb[0].mxu0
        %v2035 = vadd.f32 %v1810, %v2034
        %v2036 = vpop.f32.mrb[0].mxu0
        %2037 = vmatprep.mubr.f32.mxu0 0.0
        %2038 = vmatmul.mubr.f32.gmra.mrb[0].mxu0 %v1056
        %v2039 = vpop.f32.mrb[0].mxu0
        %v2040 = vadd.f32 %v1815, %v2039
        %v2041 = vpop.f32.mrb[0].mxu0
        %2042 = vmatprep.mubr.f32.mxu0 0.0
        %2043 = vmatmul.mubr.f32.gmra.mrb[0].mxu0 %v1058
        %v2044 = vpop.f32.mrb[0].mxu0
        %v2045 = vadd.f32 %v1820, %v2044
        %v2046 = vpop.f32.mrb[0].mxu0
        %2047 = vmatprep.mubr.f32.mxu0 0.0
        %2048 = vmatmul.mubr.f32.gmra.mrb[0].mxu0 %v1061
        %v2049 = vpop.f32.mrb[0].mxu0
        %v2050 = vadd.f32 %v1825, %v2049
        %v2051 = vpop.f32.mrb[0].mxu0
        %2052 = vmatprep.mubr.f32.mxu0 0.0
        %2053 = vmatmul.mubr.f32.gmra.mrb[0].mxu0 %v1063
        %v2054 = vpop.f32.mrb[0].mxu0
        %v2055 = vadd.f32 %v1830, %v2054
        %v2056 = vpop.f32.mrb[0].mxu0
        %2057 = vmatprep.mubr.f32.mxu0 0.0
        %2058 = vmatmul.mubr.f32.gmra.mrb[0].mxu0 %v1066
        %v2059 = vpop.f32.mrb[0].mxu0
        %v2060 = vadd.f32 %v1835, %v2059
        %v2061 = vpop.f32.mrb[0].mxu0
        %2062 = vmatprep.mubr.f32.mxu0 0.0
        %2063 = vmatmul.mubr.f32.gmra.mrb[0].mxu0 %v1068
        %v2064 = vpop.f32.mrb[0].mxu0
        %v2065 = vadd.f32 %v1840, %v2064
        %v2066 = vpop.f32.mrb[0].mxu0
        %2067 = vmatprep.mubr.f32.mxu0 0.0
        %2068 = vmatmul.mubr.f32.gmra.mrb[0].mxu0 %v1071
        %v2069 = vpop.f32.mrb[0].mxu0
        %v2070 = vadd.f32 %v1845, %v2069
        %v2071 = vpop.f32.mrb[0].mxu0
        %2072 = vmatprep.mubr.f32.mxu0 0.0
        %2073 = vmatmul.mubr.f32.gmra.mrb[0].mxu0 %v1073
        %v2074 = vpop.f32.mrb[0].mxu0
        %v2075 = vadd.f32 %v1850, %v2074
        %v2076 = vpop.f32.mrb[0].mxu0
        %2077 = vmatprep.mubr.f32.mxu0 0.0
        %2078 = vmatmul.mubr.f32.gmra.mrb[0].mxu0 %v1076
        %v2079 = vpop.f32.mrb[0].mxu0
        %v2080 = vadd.f32 %v1855, %v2079
        %v2081 = vpop.f32.mrb[0].mxu0
        %2082 = vmatprep.mubr.f32.mxu0 0.0
        %2083 = vmatmul.mubr.f32.gmra.mrb[0].mxu0 %v1078
        %v2084 = vpop.f32.mrb[0].mxu0
        %v2085 = vadd.f32 %v1860, %v2084
        %v2086 = vpop.f32.mrb[0].mxu0
        %2087 = vmatprep.mubr.f32.mxu0 0.0
        %2088 = vmatmul.mubr.f32.gmra.mrb[0].mxu0 %v1081
        %v2089 = vpop.f32.mrb[0].mxu0
        %v2090 = vadd.f32 %v1865, %v2089
        %v2091 = vpop.f32.mrb[0].mxu0
        %2092 = vmatprep.mubr.f32.mxu0 0.0
        %2093 = vmatmul.mubr.f32.gmra.mrb[0].mxu0 %v1083
        %v2094 = vpop.f32.mrb[0].mxu0
        %v2095 = vadd.f32 %v1870, %v2094
        %v2096 = vpop.f32.mrb[0].mxu0
        %2097 = vmatprep.mubr.f32.mxu0 0.0
        %2098 = vmatmul.mubr.f32.gmra.mrb[0].mxu0 %v1086
        %v2099 = vpop.f32.mrb[0].mxu0
        %v2100 = vadd.f32 %v1875, %v2099
        %v2101 = vpop.f32.mrb[0].mxu0
        %2102 = vmatprep.mubr.f32.mxu0 0.0
        %2103 = vmatmul.mubr.f32.gmra.mrb[0].mxu0 %v1088
        %v2104 = vpop.f32.mrb[0].mxu0
        %v2105 = vadd.f32 %v1880, %v2104
        %v2106 = vpop.f32.mrb[0].mxu0
        %2107 = vmatprep.mubr.f32.mxu0 0.0
        %2108 = vmatmul.mubr.f32.gmra.mrb[0].mxu0 %v1091
        %v2109 = vpop.f32.mrb[0].mxu0
        %v2110 = vadd.f32 %v1885, %v2109
        %v2111 = vpop.f32.mrb[0].mxu0
        %2112 = vmatprep.mubr.f32.mxu0 0.0
        %2113 = vmatmul.mubr.f32.gmra.mrb[0].mxu0 %v1093
        %v2114 = vpop.f32.mrb[0].mxu0
        %v2115 = vadd.f32 %v1890, %v2114
        %v2116 = vpop.f32.mrb[0].mxu0
        %2117 = vmatprep.mubr.f32.mxu0 0.0
        %2118 = vmatmul.mubr.f32.gmra.mrb[0].mxu0 %v1096
        %v2119 = vpop.f32.mrb[0].mxu0
        %v2120 = vadd.f32 %v1895, %v2119
        %v2121 = vpop.f32.mrb[0].mxu0
        %2122 = vmatprep.mubr.f32.mxu0 0.0
        %2123 = vmatmul.mubr.f32.gmra.mrb[0].mxu0 %v1098
        %v2124 = vpop.f32.mrb[0].mxu0
        %v2125 = vadd.f32 %v1900, %v2124
        %v2126 = vpop.f32.mrb[0].mxu0
        %2127 = vmatprep.mubr.f32.mxu0 0.0
        %2128 = vmatmul.mubr.f32.gmra.mrb[0].mxu0 %v1101
        %v2129 = vpop.f32.mrb[0].mxu0
        %v2130 = vadd.f32 %v1905, %v2129
        %v2131 = vpop.f32.mrb[0].mxu0
        %2132 = vmatprep.mubr.f32.mxu0 0.0
        %2133 = vmatmul.mubr.f32.gmra.mrb[0].mxu0 %v1103
        %v2134 = vpop.f32.mrb[0].mxu0
        %v2135 = vadd.f32 %v1910, %v2134
        %v2136 = vpop.f32.mrb[0].mxu0
        %2137 = vmatprep.mubr.f32.mxu0 0.0
        %2138 = vmatmul.mubr.f32.gmra.mrb[0].mxu0 %v1106
        %v2139 = vpop.f32.mrb[0].mxu0
        %v2140 = vadd.f32 %v1915, %v2139
        %v2141 = vpop.f32.mrb[0].mxu0
        %2142 = vmatprep.mubr.f32.mxu0 0.0
        %2143 = vmatmul.mubr.f32.gmra.mrb[0].mxu0 %v1108
        %v2144 = vpop.f32.mrb[0].mxu0
        %v2145 = vadd.f32 %v1920, %v2144
        %v2146 = vpop.f32.mrb[0].mxu0
        %2147 = vmatprep.mubr.f32.mxu0 0.0
        %2148 = vmatmul.mubr.f32.gmra.mrb[0].mxu0 %v1111
        %v2149 = vpop.f32.mrb[0].mxu0
        %v2150 = vadd.f32 %v1925, %v2149
        %v2151 = vpop.f32.mrb[0].mxu0
        %2152 = vmatprep.mubr.f32.mxu0 0.0
        %2153 = vmatmul.mubr.f32.gmra.mrb[0].mxu0 %v1113
        %v2154 = vpop.f32.mrb[0].mxu0
        %v2155 = vadd.f32 %v1930, %v2154
        %v2156 = vpop.f32.mrb[0].mxu0
        %2157 = vdwg.mxu0
        %v2160 = vrot.slane %v869, 1
        %v2161 = vrot.slane %v797, 1
        %v2162 = vsel %vm920, %v2160, %v2161
        %v2163 = vrot.slane %v887, 1
        %v2164 = vsel %vm920, %v2161, %v2163
        %v2167 = vrot.slane %v869, 2
        %v2168 = vrot.slane %v797, 2
        %v2169 = vsel %vm1033, %v2167, %v2168
        %v2170 = vrot.slane %v887, 2
        %v2171 = vsel %vm1033, %v2168, %v2170
        %v2174 = vld [vmem:[#allocation10 + $0x300] sm:$0xff]
        %v2175 = vld [vmem:[#allocation10 + $0x308] sm:$0xff]
        %v2176 = vld [vmem:[#allocation10 + $0x310] sm:$0xff]
        %v2177 = vld [vmem:[#allocation10 + $0x318] sm:$0xff]
        %v2178 = vld [vmem:[#allocation10 + $0x320] sm:$0xff]
        %v2179 = vld [vmem:[#allocation10 + $0x328] sm:$0xff]
        %v2180 = vld [vmem:[#allocation10 + $0x330] sm:$0xff]
        %v2181 = vld [vmem:[#allocation10 + $0x338] sm:$0xff]
        %v2182 = vld [vmem:[#allocation10 + $0x340] sm:$0xff]
        %v2183 = vld [vmem:[#allocation10 + $0x348] sm:$0xff]
        %v2184 = vld [vmem:[#allocation10 + $0x350] sm:$0xff]
        %v2185 = vld [vmem:[#allocation10 + $0x358] sm:$0xff]
        %v2186 = vld [vmem:[#allocation10 + $0x360] sm:$0xff]
        %v2187 = vld [vmem:[#allocation10 + $0x368] sm:$0xff]
        %v2188 = vld [vmem:[#allocation10 + $0x370] sm:$0xff]
        %v2189 = vld [vmem:[#allocation10 + $0x378] sm:$0xff]
        %v2190 = vld [vmem:[#allocation10 + $0x380] sm:$0xff]
        %v2191 = vld [vmem:[#allocation10 + $0x388] sm:$0xff]
        %v2192 = vld [vmem:[#allocation10 + $0x390] sm:$0xff]
        %v2193 = vld [vmem:[#allocation10 + $0x398] sm:$0xff]
        %v2194 = vld [vmem:[#allocation10 + $0x3a0] sm:$0xff]
        %v2195 = vld [vmem:[#allocation10 + $0x3a8] sm:$0xff]
        %v2196 = vld [vmem:[#allocation10 + $0x3b0] sm:$0xff]
        %v2197 = vld [vmem:[#allocation10 + $0x3b8] sm:$0xff]
        %v2198 = vld [vmem:[#allocation10 + $0x3c0] sm:$0xff]
        %v2199 = vld [vmem:[#allocation10 + $0x3c8] sm:$0xff]
        %v2200 = vld [vmem:[#allocation10 + $0x3d0] sm:$0xff]
        %v2201 = vld [vmem:[#allocation10 + $0x3d8] sm:$0xff]
        %v2202 = vld [vmem:[#allocation10 + $0x3e0] sm:$0xff]
        %v2203 = vld [vmem:[#allocation10 + $0x3e8] sm:$0xff]
        %v2204 = vld [vmem:[#allocation10 + $0x3f0] sm:$0xff]
        %v2205 = vld [vmem:[#allocation10 + $0x3f8] sm:$0xff]
        %v2206 = vld [vmem:[#allocation10 + $0x400] sm:$0xff]
        %v2207 = vld [vmem:[#allocation10 + $0x408] sm:$0xff]
        %v2208 = vld [vmem:[#allocation10 + $0x410] sm:$0xff]
        %v2209 = vld [vmem:[#allocation10 + $0x418] sm:$0xff]
        %v2210 = vld [vmem:[#allocation10 + $0x420] sm:$0xff]
        %v2211 = vld [vmem:[#allocation10 + $0x428] sm:$0xff]
        %v2212 = vld [vmem:[#allocation10 + $0x430] sm:$0xff]
        %v2213 = vld [vmem:[#allocation10 + $0x438] sm:$0xff]
        %v2214 = vld [vmem:[#allocation10 + $0x440] sm:$0xff]
        %v2215 = vld [vmem:[#allocation10 + $0x448] sm:$0xff]
        %v2216 = vld [vmem:[#allocation10 + $0x450] sm:$0xff]
        %v2217 = vld [vmem:[#allocation10 + $0x458] sm:$0xff]
        %v2218 = vld [vmem:[#allocation10 + $0x460] sm:$0xff]
        %v2219 = vld [vmem:[#allocation10 + $0x468] sm:$0xff]
        %v2220 = vld [vmem:[#allocation10 + $0x470] sm:$0xff]
        %v2221 = vld [vmem:[#allocation10 + $0x478] sm:$0xff]
        %2222 = vmatprep.subr.mxu0 0.0
        %2223 = vmatpush1.msra.mxu0 %v2174
        %2224 = vmatprep.subr.mxu0 0.0
        %2225 = vmatpush1.msra.mxu0 %v2175
        %2226 = vmatprep.subr.mxu0 0.0
        %2227 = vmatpush1.msra.mxu0 %v2176
        %2228 = vmatprep.subr.mxu0 0.0
        %2229 = vmatpush1.msra.mxu0 %v2177
        %2230 = vmatprep.subr.mxu0 0.0
        %2231 = vmatpush1.msra.mxu0 %v2178
        %2232 = vmatprep.subr.mxu0 0.0
        %2233 = vmatpush1.msra.mxu0 %v2179
        %2234 = vmatprep.subr.mxu0 0.0
        %2235 = vmatpush1.msra.mxu0 %v2180
        %2236 = vmatprep.subr.mxu0 0.0
        %2237 = vmatpush1.msra.mxu0 %v2181
        %2238 = vmatprep.subr.mxu0 0.0
        %2239 = vmatpush1.msra.mxu0 %v2182
        %2240 = vmatprep.subr.mxu0 0.0
        %2241 = vmatpush1.msra.mxu0 %v2183
        %2242 = vmatprep.subr.mxu0 0.0
        %2243 = vmatpush1.msra.mxu0 %v2184
        %2244 = vmatprep.subr.mxu0 0.0
        %2245 = vmatpush1.msra.mxu0 %v2185
        %2246 = vmatprep.subr.mxu0 0.0
        %2247 = vmatpush1.msra.mxu0 %v2186
        %2248 = vmatprep.subr.mxu0 0.0
        %2249 = vmatpush1.msra.mxu0 %v2187
        %2250 = vmatprep.subr.mxu0 0.0
        %2251 = vmatpush1.msra.mxu0 %v2188
        %2252 = vmatprep.subr.mxu0 0.0
        %2253 = vmatpush1.msra.mxu0 %v2189
        %2254 = vmatprep.subr.mxu0 0.0
        %2255 = vmatpush1.msra.mxu0 %v2190
        %2256 = vmatprep.subr.mxu0 0.0
        %2257 = vmatpush1.msra.mxu0 %v2191
        %2258 = vmatprep.subr.mxu0 0.0
        %2259 = vmatpush1.msra.mxu0 %v2192
        %2260 = vmatprep.subr.mxu0 0.0
        %2261 = vmatpush1.msra.mxu0 %v2193
        %2262 = vmatprep.subr.mxu0 0.0
        %2263 = vmatpush1.msra.mxu0 %v2194
        %2264 = vmatprep.subr.mxu0 0.0
        %2265 = vmatpush1.msra.mxu0 %v2195
        %2266 = vmatprep.subr.mxu0 0.0
        %2267 = vmatpush1.msra.mxu0 %v2196
        %2268 = vmatprep.subr.mxu0 0.0
        %2269 = vmatpush1.msra.mxu0 %v2197
        %2270 = vmatprep.subr.mxu0 0.0
        %2271 = vmatpush1.msra.mxu0 %v2198
        %2272 = vmatprep.subr.mxu0 0.0
        %2273 = vmatpush1.msra.mxu0 %v2199
        %2274 = vmatprep.subr.mxu0 0.0
        %2275 = vmatpush1.msra.mxu0 %v2200
        %2276 = vmatprep.subr.mxu0 0.0
        %2277 = vmatpush1.msra.mxu0 %v2201
        %2278 = vmatprep.subr.mxu0 0.0
        %2279 = vmatpush1.msra.mxu0 %v2202
        %2280 = vmatprep.subr.mxu0 0.0
        %2281 = vmatpush1.msra.mxu0 %v2203
        %2282 = vmatprep.subr.mxu0 0.0
        %2283 = vmatpush1.msra.mxu0 %v2204
        %2284 = vmatprep.subr.mxu0 0.0
        %2285 = vmatpush1.msra.mxu0 %v2205
        %2286 = vmatprep.mubr.f32.mxu0 %v933
        %2287 = vmatmul.mubr.f32.gmra.mrb[0].mxu0 %v854
        %v2288 = vpop.f32.mrb[0].mxu0
        %v2289 = vadd.f32 0.0, %v2288
        %v2290 = vpop.f32.mrb[0].mxu0
        %2291 = vmatprep.mubr.f32.mxu0 %v935
        %2292 = vmatmul.mubr.f32.gmra.mrb[0].mxu0 %v752
        %v2293 = vpop.f32.mrb[0].mxu0
        %v2294 = vadd.f32 0.0, %v2293
        %v2295 = vpop.f32.mrb[0].mxu0
        %2296 = vmatprep.mubr.f32.mxu0 %v938
        %2297 = vmatmul.mubr.f32.gmra.mrb[0].mxu0 %v855
        %v2298 = vpop.f32.mrb[0].mxu0
        %v2299 = vadd.f32 0.0, %v2298
        %v2300 = vpop.f32.mrb[0].mxu0
        %2301 = vmatprep.mubr.f32.mxu0 %v940
        %2302 = vmatmul.mubr.f32.gmra.mrb[0].mxu0 %v755
        %v2303 = vpop.f32.mrb[0].mxu0
        %v2304 = vadd.f32 0.0, %v2303
        %v2305 = vpop.f32.mrb[0].mxu0
        %2306 = vmatprep.mubr.f32.mxu0 %v943
        %2307 = vmatmul.mubr.f32.gmra.mrb[0].mxu0 %v856
        %v2308 = vpop.f32.mrb[0].mxu0
        %v2309 = vadd.f32 0.0, %v2308
        %v2310 = vpop.f32.mrb[0].mxu0
        %2311 = vmatprep.mubr.f32.mxu0 %v945
        %2312 = vmatmul.mubr.f32.gmra.mrb[0].mxu0 %v758
        %v2313 = vpop.f32.mrb[0].mxu0
        %v2314 = vadd.f32 0.0, %v2313
        %v2315 = vpop.f32.mrb[0].mxu0
        %2316 = vmatprep.mubr.f32.mxu0 %v948
        %2317 = vmatmul.mubr.f32.gmra.mrb[0].mxu0 %v857
        %v2318 = vpop.f32.mrb[0].mxu0
        %v2319 = vadd.f32 0.0, %v2318
        %v2320 = vpop.f32.mrb[0].mxu0
        %2321 = vmatprep.mubr.f32.mxu0 %v950
        %2322 = vmatmul.mubr.f32.gmra.mrb[0].mxu0 %v761
        %v2323 = vpop.f32.mrb[0].mxu0
        %v2324 = vadd.f32 0.0, %v2323
        %v2325 = vpop.f32.mrb[0].mxu0
        %2326 = vmatprep.mubr.f32.mxu0 %v953
        %2327 = vmatmul.mubr.f32.gmra.mrb[0].mxu0 %v858
        %v2328 = vpop.f32.mrb[0].mxu0
        %v2329 = vadd.f32 0.0, %v2328
        %v2330 = vpop.f32.mrb[0].mxu0
        %2331 = vmatprep.mubr.f32.mxu0 %v955
        %2332 = vmatmul.mubr.f32.gmra.mrb[0].mxu0 %v764
        %v2333 = vpop.f32.mrb[0].mxu0
        %v2334 = vadd.f32 0.0, %v2333
        %v2335 = vpop.f32.mrb[0].mxu0
        %2336 = vmatprep.mubr.f32.mxu0 %v958
        %2337 = vmatmul.mubr.f32.gmra.mrb[0].mxu0 %v859
        %v2338 = vpop.f32.mrb[0].mxu0
        %v2339 = vadd.f32 0.0, %v2338
        %v2340 = vpop.f32.mrb[0].mxu0
        %2341 = vmatprep.mubr.f32.mxu0 %v960
        %2342 = vmatmul.mubr.f32.gmra.mrb[0].mxu0 %v767
        %v2343 = vpop.f32.mrb[0].mxu0
        %v2344 = vadd.f32 0.0, %v2343
        %v2345 = vpop.f32.mrb[0].mxu0
        %2346 = vmatprep.mubr.f32.mxu0 %v963
        %2347 = vmatmul.mubr.f32.gmra.mrb[0].mxu0 %v860
        %v2348 = vpop.f32.mrb[0].mxu0
        %v2349 = vadd.f32 0.0, %v2348
        %v2350 = vpop.f32.mrb[0].mxu0
        %2351 = vmatprep.mubr.f32.mxu0 %v965
        %2352 = vmatmul.mubr.f32.gmra.mrb[0].mxu0 %v770
        %v2353 = vpop.f32.mrb[0].mxu0
        %v2354 = vadd.f32 0.0, %v2353
        %v2355 = vpop.f32.mrb[0].mxu0
        %2356 = vmatprep.mubr.f32.mxu0 %v968
        %2357 = vmatmul.mubr.f32.gmra.mrb[0].mxu0 %v861
        %v2358 = vpop.f32.mrb[0].mxu0
        %v2359 = vadd.f32 0.0, %v2358
        %v2360 = vpop.f32.mrb[0].mxu0
        %2361 = vmatprep.mubr.f32.mxu0 %v970
        %2362 = vmatmul.mubr.f32.gmra.mrb[0].mxu0 %v773
        %v2363 = vpop.f32.mrb[0].mxu0
        %v2364 = vadd.f32 0.0, %v2363
        %v2365 = vpop.f32.mrb[0].mxu0
        %2366 = vmatprep.mubr.f32.mxu0 %v973
        %2367 = vmatmul.mubr.f32.gmra.mrb[0].mxu0 %v862
        %v2368 = vpop.f32.mrb[0].mxu0
        %v2369 = vadd.f32 0.0, %v2368
        %v2370 = vpop.f32.mrb[0].mxu0
        %2371 = vmatprep.mubr.f32.mxu0 %v975
        %2372 = vmatmul.mubr.f32.gmra.mrb[0].mxu0 %v776
        %v2373 = vpop.f32.mrb[0].mxu0
        %v2374 = vadd.f32 0.0, %v2373
        %v2375 = vpop.f32.mrb[0].mxu0
        %2376 = vmatprep.mubr.f32.mxu0 %v978
        %2377 = vmatmul.mubr.f32.gmra.mrb[0].mxu0 %v863
        %v2378 = vpop.f32.mrb[0].mxu0
        %v2379 = vadd.f32 0.0, %v2378
        %v2380 = vpop.f32.mrb[0].mxu0
        %2381 = vmatprep.mubr.f32.mxu0 %v980
        %2382 = vmatmul.mubr.f32.gmra.mrb[0].mxu0 %v779
        %v2383 = vpop.f32.mrb[0].mxu0
        %v2384 = vadd.f32 0.0, %v2383
        %v2385 = vpop.f32.mrb[0].mxu0
        %2386 = vmatprep.mubr.f32.mxu0 %v983
        %2387 = vmatmul.mubr.f32.gmra.mrb[0].mxu0 %v864
        %v2388 = vpop.f32.mrb[0].mxu0
        %v2389 = vadd.f32 0.0, %v2388
        %v2390 = vpop.f32.mrb[0].mxu0
        %2391 = vmatprep.mubr.f32.mxu0 %v985
        %2392 = vmatmul.mubr.f32.gmra.mrb[0].mxu0 %v782
        %v2393 = vpop.f32.mrb[0].mxu0
        %v2394 = vadd.f32 0.0, %v2393
        %v2395 = vpop.f32.mrb[0].mxu0
        %2396 = vmatprep.mubr.f32.mxu0 %v988
        %2397 = vmatmul.mubr.f32.gmra.mrb[0].mxu0 %v865
        %v2398 = vpop.f32.mrb[0].mxu0
        %v2399 = vadd.f32 0.0, %v2398
        %v2400 = vpop.f32.mrb[0].mxu0
        %2401 = vmatprep.mubr.f32.mxu0 %v990
        %2402 = vmatmul.mubr.f32.gmra.mrb[0].mxu0 %v785
        %v2403 = vpop.f32.mrb[0].mxu0
        %v2404 = vadd.f32 0.0, %v2403
        %v2405 = vpop.f32.mrb[0].mxu0
        %2406 = vmatprep.mubr.f32.mxu0 %v993
        %2407 = vmatmul.mubr.f32.gmra.mrb[0].mxu0 %v866
        %v2408 = vpop.f32.mrb[0].mxu0
        %v2409 = vadd.f32 0.0, %v2408
        %v2410 = vpop.f32.mrb[0].mxu0
        %2411 = vmatprep.mubr.f32.mxu0 %v995
        %2412 = vmatmul.mubr.f32.gmra.mrb[0].mxu0 %v788
        %v2413 = vpop.f32.mrb[0].mxu0
        %v2414 = vadd.f32 0.0, %v2413
        %v2415 = vpop.f32.mrb[0].mxu0
        %2416 = vmatprep.mubr.f32.mxu0 %v998
        %2417 = vmatmul.mubr.f32.gmra.mrb[0].mxu0 %v867
        %v2418 = vpop.f32.mrb[0].mxu0
        %v2419 = vadd.f32 0.0, %v2418
        %v2420 = vpop.f32.mrb[0].mxu0
        %2421 = vmatprep.mubr.f32.mxu0 %v1000
        %2422 = vmatmul.mubr.f32.gmra.mrb[0].mxu0 %v791
        %v2423 = vpop.f32.mrb[0].mxu0
        %v2424 = vadd.f32 0.0, %v2423
        %v2425 = vpop.f32.mrb[0].mxu0
        %2426 = vmatprep.mubr.f32.mxu0 %v1198
        %2427 = vmatmul.mubr.f32.gmra.mrb[0].mxu0 %v868
        %v2428 = vpop.f32.mrb[0].mxu0
        %v2429 = vadd.f32 0.0, %v2428
        %v2430 = vpop.f32.mrb[0].mxu0
        %2431 = vmatprep.mubr.f32.mxu0 %v1200
        %2432 = vmatmul.mubr.f32.gmra.mrb[0].mxu0 %v794
        %v2433 = vpop.f32.mrb[0].mxu0
        %v2434 = vadd.f32 0.0, %v2433
        %v2435 = vpop.f32.mrb[0].mxu0
        %2436 = vmatprep.mubr.f32.mxu0 %v2162
        %2437 = vmatmul.mubr.f32.gmra.mrb[0].mxu0 %v869
        %v2438 = vpop.f32.mrb[0].mxu0
        %v2439 = vadd.f32 0.0, %v2438
        %v2440 = vpop.f32.mrb[0].mxu0
        %2441 = vmatprep.mubr.f32.mxu0 %v2164
        %2442 = vmatmul.mubr.f32.gmra.mrb[0].mxu0 %v797
        %v2443 = vpop.f32.mrb[0].mxu0
        %v2444 = vadd.f32 0.0, %v2443
        %v2445 = vpop.f32.mrb[0].mxu0
        %2446 = vdwg.mxu0
        %2447 = vmatprep.subr.mxu0 0.0
        %2448 = vmatpush1.msra.mxu0 %v2206
        %2449 = vmatprep.subr.mxu0 0.0
        %2450 = vmatpush1.msra.mxu0 %v2207
        %2451 = vmatprep.subr.mxu0 0.0
        %2452 = vmatpush1.msra.mxu0 %v2208
        %2453 = vmatprep.subr.mxu0 0.0
        %2454 = vmatpush1.msra.mxu0 %v2209
        %2455 = vmatprep.subr.mxu0 0.0
        %2456 = vmatpush1.msra.mxu0 %v2210
        %2457 = vmatprep.subr.mxu0 0.0
        %2458 = vmatpush1.msra.mxu0 %v2211
        %2459 = vmatprep.subr.mxu0 0.0
        %2460 = vmatpush1.msra.mxu0 %v2212
        %2461 = vmatprep.subr.mxu0 0.0
        %2462 = vmatpush1.msra.mxu0 %v2213
        %2463 = vmatprep.subr.mxu0 0.0
        %2464 = vmatpush1.msra.mxu0 %v2214
        %2465 = vmatprep.subr.mxu0 0.0
        %2466 = vmatpush1.msra.mxu0 %v2215
        %2467 = vmatprep.subr.mxu0 0.0
        %2468 = vmatpush1.msra.mxu0 %v2216
        %2469 = vmatprep.subr.mxu0 0.0
        %2470 = vmatpush1.msra.mxu0 %v2217
        %2471 = vmatprep.subr.mxu0 0.0
        %2472 = vmatpush1.msra.mxu0 %v2218
        %2473 = vmatprep.subr.mxu0 0.0
        %2474 = vmatpush1.msra.mxu0 %v2219
        %2475 = vmatprep.subr.mxu0 0.0
        %2476 = vmatpush1.msra.mxu0 %v2220
        %2477 = vmatprep.subr.mxu0 0.0
        %2478 = vmatpush1.msra.mxu0 %v2221
        %2479 = vmatprep.subr.mxu0 0.0
        %2480 = vmatpush1.msra.mxu0 0.0
        %2481 = vmatprep.subr.mxu0 0.0
        %2482 = vmatpush1.msra.mxu0 0.0
        %2483 = vmatprep.subr.mxu0 0.0
        %2484 = vmatpush1.msra.mxu0 0.0
        %2485 = vmatprep.subr.mxu0 0.0
        %2486 = vmatpush1.msra.mxu0 0.0
        %2487 = vmatprep.subr.mxu0 0.0
        %2488 = vmatpush1.msra.mxu0 0.0
        %2489 = vmatprep.subr.mxu0 0.0
        %2490 = vmatpush1.msra.mxu0 0.0
        %2491 = vmatprep.subr.mxu0 0.0
        %2492 = vmatpush1.msra.mxu0 0.0
        %2493 = vmatprep.subr.mxu0 0.0
        %2494 = vmatpush1.msra.mxu0 0.0
        %2495 = vmatprep.subr.mxu0 0.0
        %2496 = vmatpush1.msra.mxu0 0.0
        %2497 = vmatprep.subr.mxu0 0.0
        %2498 = vmatpush1.msra.mxu0 0.0
        %2499 = vmatprep.subr.mxu0 0.0
        %2500 = vmatpush1.msra.mxu0 0.0
        %2501 = vmatprep.subr.mxu0 0.0
        %2502 = vmatpush1.msra.mxu0 0.0
        %2503 = vmatprep.subr.mxu0 0.0
        %2504 = vmatpush1.msra.mxu0 0.0
        %2505 = vmatprep.subr.mxu0 0.0
        %2506 = vmatpush1.msra.mxu0 0.0
        %2507 = vmatprep.subr.mxu0 0.0
        %2508 = vmatpush1.msra.mxu0 0.0
        %2509 = vmatprep.subr.mxu0 0.0
        %2510 = vmatpush1.msra.mxu0 0.0
        %2511 = vmatprep.mubr.f32.mxu0 0.0
        %2512 = vmatmul.mubr.f32.gmra.mrb[0].mxu0 %v1046
        %v2513 = vpop.f32.mrb[0].mxu0
        %v2514 = vadd.f32 %v2289, %v2513
        %v2515 = vpop.f32.mrb[0].mxu0
        %2516 = vmatprep.mubr.f32.mxu0 0.0
        %2517 = vmatmul.mubr.f32.gmra.mrb[0].mxu0 %v1048
        %v2518 = vpop.f32.mrb[0].mxu0
        %v2519 = vadd.f32 %v2294, %v2518
        %v2520 = vpop.f32.mrb[0].mxu0
        %2521 = vmatprep.mubr.f32.mxu0 0.0
        %2522 = vmatmul.mubr.f32.gmra.mrb[0].mxu0 %v1051
        %v2523 = vpop.f32.mrb[0].mxu0
        %v2524 = vadd.f32 %v2299, %v2523
        %v2525 = vpop.f32.mrb[0].mxu0
        %2526 = vmatprep.mubr.f32.mxu0 0.0
        %2527 = vmatmul.mubr.f32.gmra.mrb[0].mxu0 %v1053
        %v2528 = vpop.f32.mrb[0].mxu0
        %v2529 = vadd.f32 %v2304, %v2528
        %v2530 = vpop.f32.mrb[0].mxu0
        %2531 = vmatprep.mubr.f32.mxu0 0.0
        %2532 = vmatmul.mubr.f32.gmra.mrb[0].mxu0 %v1056
        %v2533 = vpop.f32.mrb[0].mxu0
        %v2534 = vadd.f32 %v2309, %v2533
        %v2535 = vpop.f32.mrb[0].mxu0
        %2536 = vmatprep.mubr.f32.mxu0 0.0
        %2537 = vmatmul.mubr.f32.gmra.mrb[0].mxu0 %v1058
        %v2538 = vpop.f32.mrb[0].mxu0
        %v2539 = vadd.f32 %v2314, %v2538
        %v2540 = vpop.f32.mrb[0].mxu0
        %2541 = vmatprep.mubr.f32.mxu0 0.0
        %2542 = vmatmul.mubr.f32.gmra.mrb[0].mxu0 %v1061
        %v2543 = vpop.f32.mrb[0].mxu0
        %v2544 = vadd.f32 %v2319, %v2543
        %v2545 = vpop.f32.mrb[0].mxu0
        %2546 = vmatprep.mubr.f32.mxu0 0.0
        %2547 = vmatmul.mubr.f32.gmra.mrb[0].mxu0 %v1063
        %v2548 = vpop.f32.mrb[0].mxu0
        %v2549 = vadd.f32 %v2324, %v2548
        %v2550 = vpop.f32.mrb[0].mxu0
        %2551 = vmatprep.mubr.f32.mxu0 0.0
        %2552 = vmatmul.mubr.f32.gmra.mrb[0].mxu0 %v1066
        %v2553 = vpop.f32.mrb[0].mxu0
        %v2554 = vadd.f32 %v2329, %v2553
        %v2555 = vpop.f32.mrb[0].mxu0
        %2556 = vmatprep.mubr.f32.mxu0 0.0
        %2557 = vmatmul.mubr.f32.gmra.mrb[0].mxu0 %v1068
        %v2558 = vpop.f32.mrb[0].mxu0
        %v2559 = vadd.f32 %v2334, %v2558
        %v2560 = vpop.f32.mrb[0].mxu0
        %2561 = vmatprep.mubr.f32.mxu0 0.0
        %2562 = vmatmul.mubr.f32.gmra.mrb[0].mxu0 %v1071
        %v2563 = vpop.f32.mrb[0].mxu0
        %v2564 = vadd.f32 %v2339, %v2563
        %v2565 = vpop.f32.mrb[0].mxu0
        %2566 = vmatprep.mubr.f32.mxu0 0.0
        %2567 = vmatmul.mubr.f32.gmra.mrb[0].mxu0 %v1073
        %v2568 = vpop.f32.mrb[0].mxu0
        %v2569 = vadd.f32 %v2344, %v2568
        %v2570 = vpop.f32.mrb[0].mxu0
        %2571 = vmatprep.mubr.f32.mxu0 0.0
        %2572 = vmatmul.mubr.f32.gmra.mrb[0].mxu0 %v1076
        %v2573 = vpop.f32.mrb[0].mxu0
        %v2574 = vadd.f32 %v2349, %v2573
        %v2575 = vpop.f32.mrb[0].mxu0
        %2576 = vmatprep.mubr.f32.mxu0 0.0
        %2577 = vmatmul.mubr.f32.gmra.mrb[0].mxu0 %v1078
        %v2578 = vpop.f32.mrb[0].mxu0
        %v2579 = vadd.f32 %v2354, %v2578
        %v2580 = vpop.f32.mrb[0].mxu0
        %2581 = vmatprep.mubr.f32.mxu0 0.0
        %2582 = vmatmul.mubr.f32.gmra.mrb[0].mxu0 %v1081
        %v2583 = vpop.f32.mrb[0].mxu0
        %v2584 = vadd.f32 %v2359, %v2583
        %v2585 = vpop.f32.mrb[0].mxu0
        %2586 = vmatprep.mubr.f32.mxu0 0.0
        %2587 = vmatmul.mubr.f32.gmra.mrb[0].mxu0 %v1083
        %v2588 = vpop.f32.mrb[0].mxu0
        %v2589 = vadd.f32 %v2364, %v2588
        %v2590 = vpop.f32.mrb[0].mxu0
        %2591 = vmatprep.mubr.f32.mxu0 0.0
        %2592 = vmatmul.mubr.f32.gmra.mrb[0].mxu0 %v1086
        %v2593 = vpop.f32.mrb[0].mxu0
        %v2594 = vadd.f32 %v2369, %v2593
        %v2595 = vpop.f32.mrb[0].mxu0
        %2596 = vmatprep.mubr.f32.mxu0 0.0
        %2597 = vmatmul.mubr.f32.gmra.mrb[0].mxu0 %v1088
        %v2598 = vpop.f32.mrb[0].mxu0
        %v2599 = vadd.f32 %v2374, %v2598
        %v2600 = vpop.f32.mrb[0].mxu0
        %2601 = vmatprep.mubr.f32.mxu0 0.0
        %2602 = vmatmul.mubr.f32.gmra.mrb[0].mxu0 %v1091
        %v2603 = vpop.f32.mrb[0].mxu0
        %v2604 = vadd.f32 %v2379, %v2603
        %v2605 = vpop.f32.mrb[0].mxu0
        %2606 = vmatprep.mubr.f32.mxu0 0.0
        %2607 = vmatmul.mubr.f32.gmra.mrb[0].mxu0 %v1093
        %v2608 = vpop.f32.mrb[0].mxu0
        %v2609 = vadd.f32 %v2384, %v2608
        %v2610 = vpop.f32.mrb[0].mxu0
        %2611 = vmatprep.mubr.f32.mxu0 0.0
        %2612 = vmatmul.mubr.f32.gmra.mrb[0].mxu0 %v1096
        %v2613 = vpop.f32.mrb[0].mxu0
        %v2614 = vadd.f32 %v2389, %v2613
        %v2615 = vpop.f32.mrb[0].mxu0
        %2616 = vmatprep.mubr.f32.mxu0 0.0
        %2617 = vmatmul.mubr.f32.gmra.mrb[0].mxu0 %v1098
        %v2618 = vpop.f32.mrb[0].mxu0
        %v2619 = vadd.f32 %v2394, %v2618
        %v2620 = vpop.f32.mrb[0].mxu0
        %2621 = vmatprep.mubr.f32.mxu0 0.0
        %2622 = vmatmul.mubr.f32.gmra.mrb[0].mxu0 %v1101
        %v2623 = vpop.f32.mrb[0].mxu0
        %v2624 = vadd.f32 %v2399, %v2623
        %v2625 = vpop.f32.mrb[0].mxu0
        %2626 = vmatprep.mubr.f32.mxu0 0.0
        %2627 = vmatmul.mubr.f32.gmra.mrb[0].mxu0 %v1103
        %v2628 = vpop.f32.mrb[0].mxu0
        %v2629 = vadd.f32 %v2404, %v2628
        %v2630 = vpop.f32.mrb[0].mxu0
        %2631 = vmatprep.mubr.f32.mxu0 0.0
        %2632 = vmatmul.mubr.f32.gmra.mrb[0].mxu0 %v1106
        %v2633 = vpop.f32.mrb[0].mxu0
        %v2634 = vadd.f32 %v2409, %v2633
        %v2635 = vpop.f32.mrb[0].mxu0
        %2636 = vmatprep.mubr.f32.mxu0 0.0
        %2637 = vmatmul.mubr.f32.gmra.mrb[0].mxu0 %v1108
        %v2638 = vpop.f32.mrb[0].mxu0
        %v2639 = vadd.f32 %v2414, %v2638
        %v2640 = vpop.f32.mrb[0].mxu0
        %2641 = vmatprep.mubr.f32.mxu0 0.0
        %2642 = vmatmul.mubr.f32.gmra.mrb[0].mxu0 %v1111
        %v2643 = vpop.f32.mrb[0].mxu0
        %v2644 = vadd.f32 %v2419, %v2643
        %v2645 = vpop.f32.mrb[0].mxu0
        %2646 = vmatprep.mubr.f32.mxu0 0.0
        %2647 = vmatmul.mubr.f32.gmra.mrb[0].mxu0 %v1113
        %v2648 = vpop.f32.mrb[0].mxu0
        %v2649 = vadd.f32 %v2424, %v2648
        %v2650 = vpop.f32.mrb[0].mxu0
        %2651 = vmatprep.mubr.f32.mxu0 0.0
        %2652 = vmatmul.mubr.f32.gmra.mrb[0].mxu0 %v1205
        %v2653 = vpop.f32.mrb[0].mxu0
        %v2654 = vadd.f32 %v2429, %v2653
        %v2655 = vpop.f32.mrb[0].mxu0
        %2656 = vmatprep.mubr.f32.mxu0 0.0
        %2657 = vmatmul.mubr.f32.gmra.mrb[0].mxu0 %v1207
        %v2658 = vpop.f32.mrb[0].mxu0
        %v2659 = vadd.f32 %v2434, %v2658
        %v2660 = vpop.f32.mrb[0].mxu0
        %2661 = vmatprep.mubr.f32.mxu0 0.0
        %2662 = vmatmul.mubr.f32.gmra.mrb[0].mxu0 %v2169
        %v2663 = vpop.f32.mrb[0].mxu0
        %v2664 = vadd.f32 %v2439, %v2663
        %v2665 = vpop.f32.mrb[0].mxu0
        %2666 = vmatprep.mubr.f32.mxu0 0.0
        %2667 = vmatmul.mubr.f32.gmra.mrb[0].mxu0 %v2171
        %v2668 = vpop.f32.mrb[0].mxu0
        %v2669 = vadd.f32 %v2444, %v2668
        %v2670 = vpop.f32.mrb[0].mxu0
        %2671 = vdwg.mxu0
        %v2672 = vadd.f32 %v2000, %v2514
        %v2673 = vadd.f32 %v2005, %v2519
        %v2674 = vadd.f32 %v2010, %v2524
        %v2675 = vadd.f32 %v2015, %v2529
        %v2676 = vadd.f32 %v2020, %v2534
        %v2677 = vadd.f32 %v2025, %v2539
        %v2678 = vadd.f32 %v2030, %v2544
        %v2679 = vadd.f32 %v2035, %v2549
        %v2680 = vadd.f32 %v2040, %v2554
        %v2681 = vadd.f32 %v2045, %v2559
        %v2682 = vadd.f32 %v2050, %v2564
        %v2683 = vadd.f32 %v2055, %v2569
        %v2684 = vadd.f32 %v2060, %v2574
        %v2685 = vadd.f32 %v2065, %v2579
        %v2686 = vadd.f32 %v2070, %v2584
        %v2687 = vadd.f32 %v2075, %v2589
        %v2688 = vadd.f32 %v2080, %v2594
        %v2689 = vadd.f32 %v2085, %v2599
        %v2690 = vadd.f32 %v2090, %v2604
        %v2691 = vadd.f32 %v2095, %v2609
        %v2692 = vadd.f32 %v2100, %v2614
        %v2693 = vadd.f32 %v2105, %v2619
        %v2694 = vadd.f32 %v2110, %v2624
        %v2695 = vadd.f32 %v2115, %v2629
        %v2696 = vadd.f32 %v2120, %v2634
        %v2697 = vadd.f32 %v2125, %v2639
        %v2698 = vadd.f32 %v2130, %v2644
        %v2699 = vadd.f32 %v2135, %v2649
        %v2700 = vadd.f32 %v2140, %v2654
        %v2701 = vadd.f32 %v2145, %v2659
        %v2702 = vadd.f32 %v2150, %v2664
        %v2703 = vadd.f32 %v2155, %v2669
        %v2704 = vld [vmem:[#allocation8] sm:$0xff]
        %v2705 = vld [vmem:[#allocation8 + $0x8] sm:$0xff]
        %v2706 = vld [vmem:[#allocation8 + $0x10] sm:$0xff]
        %v2707 = vld [vmem:[#allocation8 + $0x18] sm:$0xff]
        %v2708 = vld [vmem:[#allocation8 + $0x20] sm:$0xff]
        %v2709 = vld [vmem:[#allocation8 + $0x28] sm:$0xff]
        %v2710 = vld [vmem:[#allocation8 + $0x30] sm:$0xff]
        %v2711 = vld [vmem:[#allocation8 + $0x38] sm:$0xff]
        %v2712 = vld [vmem:[#allocation8 + $0x40] sm:$0xff]
        %v2713 = vld [vmem:[#allocation8 + $0x48] sm:$0xff]
        %v2714 = vld [vmem:[#allocation8 + $0x50] sm:$0xff]
        %v2715 = vld [vmem:[#allocation8 + $0x58] sm:$0xff]
        %v2716 = vld [vmem:[#allocation8 + $0x60] sm:$0xff]
        %v2717 = vld [vmem:[#allocation8 + $0x68] sm:$0xff]
        %v2718 = vld [vmem:[#allocation8 + $0x70] sm:$0xff]
        %v2719 = vld [vmem:[#allocation8 + $0x78] sm:$0xff]
        %2720 = vmatprep.subr.mxu0 0.0
        %2721 = vmatpush1.msra.mxu0 %v2704
        %2722 = vmatprep.subr.mxu0 0.0
        %2723 = vmatpush1.msra.mxu0 %v2705
        %2724 = vmatprep.subr.mxu0 0.0
        %2725 = vmatpush1.msra.mxu0 %v2706
        %2726 = vmatprep.subr.mxu0 0.0
        %2727 = vmatpush1.msra.mxu0 %v2707
        %2728 = vmatprep.subr.mxu0 0.0
        %2729 = vmatpush1.msra.mxu0 %v2708
        %2730 = vmatprep.subr.mxu0 0.0
        %2731 = vmatpush1.msra.mxu0 %v2709
        %2732 = vmatprep.subr.mxu0 0.0
        %2733 = vmatpush1.msra.mxu0 %v2710
        %2734 = vmatprep.subr.mxu0 0.0
        %2735 = vmatpush1.msra.mxu0 %v2711
        %2736 = vmatprep.subr.mxu0 0.0
        %2737 = vmatpush1.msra.mxu0 %v2712
        %2738 = vmatprep.subr.mxu0 0.0
        %2739 = vmatpush1.msra.mxu0 %v2713
        %2740 = vmatprep.subr.mxu0 0.0
        %2741 = vmatpush1.msra.mxu0 %v2714
        %2742 = vmatprep.subr.mxu0 0.0
        %2743 = vmatpush1.msra.mxu0 %v2715
        %2744 = vmatprep.subr.mxu0 0.0
        %2745 = vmatpush1.msra.mxu0 %v2716
        %2746 = vmatprep.subr.mxu0 0.0
        %2747 = vmatpush1.msra.mxu0 %v2717
        %2748 = vmatprep.subr.mxu0 0.0
        %2749 = vmatpush1.msra.mxu0 %v2718
        %2750 = vmatprep.subr.mxu0 0.0
        %2751 = vmatpush1.msra.mxu0 %v2719
        %2752 = vmatprep.subr.mxu0 0.0
        %2753 = vmatpush1.msra.mxu0 0.0
        %2754 = vmatprep.subr.mxu0 0.0
        %2755 = vmatpush1.msra.mxu0 0.0
        %2756 = vmatprep.subr.mxu0 0.0
        %2757 = vmatpush1.msra.mxu0 0.0
        %2758 = vmatprep.subr.mxu0 0.0
        %2759 = vmatpush1.msra.mxu0 0.0
        %2760 = vmatprep.subr.mxu0 0.0
        %2761 = vmatpush1.msra.mxu0 0.0
        %2762 = vmatprep.subr.mxu0 0.0
        %2763 = vmatpush1.msra.mxu0 0.0
        %2764 = vmatprep.subr.mxu0 0.0
        %2765 = vmatpush1.msra.mxu0 0.0
        %2766 = vmatprep.subr.mxu0 0.0
        %2767 = vmatpush1.msra.mxu0 0.0
        %2768 = vmatprep.subr.mxu0 0.0
        %2769 = vmatpush1.msra.mxu0 0.0
        %2770 = vmatprep.subr.mxu0 0.0
        %2771 = vmatpush1.msra.mxu0 0.0
        %2772 = vmatprep.subr.mxu0 0.0
        %2773 = vmatpush1.msra.mxu0 0.0
        %2774 = vmatprep.subr.mxu0 0.0
        %2775 = vmatpush1.msra.mxu0 0.0
        %2776 = vmatprep.subr.mxu0 0.0
        %2777 = vmatpush1.msra.mxu0 0.0
        %2778 = vmatprep.subr.mxu0 0.0
        %2779 = vmatpush1.msra.mxu0 0.0
        %2780 = vmatprep.subr.mxu0 0.0
        %2781 = vmatpush1.msra.mxu0 0.0
        %2782 = vmatprep.subr.mxu0 0.0
        %2783 = vmatpush1.msra.mxu0 0.0
        %2784 = vmatprep.mubr.f32.mxu0 0.0
        %2785 = vmatmul.mubr.f32.gmra.mrb[0].mxu0 %v568
        %v2786 = vpop.f32.mrb[0].mxu0
        %v2787 = vadd.f32 0.0, %v2786
        %v2788 = vpop.f32.mrb[0].mxu0
        %2789 = vmatprep.mubr.f32.mxu0 0.0
        %2790 = vmatmul.mubr.f32.gmra.mrb[0].mxu0 %v569
        %v2791 = vpop.f32.mrb[0].mxu0
        %v2792 = vadd.f32 0.0, %v2791
        %v2793 = vpop.f32.mrb[0].mxu0
        %2794 = vmatprep.mubr.f32.mxu0 0.0
        %2795 = vmatmul.mubr.f32.gmra.mrb[0].mxu0 %v570
        %v2796 = vpop.f32.mrb[0].mxu0
        %v2797 = vadd.f32 0.0, %v2796
        %v2798 = vpop.f32.mrb[0].mxu0
        %2799 = vmatprep.mubr.f32.mxu0 0.0
        %2800 = vmatmul.mubr.f32.gmra.mrb[0].mxu0 %v571
        %v2801 = vpop.f32.mrb[0].mxu0
        %v2802 = vadd.f32 0.0, %v2801
        %v2803 = vpop.f32.mrb[0].mxu0
        %2804 = vmatprep.mubr.f32.mxu0 0.0
        %2805 = vmatmul.mubr.f32.gmra.mrb[0].mxu0 %v572
        %v2806 = vpop.f32.mrb[0].mxu0
        %v2807 = vadd.f32 0.0, %v2806
        %v2808 = vpop.f32.mrb[0].mxu0
        %2809 = vmatprep.mubr.f32.mxu0 0.0
        %2810 = vmatmul.mubr.f32.gmra.mrb[0].mxu0 %v573
        %v2811 = vpop.f32.mrb[0].mxu0
        %v2812 = vadd.f32 0.0, %v2811
        %v2813 = vpop.f32.mrb[0].mxu0
        %2814 = vmatprep.mubr.f32.mxu0 0.0
        %2815 = vmatmul.mubr.f32.gmra.mrb[0].mxu0 %v574
        %v2816 = vpop.f32.mrb[0].mxu0
        %v2817 = vadd.f32 0.0, %v2816
        %v2818 = vpop.f32.mrb[0].mxu0
        %2819 = vmatprep.mubr.f32.mxu0 0.0
        %2820 = vmatmul.mubr.f32.gmra.mrb[0].mxu0 %v575
        %v2821 = vpop.f32.mrb[0].mxu0
        %v2822 = vadd.f32 0.0, %v2821
        %v2823 = vpop.f32.mrb[0].mxu0
        %2824 = vmatprep.mubr.f32.mxu0 0.0
        %2825 = vmatmul.mubr.f32.gmra.mrb[0].mxu0 %v576
        %v2826 = vpop.f32.mrb[0].mxu0
        %v2827 = vadd.f32 0.0, %v2826
        %v2828 = vpop.f32.mrb[0].mxu0
        %2829 = vmatprep.mubr.f32.mxu0 0.0
        %2830 = vmatmul.mubr.f32.gmra.mrb[0].mxu0 %v577
        %v2831 = vpop.f32.mrb[0].mxu0
        %v2832 = vadd.f32 0.0, %v2831
        %v2833 = vpop.f32.mrb[0].mxu0
        %2834 = vmatprep.mubr.f32.mxu0 0.0
        %2835 = vmatmul.mubr.f32.gmra.mrb[0].mxu0 %v578
        %v2836 = vpop.f32.mrb[0].mxu0
        %v2837 = vadd.f32 0.0, %v2836
        %v2838 = vpop.f32.mrb[0].mxu0
        %2839 = vmatprep.mubr.f32.mxu0 0.0
        %2840 = vmatmul.mubr.f32.gmra.mrb[0].mxu0 %v579
        %v2841 = vpop.f32.mrb[0].mxu0
        %v2842 = vadd.f32 0.0, %v2841
        %v2843 = vpop.f32.mrb[0].mxu0
        %2844 = vmatprep.mubr.f32.mxu0 0.0
        %2845 = vmatmul.mubr.f32.gmra.mrb[0].mxu0 %v580
        %v2846 = vpop.f32.mrb[0].mxu0
        %v2847 = vadd.f32 0.0, %v2846
        %v2848 = vpop.f32.mrb[0].mxu0
        %2849 = vmatprep.mubr.f32.mxu0 0.0
        %2850 = vmatmul.mubr.f32.gmra.mrb[0].mxu0 %v581
        %v2851 = vpop.f32.mrb[0].mxu0
        %v2852 = vadd.f32 0.0, %v2851
        %v2853 = vpop.f32.mrb[0].mxu0
        %2854 = vmatprep.mubr.f32.mxu0 0.0
        %2855 = vmatmul.mubr.f32.gmra.mrb[0].mxu0 %v582
        %v2856 = vpop.f32.mrb[0].mxu0
        %v2857 = vadd.f32 0.0, %v2856
        %v2858 = vpop.f32.mrb[0].mxu0
        %2859 = vmatprep.mubr.f32.mxu0 0.0
        %2860 = vmatmul.mubr.f32.gmra.mrb[0].mxu0 %v583
        %v2861 = vpop.f32.mrb[0].mxu0
        %v2862 = vadd.f32 0.0, %v2861
        %v2863 = vpop.f32.mrb[0].mxu0
        %2864 = vmatprep.mubr.f32.mxu0 0.0
        %2865 = vmatmul.mubr.f32.gmra.mrb[0].mxu0 %v584
        %v2866 = vpop.f32.mrb[0].mxu0
        %v2867 = vadd.f32 0.0, %v2866
        %v2868 = vpop.f32.mrb[0].mxu0
        %2869 = vmatprep.mubr.f32.mxu0 0.0
        %2870 = vmatmul.mubr.f32.gmra.mrb[0].mxu0 %v585
        %v2871 = vpop.f32.mrb[0].mxu0
        %v2872 = vadd.f32 0.0, %v2871
        %v2873 = vpop.f32.mrb[0].mxu0
        %2874 = vmatprep.mubr.f32.mxu0 0.0
        %2875 = vmatmul.mubr.f32.gmra.mrb[0].mxu0 %v586
        %v2876 = vpop.f32.mrb[0].mxu0
        %v2877 = vadd.f32 0.0, %v2876
        %v2878 = vpop.f32.mrb[0].mxu0
        %2879 = vmatprep.mubr.f32.mxu0 0.0
        %2880 = vmatmul.mubr.f32.gmra.mrb[0].mxu0 %v587
        %v2881 = vpop.f32.mrb[0].mxu0
        %v2882 = vadd.f32 0.0, %v2881
        %v2883 = vpop.f32.mrb[0].mxu0
        %2884 = vmatprep.mubr.f32.mxu0 0.0
        %2885 = vmatmul.mubr.f32.gmra.mrb[0].mxu0 %v588
        %v2886 = vpop.f32.mrb[0].mxu0
        %v2887 = vadd.f32 0.0, %v2886
        %v2888 = vpop.f32.mrb[0].mxu0
        %2889 = vmatprep.mubr.f32.mxu0 0.0
        %2890 = vmatmul.mubr.f32.gmra.mrb[0].mxu0 %v589
        %v2891 = vpop.f32.mrb[0].mxu0
        %v2892 = vadd.f32 0.0, %v2891
        %v2893 = vpop.f32.mrb[0].mxu0
        %2894 = vmatprep.mubr.f32.mxu0 0.0
        %2895 = vmatmul.mubr.f32.gmra.mrb[0].mxu0 %v590
        %v2896 = vpop.f32.mrb[0].mxu0
        %v2897 = vadd.f32 0.0, %v2896
        %v2898 = vpop.f32.mrb[0].mxu0
        %2899 = vmatprep.mubr.f32.mxu0 0.0
        %2900 = vmatmul.mubr.f32.gmra.mrb[0].mxu0 %v591
        %v2901 = vpop.f32.mrb[0].mxu0
        %v2902 = vadd.f32 0.0, %v2901
        %v2903 = vpop.f32.mrb[0].mxu0
        %2904 = vmatprep.mubr.f32.mxu0 0.0
        %2905 = vmatmul.mubr.f32.gmra.mrb[0].mxu0 %v592
        %v2906 = vpop.f32.mrb[0].mxu0
        %v2907 = vadd.f32 0.0, %v2906
        %v2908 = vpop.f32.mrb[0].mxu0
        %2909 = vmatprep.mubr.f32.mxu0 0.0
        %2910 = vmatmul.mubr.f32.gmra.mrb[0].mxu0 %v593
        %v2911 = vpop.f32.mrb[0].mxu0
        %v2912 = vadd.f32 0.0, %v2911
        %v2913 = vpop.f32.mrb[0].mxu0
        %2914 = vmatprep.mubr.f32.mxu0 0.0
        %2915 = vmatmul.mubr.f32.gmra.mrb[0].mxu0 %v594
        %v2916 = vpop.f32.mrb[0].mxu0
        %v2917 = vadd.f32 0.0, %v2916
        %v2918 = vpop.f32.mrb[0].mxu0
        %2919 = vmatprep.mubr.f32.mxu0 0.0
        %2920 = vmatmul.mubr.f32.gmra.mrb[0].mxu0 %v595
        %v2921 = vpop.f32.mrb[0].mxu0
        %v2922 = vadd.f32 0.0, %v2921
        %v2923 = vpop.f32.mrb[0].mxu0
        %2924 = vmatprep.mubr.f32.mxu0 0.0
        %2925 = vmatmul.mubr.f32.gmra.mrb[0].mxu0 %v596
        %v2926 = vpop.f32.mrb[0].mxu0
        %v2927 = vadd.f32 0.0, %v2926
        %v2928 = vpop.f32.mrb[0].mxu0
        %2929 = vmatprep.mubr.f32.mxu0 0.0
        %2930 = vmatmul.mubr.f32.gmra.mrb[0].mxu0 %v597
        %v2931 = vpop.f32.mrb[0].mxu0
        %v2932 = vadd.f32 0.0, %v2931
        %v2933 = vpop.f32.mrb[0].mxu0
        %2934 = vmatprep.mubr.f32.mxu0 0.0
        %2935 = vmatmul.mubr.f32.gmra.mrb[0].mxu0 %v598
        %v2936 = vpop.f32.mrb[0].mxu0
        %v2937 = vadd.f32 0.0, %v2936
        %v2938 = vpop.f32.mrb[0].mxu0
        %2939 = vmatprep.mubr.f32.mxu0 0.0
        %2940 = vmatmul.mubr.f32.gmra.mrb[0].mxu0 %v599
        %v2941 = vpop.f32.mrb[0].mxu0
        %v2942 = vadd.f32 0.0, %v2941
        %v2943 = vpop.f32.mrb[0].mxu0
        %2944 = vdwg.mxu0
        %2945 = vst [vmem:[%s513] sm:$0xff] %v2672
        %2946 = vst [vmem:[%s513 + $0x8] sm:$0xff] %v2673
        %2947 = vst [vmem:[%s513 + $0x10] sm:$0xff] %v2674
        %2948 = vst [vmem:[%s513 + $0x18] sm:$0xff] %v2675
        %2949 = vst [vmem:[%s513 + $0x20] sm:$0xff] %v2676
        %2950 = vst [vmem:[%s513 + $0x28] sm:$0xff] %v2677
        %2951 = vst [vmem:[%s513 + $0x30] sm:$0xff] %v2678
        %2952 = vst [vmem:[%s513 + $0x38] sm:$0xff] %v2679
        %2953 = vst [vmem:[%s513 + $0x40] sm:$0xff] %v2680
        %2954 = vst [vmem:[%s513 + $0x48] sm:$0xff] %v2681
        %2955 = vst [vmem:[%s513 + $0x50] sm:$0xff] %v2682
        %2956 = vst [vmem:[%s513 + $0x58] sm:$0xff] %v2683
        %2957 = vst [vmem:[%s513 + $0x60] sm:$0xff] %v2684
        %2958 = vst [vmem:[%s513 + $0x68] sm:$0xff] %v2685
        %2959 = vst [vmem:[%s513 + $0x70] sm:$0xff] %v2686
        %2960 = vst [vmem:[%s513 + $0x78] sm:$0xff] %v2687
        %2961 = vst [vmem:[%s513 + $0x80] sm:$0xff] %v2688
        %2962 = vst [vmem:[%s513 + $0x88] sm:$0xff] %v2689
        %2963 = vst [vmem:[%s513 + $0x90] sm:$0xff] %v2690
        %2964 = vst [vmem:[%s513 + $0x98] sm:$0xff] %v2691
        %2965 = vst [vmem:[%s513 + $0xa0] sm:$0xff] %v2692
        %2966 = vst [vmem:[%s513 + $0xa8] sm:$0xff] %v2693
        %2967 = vst [vmem:[%s513 + $0xb0] sm:$0xff] %v2694
        %2968 = vst [vmem:[%s513 + $0xb8] sm:$0xff] %v2695
        %2969 = vst [vmem:[%s513 + $0xc0] sm:$0xff] %v2696
        %2970 = vst [vmem:[%s513 + $0xc8] sm:$0xff] %v2697
        %2971 = vst [vmem:[%s513 + $0xd0] sm:$0xff] %v2698
        %2972 = vst [vmem:[%s513 + $0xd8] sm:$0xff] %v2699
        %2973 = vst [vmem:[%s513 + $0xe0] sm:$0xff] %v2700
        %2974 = vst [vmem:[%s513 + $0xe8] sm:$0xff] %v2701
        %2975 = vst [vmem:[%s513 + $0xf0] sm:$0xff] %v2702
        %2976 = vst [vmem:[%s513 + $0xf8] sm:$0xff] %v2703
        %2977 = vst [vmem:[%s520] sm:$0xff] %v2787
        %2978 = vst [vmem:[%s520 + $0x8] sm:$0xff] %v2792
        %2979 = vst [vmem:[%s520 + $0x10] sm:$0xff] %v2797
        %2980 = vst [vmem:[%s520 + $0x18] sm:$0xff] %v2802
        %2981 = vst [vmem:[%s520 + $0x20] sm:$0xff] %v2807
        %2982 = vst [vmem:[%s520 + $0x28] sm:$0xff] %v2812
        %2983 = vst [vmem:[%s520 + $0x30] sm:$0xff] %v2817
        %2984 = vst [vmem:[%s520 + $0x38] sm:$0xff] %v2822
        %2985 = vst [vmem:[%s520 + $0x40] sm:$0xff] %v2827
        %2986 = vst [vmem:[%s520 + $0x48] sm:$0xff] %v2832
        %2987 = vst [vmem:[%s520 + $0x50] sm:$0xff] %v2837
        %2988 = vst [vmem:[%s520 + $0x58] sm:$0xff] %v2842
        %2989 = vst [vmem:[%s520 + $0x60] sm:$0xff] %v2847
        %2990 = vst [vmem:[%s520 + $0x68] sm:$0xff] %v2852
        %2991 = vst [vmem:[%s520 + $0x70] sm:$0xff] %v2857
        %2992 = vst [vmem:[%s520 + $0x78] sm:$0xff] %v2862
        %2993 = vst [vmem:[%s520 + $0x80] sm:$0xff] %v2867
        %2994 = vst [vmem:[%s520 + $0x88] sm:$0xff] %v2872
        %2995 = vst [vmem:[%s520 + $0x90] sm:$0xff] %v2877
        %2996 = vst [vmem:[%s520 + $0x98] sm:$0xff] %v2882
        %2997 = vst [vmem:[%s520 + $0xa0] sm:$0xff] %v2887
        %2998 = vst [vmem:[%s520 + $0xa8] sm:$0xff] %v2892
        %2999 = vst [vmem:[%s520 + $0xb0] sm:$0xff] %v2897
        %3000 = vst [vmem:[%s520 + $0xb8] sm:$0xff] %v2902
        %3001 = vst [vmem:[%s520 + $0xc0] sm:$0xff] %v2907
        %3002 = vst [vmem:[%s520 + $0xc8] sm:$0xff] %v2912
        %3003 = vst [vmem:[%s520 + $0xd0] sm:$0xff] %v2917
        %3004 = vst [vmem:[%s520 + $0xd8] sm:$0xff] %v2922
        %3005 = vst [vmem:[%s520 + $0xe0] sm:$0xff] %v2927
        %3006 = vst [vmem:[%s520 + $0xe8] sm:$0xff] %v2932
        %3007 = vst [vmem:[%s520 + $0xf0] sm:$0xff] %v2937
        %3008 = vst [vmem:[%s520 + $0xf8] sm:$0xff] %v2942
        %v3009 = vadd.f32 %v2672, %v2673
        %v3010 = vadd.f32 %v3009, %v2674
        %v3011 = vadd.f32 %v3010, %v2675
        %v3012 = vadd.f32 %v3011, %v2676
        %v3013 = vadd.f32 %v3012, %v2677
        %v3014 = vadd.f32 %v3013, %v2678
        %v3015 = vadd.f32 %v3014, %v2679
        %v3016 = vadd.f32 %v3015, %v2680
        %v3017 = vadd.f32 %v3016, %v2681
        %v3018 = vadd.f32 %v3017, %v2682
        %v3019 = vadd.f32 %v3018, %v2683
        %v3020 = vadd.f32 %v3019, %v2684
        %v3021 = vadd.f32 %v3020, %v2685
        %v3022 = vadd.f32 %v3021, %v2686
        %v3023 = vadd.f32 %v3022, %v2687
        %v3024 = vadd.f32 %v3023, %v2688
        %v3025 = vadd.f32 %v3024, %v2689
        %v3026 = vadd.f32 %v3025, %v2690
        %v3027 = vadd.f32 %v3026, %v2691
        %v3028 = vadd.f32 %v3027, %v2692
        %v3029 = vadd.f32 %v3028, %v2693
        %v3030 = vadd.f32 %v3029, %v2694
        %v3031 = vadd.f32 %v3030, %v2695
        %v3032 = vadd.f32 %v3031, %v2696
        %v3033 = vadd.f32 %v3032, %v2697
        %v3034 = vadd.f32 %v3033, %v2698
        %v3035 = vadd.f32 %v3034, %v2699
        %v3036 = vadd.f32 %v3035, %v2700
        %v3037 = vadd.f32 %v3036, %v2701
        %v3038 = vadd.f32 %v3037, %v2702
        %v3039 = vadd.f32 %v3038, %v2703
        %v3040 = vrot.slane %v3039, 4
        %v3041 = vadd.f32 %v3039, %v3040
        %v3042 = vrot.slane %v3041, 2
        %v3043 = vadd.f32 %v3041, %v3042
        %v3044 = vrot.slane %v3043, 1
        %v3045 = vadd.f32 %v3043, %v3044
        %v3046 = vmul.f32 %v2672, %v2672
        %v3047 = vmul.f32 %v2673, %v2673
        %v3048 = vmul.f32 %v2674, %v2674
        %v3049 = vmul.f32 %v2675, %v2675
        %v3050 = vmul.f32 %v2676, %v2676
        %v3051 = vmul.f32 %v2677, %v2677
        %v3052 = vmul.f32 %v2678, %v2678
        %v3053 = vmul.f32 %v2679, %v2679
        %v3054 = vmul.f32 %v2680, %v2680
        %v3055 = vmul.f32 %v2681, %v2681
        %v3056 = vmul.f32 %v2682, %v2682
        %v3057 = vmul.f32 %v2683, %v2683
        %v3058 = vmul.f32 %v2684, %v2684
        %v3059 = vmul.f32 %v2685, %v2685
        %v3060 = vmul.f32 %v2686, %v2686
        %v3061 = vmul.f32 %v2687, %v2687
        %v3062 = vmul.f32 %v2688, %v2688
        %v3063 = vmul.f32 %v2689, %v2689
        %v3064 = vmul.f32 %v2690, %v2690
        %v3065 = vmul.f32 %v2691, %v2691
        %v3066 = vmul.f32 %v2692, %v2692
        %v3067 = vmul.f32 %v2693, %v2693
        %v3068 = vmul.f32 %v2694, %v2694
        %v3069 = vmul.f32 %v2695, %v2695
        %v3070 = vmul.f32 %v2696, %v2696
        %v3071 = vmul.f32 %v2697, %v2697
        %v3072 = vmul.f32 %v2698, %v2698
        %v3073 = vmul.f32 %v2699, %v2699
        %v3074 = vmul.f32 %v2700, %v2700
        %v3075 = vmul.f32 %v2701, %v2701
        %v3076 = vmul.f32 %v2702, %v2702
        %v3077 = vmul.f32 %v2703, %v2703
        %v3078 = vadd.f32 %v3046, %v3047
        %v3079 = vadd.f32 %v3078, %v3048
        %v3080 = vadd.f32 %v3079, %v3049
        %v3081 = vadd.f32 %v3080, %v3050
        %v3082 = vadd.f32 %v3081, %v3051
        %v3083 = vadd.f32 %v3082, %v3052
        %v3084 = vadd.f32 %v3083, %v3053
        %v3085 = vadd.f32 %v3084, %v3054
        %v3086 = vadd.f32 %v3085, %v3055
        %v3087 = vadd.f32 %v3086, %v3056
        %v3088 = vadd.f32 %v3087, %v3057
        %v3089 = vadd.f32 %v3088, %v3058
        %v3090 = vadd.f32 %v3089, %v3059
        %v3091 = vadd.f32 %v3090, %v3060
        %v3092 = vadd.f32 %v3091, %v3061
        %v3093 = vadd.f32 %v3092, %v3062
        %v3094 = vadd.f32 %v3093, %v3063
        %v3095 = vadd.f32 %v3094, %v3064
        %v3096 = vadd.f32 %v3095, %v3065
        %v3097 = vadd.f32 %v3096, %v3066
        %v3098 = vadd.f32 %v3097, %v3067
        %v3099 = vadd.f32 %v3098, %v3068
        %v3100 = vadd.f32 %v3099, %v3069
        %v3101 = vadd.f32 %v3100, %v3070
        %v3102 = vadd.f32 %v3101, %v3071
        %v3103 = vadd.f32 %v3102, %v3072
        %v3104 = vadd.f32 %v3103, %v3073
        %v3105 = vadd.f32 %v3104, %v3074
        %v3106 = vadd.f32 %v3105, %v3075
        %v3107 = vadd.f32 %v3106, %v3076
        %v3108 = vadd.f32 %v3107, %v3077
        %v3109 = vrot.slane %v3108, 4
        %v3110 = vadd.f32 %v3108, %v3109
        %v3111 = vrot.slane %v3110, 2
        %v3112 = vadd.f32 %v3110, %v3111
        %v3113 = vrot.slane %v3112, 1
        %v3114 = vadd.f32 %v3112, %v3113
        %v3115 = vsel %vm743, %v3045, %v3114
        %vm3116 = vcmask 1041408
        %v3117 = vsel %vm3116, %v3115, 0.0
        %p3118 = scmp.eq.s32.totalorder %s39, 0
        // Predicated region
        $region69: #{tpu_custom_call.1} parent=47 // pred_check
          %p3119 = pneg %p3118
        $region70: #{tpu_custom_call.1} parent=47 // pred_check_branch
          %3121 = sbr.rel (%p3119) target = $region72
        $region71: #{tpu_custom_call.1} parent=47 // pred_region
          %3122 = vst [vmem:[%s527] sm:$0xff] 0.0
        $region72: #{tpu_custom_call.1} parent=47 // pred_fallthru
          _
        %v3123 = vld [vmem:[%s527] sm:$0xff]
        %v3124 = vadd.f32 %v3123, %v3117
        %3125 = vst [vmem:[%s527] sm:$0xff] %v3124
        %s3126 = sand.u32 %s240, 1
        %s3127 = scalar_lea.sflag [#allocation4], %s3126
        %s3128 = sand.u32 %s240, 1
        %s3129 = smul.addr %s3128, 256
        %s3130 = scalar_lea.vmem [#allocation11], %s3129
        %s3131 = sand.u32 %s34, 1
        %s3132 = scalar_lea.sflag [#allocation13], %s3131
        %s3133 = sand.u32 %s268, 1
        %s3134 = smul.addr %s3133, 256
        %s3135 = scalar_lea.vmem [#allocation12], %s3134
        %s3136 = sand.u32 %s34, 1
        %s3137 = scalar_lea.sflag [#allocation13], %s3136
        %s3138 = sand.u32 %s294, 1
        %s3139 = smul.addr %s3138, 8
        %s3140 = scalar_lea.vmem [#allocation14], %s3139
        // Predicated region
        $region73: #{tpu_custom_call.1} parent=47 // pred_check
          %p3141 = pneg %p250
        $region74: #{tpu_custom_call.1} parent=47 // pred_check_branch
          %3143 = sbr.rel (%p3141) target = $region76
        $region75: #{tpu_custom_call.1} parent=47 // pred_region
          %s3144 = smul.u32 16, %s39
          %s3146 = ssub.s32 4096, 4096
          %3147 = vsyncadd %s3127, %s3146
          %s3148 = smul.addr %s3144, 2
          %s3149 = smul.addr %s38, 32
          %s3150 = sadd.s32 %s3148, %s3149
          %s3151 = smul.addr %s3150, 128
          %s3152 = scalar_lea.hbm %s7, %s3151
          %s3153 = sshll.u32 %s3130, 4
          %s3154 = int_to_ptr.vmem [resolvable:$true] %s3153
          %3159 = dma.vmem_to_hbm [thread:$0]  %s3154, 4096, %s3152, %s3127, 128, 128, 8
        $region76: #{tpu_custom_call.1} parent=47 // pred_fallthru
          _
        // Predicated region
        $region77: #{tpu_custom_call.1} parent=47 // pred_check
          %p3160 = pneg %p278
        $region78: #{tpu_custom_call.1} parent=47 // pred_check_branch
          %3162 = sbr.rel (%p3160) target = $region80
        $region79: #{tpu_custom_call.1} parent=47 // pred_region
          %s3163 = smul.u32 16, %s39
          %s3165 = ssub.s32 4096, 4096
          %3166 = vsyncadd %s3132, %s3165
          %s3167 = smul.addr %s3163, 2
          %s3168 = smul.addr %s38, 32
          %s3169 = sadd.s32 %s3167, %s3168
          %s3170 = smul.addr %s3169, 128
          %s3171 = scalar_lea.hbm %s8, %s3170
          %s3172 = sshll.u32 %s3135, 4
          %s3173 = int_to_ptr.vmem [resolvable:$true] %s3172
          %3178 = dma.vmem_to_hbm [thread:$0]  %s3173, 4096, %s3171, %s3132, 128, 128, 8
        $region80: #{tpu_custom_call.1} parent=47 // pred_fallthru
          _
        // Predicated region
        $region81: #{tpu_custom_call.1} parent=47 // pred_check
          %p3179 = pneg %p304
        $region82: #{tpu_custom_call.1} parent=47 // pred_check_branch
          %3181 = sbr.rel (%p3179) target = $region84
        $region83: #{tpu_custom_call.1} parent=47 // pred_region
          %s3183 = ssub.s32 128, 128
          %3184 = vsyncadd %s3137, %s3183
          %s3185 = smul.addr %s38, 128
          %s3186 = scalar_lea.hbm %s9, %s3185
          %s3188 = sshll.u32 %s3140, 4
          %s3189 = int_to_ptr.vmem [resolvable:$true] %s3188
          %3191 = dma.vmem_to_hbm [thread:$0]  %s3189, 128, %s3186, %s3137
        $region84: #{tpu_custom_call.1} parent=47 // pred_fallthru
          _
      $region48: #{tpu_custom_call.1} parent=5 // pred_fallthru
        _
      %p3192 = scmp.le.s32.totalorder 2, %s29
      // Predicated region
      $region85: #{tpu_custom_call.1} parent=5 // pred_check
        %p3193 = pneg %p3192
      $region86: #{tpu_custom_call.1} parent=5 // pred_check_branch
        %3195 = sbr.rel (%p3193) target = $region88
      $region87: #{tpu_custom_call.1} parent=5 // pred_region
        %s3196 = ssub.s32 %s29, 2
        // Predicated region
        $region89: #{tpu_custom_call.1} parent=87 // pred_check
          %p3197 = pneg %p256
        $region90: #{tpu_custom_call.1} parent=87 // pred_check_branch
          %3199 = sbr.rel (%p3197) target = $region92
        $region91: #{tpu_custom_call.1} parent=87 // pred_region
          %s3200 = sand.u32 %s241, 1
          %s3201 = scalar_lea.sflag [#allocation4], %s3200
          %s3202 = sand.u32 %s241, 1
          %s3203 = smul.addr %s3202, 256
          %s3204 = scalar_lea.vmem [#allocation11], %s3203
          %3205 = dma.done %s3201, 4096
        $region92: #{tpu_custom_call.1} parent=87 // pred_fallthru
          _
        // Predicated region
        $region93: #{tpu_custom_call.1} parent=87 // pred_check
          %p3206 = pneg %p284
        $region94: #{tpu_custom_call.1} parent=87 // pred_check_branch
          %3208 = sbr.rel (%p3206) target = $region96
        $region95: #{tpu_custom_call.1} parent=87 // pred_region
          %s3209 = sand.u32 %s35, 1
          %s3210 = scalar_lea.sflag [#allocation13], %s3209
          %s3211 = sand.u32 %s269, 1
          %s3212 = smul.addr %s3211, 256
          %s3213 = scalar_lea.vmem [#allocation12], %s3212
          %3214 = dma.done %s3210, 4096
        $region96: #{tpu_custom_call.1} parent=87 // pred_fallthru
          _
        // Predicated region
        $region97: #{tpu_custom_call.1} parent=87 // pred_check
          %p3215 = pneg %p310
        $region98: #{tpu_custom_call.1} parent=87 // pred_check_branch
          %3217 = sbr.rel (%p3215) target = $region100
        $region99: #{tpu_custom_call.1} parent=87 // pred_region
          %s3218 = sand.u32 %s35, 1
          %s3219 = scalar_lea.sflag [#allocation13], %s3218
          %s3220 = sand.u32 %s295, 1
          %s3221 = smul.addr %s3220, 8
          %s3222 = scalar_lea.vmem [#allocation14], %s3221
          %3223 = dma.done %s3219, 128
        $region100: #{tpu_custom_call.1} parent=87 // pred_fallthru
          _
      $region88: #{tpu_custom_call.1} parent=5 // pred_fallthru
        _
    $region6: #{tpu_custom_call.1} parent=1 // loop_footer
      %s33 = sadd.s32 1, %s29
    $region7: #{tpu_custom_call.1} parent=1 // loop_footer_branch
      %28 = sbr.rel target = $region3
    $region8: #{tpu_custom_call.1} parent=1 // loop_exit
      _
    %3224 = vsyncpa [#allocation3], 1
    %s3225 = scalar_lea.sflag [#allocation3], 1
    %3226 = vsyncpa %s3225, 1
    %3227 = vsyncpa [#allocation6], 1
    %s3228 = scalar_lea.sflag [#allocation6], 1
    %3229 = vsyncpa %s3228, 1
    %3230 = vsyncpa [#allocation9], 1
    %3231 = vsyncpa [#allocation4], 1
    %s3232 = scalar_lea.sflag [#allocation4], 1
    %3233 = vsyncpa %s3232, 1
    %3234 = vsyncpa [#allocation13], 1
    %s3235 = scalar_lea.sflag [#allocation13], 1
    %3236 = vsyncpa %s3235, 1

</llo_original>
